<compile_context>
chip_gen: v7x
topology: tpu7x:2x2x1
jax: 0.10.0
libtpu: 0.0.40
codegen_flags: <defaults>
</compile_context>

<pallas_src>
import jax
import jax.numpy as jnp
from jax.experimental import pallas as pl
from jax.experimental.pallas import tpu as pltpu

INPUT_SIZE = 4          # len(['tmax_m', 'tmin_m', 'rrr24', 'SPI'])
HIDDEN_SIZE = 64
NUM_LAYERS = 2          # hard-coded as two stacked cells in the kernel
OUTPUT_SIZE = 1
SUBLANES = 8            # f32 sublane count — batch is padded to a multiple


def lstm_kernel(x_ref,                       # (T*B, H)  time-major, lane-padded
                wih0_ref, whh0_ref, b0_ref,  # layer 0: (H,4H), (H,4H), (1,4H)  [i|f|o|g]
                wih1_ref, whh1_ref, b1_ref,  # layer 1: (H,4H), (H,4H), (1,4H)  [i|f|o|g]
                wfc_ref, bfc_ref,            # fc:      (1,H),  (1,1)
                out_ref,                     # (B, 1)
                gx_ref):                     # VMEM scratch: (T*B, 4H)
    TB, H = x_ref.shape
    B = out_ref.shape[0]
    T = TB // B
    H4 = 4 * H

    # --- Prologue: hoist the non-recurrent layer-0 input projection out of the
    # recurrence.  One MXU pass with M = T*B (instead of T passes with M = B on
    # the serial chain); the layer-0 bias is folded in here.
    gx_ref[...] = (
        jnp.dot(x_ref[...], wih0_ref[...], preferred_element_type=jnp.float32)
        + jnp.broadcast_to(b0_ref[...], (TB, H4)))

    # Hoist the layer-1 bias broadcast out of the time loop (broadcast_in_dim
    # is not CSE'd by JAX).
    b1 = jnp.broadcast_to(b1_ref[...], (B, H4))

    def gate_math(gates, c_prev):
        # Gate columns pre-ordered [i | f | o | g]: one contiguous sigmoid slab
        # (B, 3H) and one tanh slab (B, H) -> 2 EUP pushes per cell.
        s = jax.nn.sigmoid(gates[:, : 3 * H])
        g = jnp.tanh(gates[:, 3 * H:])
        i = s[:, :H]
        f = s[:, H:2 * H]
        o = s[:, 2 * H:3 * H]
        c_new = f * c_prev + i * g
        h_new = o * jnp.tanh(c_new)
        return h_new, c_new

    def step(t, carry):
        h0, c0, h1, c1 = carry
        row = pl.multiple_of(t * B, B)   # sublane-aligned scratch slice start
        # Layer-1 recurrent half does not depend on layer-0(t): expose it first
        # so it can overlap with the layer-0 chain.
        g1h = jnp.dot(h1, whh1_ref[...], preferred_element_type=jnp.float32)
        # Layer 0: precomputed input projection + recurrent half (no concat).
        gates0 = gx_ref[pl.ds(row, B), :] + jnp.dot(
            h0, whh0_ref[...], preferred_element_type=jnp.float32)
        h0, c0 = gate_math(gates0, c0)
        # Layer 1.
        gates1 = g1h + b1 + jnp.dot(
            h0, wih1_ref[...], preferred_element_type=jnp.float32)
        h1, c1 = gate_math(gates1, c1)
        return (h0, c0, h1, c1)

    zeros = jnp.zeros((B, H), jnp.float32)
    # Partial unroll: LLO scheduling visibility without code-size / live-range
    # blowup at large T (full unroll only when T <= 8).
    _, _, h1, _ = jax.lax.fori_loop(0, T, step, (zeros, zeros, zeros, zeros),
                                    unroll=min(T, 8))

    # Final fc (H -> 1): VPU multiply + lane reduction; avoids a 1-column,
    # ~1/128-utilized MXU pass and its masked result path.
    out = jnp.sum(h1 * wfc_ref[...], axis=-1, keepdims=True) + bfc_ref[...]
    out_ref[...] = out.astype(out_ref.dtype)


def _reorder_gates(a, axis):
    """PyTorch gate order [i, f, g, o] -> kernel order [i, f, o, g]."""
    i, f, g, o = jnp.split(a, 4, axis=axis)
    return jnp.concatenate([i, f, o, g], axis=axis)


def prepare_kernel_params(params):
    """Convert PyTorch-layout params to the reordered / padded kernel layout."""
    H = HIDDEN_SIZE

    def prep_w(w, in_size):
        # w: (4H, in_size) PyTorch layout -> (in_size, 4H), gates [i|f|o|g],
        # zero-row padded up to H rows for lane-padded inputs.
        wt = _reorder_gates(w.T.astype(jnp.float32), axis=1)
        pad = H - in_size
        if pad > 0:
            wt = jnp.concatenate([wt, jnp.zeros((pad, 4 * H), jnp.float32)],
                                 axis=0)
        return wt

    def prep_b(b_ih, b_hh):
        return _reorder_gates((b_ih + b_hh).astype(jnp.float32)[None, :], axis=1)

    wih0 = prep_w(params["w_ih_l0"], INPUT_SIZE)
    whh0 = prep_w(params["w_hh_l0"], H)
    b0 = prep_b(params["b_ih_l0"], params["b_hh_l0"])
    wih1 = prep_w(params["w_ih_l1"], H)
    whh1 = prep_w(params["w_hh_l1"], H)
    b1 = prep_b(params["b_ih_l1"], params["b_hh_l1"])
    wfc = params["fc_w"].reshape(1, H).astype(jnp.float32)
    bfc = params["fc_b"].reshape(1, 1).astype(jnp.float32)
    return wih0, whh0, b0, wih1, whh1, b1, wfc, bfc


def lstm_model_forward(x, params):
    """x: (batch, seq, input_size) batch_first, like the PyTorch module."""
    B, T, I = x.shape
    H = HIDDEN_SIZE
    assert I <= H

    wih0, whh0, b0, wih1, whh1, b1, wfc, bfc = prepare_kernel_params(params)

    # Pad batch up to the f32 sublane count: full sublane occupancy and
    # sublane-aligned per-step slices of the Gx0 scratch.  Padded rows evolve
    # independently and are sliced off at the end.
    Bp = ((B + SUBLANES - 1) // SUBLANES) * SUBLANES

    # Time-major, batch-padded, lane-padded (to H, hitting zero weight rows),
    # flattened to (T*Bp, H) for the prologue projection and per-step slicing.
    x_tm = jnp.transpose(x, (1, 0, 2)).astype(jnp.float32)        # (T, B, I)
    x_tm = jnp.pad(x_tm, ((0, 0), (0, Bp - B), (0, H - I)))       # (T, Bp, H)
    x_flat = x_tm.reshape(T * Bp, H)

    vmem = lambda: pl.BlockSpec(memory_space=pltpu.MemorySpace.VMEM)
    out = pl.pallas_call(
        lstm_kernel,
        out_shape=jax.ShapeDtypeStruct((Bp, OUTPUT_SIZE), jnp.float32),
        in_specs=[vmem() for _ in range(9)],
        out_specs=vmem(),
        scratch_shapes=[pltpu.VMEM((T * Bp, 4 * H), jnp.float32)],
    )(x_flat, wih0, whh0, b0, wih1, whh1, b1, wfc, bfc)
    return out[:B]


def init_params(key, input_size=INPUT_SIZE, hidden_size=HIDDEN_SIZE,
                output_size=OUTPUT_SIZE):
    """Synthetic params in PyTorch nn.LSTM / nn.Linear layout (two biases)."""
    H = hidden_size
    k = 1.0 / (H ** 0.5)
    keys = jax.random.split(key, 10)
    u = lambda kk, shape: jax.random.uniform(kk, shape, jnp.float32, -k, k)
    return {
        "w_ih_l0": u(keys[0], (4 * H, input_size)),
        "w_hh_l0": u(keys[1], (4 * H, H)),
        "b_ih_l0": u(keys[2], (4 * H,)),
        "b_hh_l0": u(keys[3], (4 * H,)),
        "w_ih_l1": u(keys[4], (4 * H, H)),
        "w_hh_l1": u(keys[5], (4 * H, H)),
        "b_ih_l1": u(keys[6], (4 * H,)),
        "b_hh_l1": u(keys[7], (4 * H,)),
        "fc_w":    u(keys[8], (output_size, H)),
        "fc_b":    u(keys[9], (output_size,)),
    }


def lstm_model_ref(x, params):
    """Pure-JAX reference with PyTorch semantics (for verification)."""
    B, T, _ = x.shape
    H = HIDDEN_SIZE

    def cell(x_t, h, c, w_ih, w_hh, b_ih, b_hh):
        gates = x_t @ w_ih.T + h @ w_hh.T + b_ih + b_hh
        i, f, g, o = jnp.split(gates, 4, axis=-1)
        c_new = jax.nn.sigmoid(f) * c + jax.nn.sigmoid(i) * jnp.tanh(g)
        h_new = jax.nn.sigmoid(o) * jnp.tanh(c_new)
        return h_new, c_new

    h0 = c0 = h1 = c1 = jnp.zeros((B, H), jnp.float32)
    for t in range(T):
        x_t = x[:, t, :].astype(jnp.float32)
        h0, c0 = cell(x_t, h0, c0, params["w_ih_l0"], params["w_hh_l0"],
                      params["b_ih_l0"], params["b_hh_l0"])
        h1, c1 = cell(h0, h1, c1, params["w_ih_l1"], params["w_hh_l1"],
                      params["b_ih_l1"], params["b_hh_l1"])
    return h1 @ params["fc_w"].T + params["fc_b"]


if __name__ == "__main__":
    key = jax.random.PRNGKey(0)
    k_param, k_x = jax.random.split(key)

    batch, seq = 2, 8
    params = init_params(k_param)
    x = jax.random.normal(k_x, (batch, seq, INPUT_SIZE), jnp.float32)

    out = lstm_model_forward(x, params)
    out = jax.block_until_ready(out)

    ref = lstm_model_ref(x, params)
    assert out.shape == (batch, OUTPUT_SIZE), out.shape
    assert jnp.allclose(out, ref, atol=1e-5, rtol=1e-5), (out, ref)

    print("KERNEL_OK")
</pallas_src>

<mosaic_0001>
module attributes {stable_mosaic.version = 11 : i64} {
  func.func @lstm_kernel(%arg0: memref<64x64xf32, #tpu.memory_space<vmem>>, %arg1: memref<64x256xf32, #tpu.memory_space<vmem>>, %arg2: memref<64x256xf32, #tpu.memory_space<vmem>>, %arg3: memref<1x256xf32, #tpu.memory_space<vmem>>, %arg4: memref<64x256xf32, #tpu.memory_space<vmem>>, %arg5: memref<64x256xf32, #tpu.memory_space<vmem>>, %arg6: memref<1x256xf32, #tpu.memory_space<vmem>>, %arg7: memref<1x64xf32, #tpu.memory_space<vmem>>, %arg8: memref<1x1xf32, #tpu.memory_space<vmem>>, %arg9: memref<8x1xf32, #tpu.memory_space<vmem>>, %arg10: memref<64x256xf32, #tpu.memory_space<vmem>>) attributes {dimension_semantics = [], scalar_prefetch = 0 : i64, scratch_operands = 1 : i64, tpu.core_type = #tpu.core_type<tc>} {
    %c0 = arith.constant 0 : index
    %c0_0 = arith.constant 0 : index
    %0 = vector.load %arg0[%c0, %c0_0] : memref<64x64xf32, #tpu.memory_space<vmem>>, vector<64x64xf32>
    %c0_1 = arith.constant 0 : index
    %c0_2 = arith.constant 0 : index
    %1 = vector.load %arg1[%c0_1, %c0_2] : memref<64x256xf32, #tpu.memory_space<vmem>>, vector<64x256xf32>
    %cst = arith.constant dense<0.000000e+00> : vector<64x256xf32>
    %2 = tpu.matmul %0, %1, %cst {dimension_numbers = #tpu.dot_dimension_numbers<[1], [0], [0], [1], [0, 0, 1, 1], [], []>} : vector<64x64xf32>, vector<64x256xf32>, vector<64x256xf32> -> vector<64x256xf32>
    %c0_3 = arith.constant 0 : index
    %c0_4 = arith.constant 0 : index
    %3 = vector.load %arg3[%c0_3, %c0_4] : memref<1x256xf32, #tpu.memory_space<vmem>>, vector<1x256xf32>
    %4 = vector.shape_cast %3 : vector<1x256xf32> to vector<1x256xf32>
    %5 = vector.broadcast %4 : vector<1x256xf32> to vector<64x256xf32>
    %6 = arith.addf %2, %5 : vector<64x256xf32>
    %c0_5 = arith.constant 0 : index
    %c0_6 = arith.constant 0 : index
    %7 = vector.load %arg10[%c0_5, %c0_6] : memref<64x256xf32, #tpu.memory_space<vmem>>, vector<64x256xf32>
    tpu.vector_store %arg10[%c0_5, %c0_6], %6 {strides = array<i32>} : memref<64x256xf32, #tpu.memory_space<vmem>>, vector<64x256xf32>,
    %c0_7 = arith.constant 0 : index
    %c0_8 = arith.constant 0 : index
    %8 = vector.load %arg6[%c0_7, %c0_8] : memref<1x256xf32, #tpu.memory_space<vmem>>, vector<1x256xf32>
    %9 = vector.shape_cast %8 : vector<1x256xf32> to vector<1x256xf32>
    %10 = vector.broadcast %9 : vector<1x256xf32> to vector<8x256xf32>
    %cst_9 = arith.constant 0.000000e+00 : f32
    %11 = vector.broadcast %cst_9 : f32 to vector<8x64xf32>
    %c0_i32 = arith.constant 0 : i32
    %c8_i32 = arith.constant 8 : i32
    %12 = arith.muli %c0_i32, %c8_i32 : i32
    %13 = tpu.assume_multiple %12, 8 : i32
    %c0_10 = arith.constant 0 : index
    %c0_11 = arith.constant 0 : index
    %14 = vector.load %arg5[%c0_10, %c0_11] : memref<64x256xf32, #tpu.memory_space<vmem>>, vector<64x256xf32>
    %cst_12 = arith.constant dense<0.000000e+00> : vector<8x256xf32>
    %15 = tpu.matmul %11, %14, %cst_12 {dimension_numbers = #tpu.dot_dimension_numbers<[1], [0], [0], [1], [0, 0, 1, 1], [], []>} : vector<8x64xf32>, vector<64x256xf32>, vector<8x256xf32> -> vector<8x256xf32>
    %16 = arith.index_cast %13 : i32 to index
    %c0_13 = arith.constant 0 : index
    %17 = vector.load %arg10[%16, %c0_13] : memref<64x256xf32, #tpu.memory_space<vmem>>, vector<8x256xf32>
    %c0_14 = arith.constant 0 : index
    %c0_15 = arith.constant 0 : index
    %18 = vector.load %arg2[%c0_14, %c0_15] : memref<64x256xf32, #tpu.memory_space<vmem>>, vector<64x256xf32>
    %cst_16 = arith.constant dense<0.000000e+00> : vector<8x256xf32>
    %19 = tpu.matmul %11, %18, %cst_16 {dimension_numbers = #tpu.dot_dimension_numbers<[1], [0], [0], [1], [0, 0, 1, 1], [], []>} : vector<8x64xf32>, vector<64x256xf32>, vector<8x256xf32> -> vector<8x256xf32>
    %20 = arith.addf %17, %19 : vector<8x256xf32>
    %21 = vector.extract_strided_slice %20 {offsets = [0, 0], sizes = [8, 192], strides = [1, 1]} : vector<8x256xf32> to vector<8x192xf32>
    %22 = arith.negf %21 : vector<8x192xf32>
    %23 = math.exp %22 : vector<8x192xf32>
    %cst_17 = arith.constant 1.000000e+00 : f32
    %24 = vector.broadcast %cst_17 : f32 to vector<8x192xf32>
    %25 = arith.addf %24, %23 : vector<8x192xf32>
    %26 = arith.divf %24, %25 : vector<8x192xf32>
    %27 = vector.extract_strided_slice %20 {offsets = [0, 192], sizes = [8, 64], strides = [1, 1]} : vector<8x256xf32> to vector<8x64xf32>
    %28 = math.tanh %27 : vector<8x64xf32>
    %29 = vector.extract_strided_slice %26 {offsets = [0, 0], sizes = [8, 64], strides = [1, 1]} : vector<8x192xf32> to vector<8x64xf32>
    %30 = vector.extract_strided_slice %26 {offsets = [0, 64], sizes = [8, 64], strides = [1, 1]} : vector<8x192xf32> to vector<8x64xf32>
    %31 = vector.extract_strided_slice %26 {offsets = [0, 128], sizes = [8, 64], strides = [1, 1]} : vector<8x192xf32> to vector<8x64xf32>
    %32 = arith.mulf %30, %11 : vector<8x64xf32>
    %33 = arith.mulf %29, %28 : vector<8x64xf32>
    %34 = arith.addf %32, %33 : vector<8x64xf32>
    %35 = math.tanh %34 : vector<8x64xf32>
    %36 = arith.mulf %31, %35 : vector<8x64xf32>
    %37 = arith.addf %15, %10 : vector<8x256xf32>
    %c0_18 = arith.constant 0 : index
    %c0_19 = arith.constant 0 : index
    %38 = vector.load %arg4[%c0_18, %c0_19] : memref<64x256xf32, #tpu.memory_space<vmem>>, vector<64x256xf32>
    %cst_20 = arith.constant dense<0.000000e+00> : vector<8x256xf32>
    %39 = tpu.matmul %36, %38, %cst_20 {dimension_numbers = #tpu.dot_dimension_numbers<[1], [0], [0], [1], [0, 0, 1, 1], [], []>} : vector<8x64xf32>, vector<64x256xf32>, vector<8x256xf32> -> vector<8x256xf32>
    %40 = arith.addf %37, %39 : vector<8x256xf32>
    %41 = vector.extract_strided_slice %40 {offsets = [0, 0], sizes = [8, 192], strides = [1, 1]} : vector<8x256xf32> to vector<8x192xf32>
    %42 = arith.negf %41 : vector<8x192xf32>
    %43 = math.exp %42 : vector<8x192xf32>
    %cst_21 = arith.constant 1.000000e+00 : f32
    %44 = vector.broadcast %cst_21 : f32 to vector<8x192xf32>
    %45 = arith.addf %44, %43 : vector<8x192xf32>
    %46 = arith.divf %44, %45 : vector<8x192xf32>
    %47 = vector.extract_strided_slice %40 {offsets = [0, 192], sizes = [8, 64], strides = [1, 1]} : vector<8x256xf32> to vector<8x64xf32>
    %48 = math.tanh %47 : vector<8x64xf32>
    %49 = vector.extract_strided_slice %46 {offsets = [0, 0], sizes = [8, 64], strides = [1, 1]} : vector<8x192xf32> to vector<8x64xf32>
    %50 = vector.extract_strided_slice %46 {offsets = [0, 64], sizes = [8, 64], strides = [1, 1]} : vector<8x192xf32> to vector<8x64xf32>
    %51 = vector.extract_strided_slice %46 {offsets = [0, 128], sizes = [8, 64], strides = [1, 1]} : vector<8x192xf32> to vector<8x64xf32>
    %52 = arith.mulf %50, %11 : vector<8x64xf32>
    %53 = arith.mulf %49, %48 : vector<8x64xf32>
    %54 = arith.addf %52, %53 : vector<8x64xf32>
    %55 = math.tanh %54 : vector<8x64xf32>
    %56 = arith.mulf %51, %55 : vector<8x64xf32>
    %c1_i32 = arith.constant 1 : i32
    %c8_i32_22 = arith.constant 8 : i32
    %57 = arith.muli %c1_i32, %c8_i32_22 : i32
    %58 = tpu.assume_multiple %57, 8 : i32
    %c0_23 = arith.constant 0 : index
    %c0_24 = arith.constant 0 : index
    %59 = vector.load %arg5[%c0_23, %c0_24] : memref<64x256xf32, #tpu.memory_space<vmem>>, vector<64x256xf32>
    %cst_25 = arith.constant dense<0.000000e+00> : vector<8x256xf32>
    %60 = tpu.matmul %56, %59, %cst_25 {dimension_numbers = #tpu.dot_dimension_numbers<[1], [0], [0], [1], [0, 0, 1, 1], [], []>} : vector<8x64xf32>, vector<64x256xf32>, vector<8x256xf32> -> vector<8x256xf32>
    %61 = arith.index_cast %58 : i32 to index
    %c0_26 = arith.constant 0 : index
    %62 = vector.load %arg10[%61, %c0_26] : memref<64x256xf32, #tpu.memory_space<vmem>>, vector<8x256xf32>
    %c0_27 = arith.constant 0 : index
    %c0_28 = arith.constant 0 : index
    %63 = vector.load %arg2[%c0_27, %c0_28] : memref<64x256xf32, #tpu.memory_space<vmem>>, vector<64x256xf32>
    %cst_29 = arith.constant dense<0.000000e+00> : vector<8x256xf32>
    %64 = tpu.matmul %36, %63, %cst_29 {dimension_numbers = #tpu.dot_dimension_numbers<[1], [0], [0], [1], [0, 0, 1, 1], [], []>} : vector<8x64xf32>, vector<64x256xf32>, vector<8x256xf32> -> vector<8x256xf32>
    %65 = arith.addf %62, %64 : vector<8x256xf32>
    %66 = vector.extract_strided_slice %65 {offsets = [0, 0], sizes = [8, 192], strides = [1, 1]} : vector<8x256xf32> to vector<8x192xf32>
    %67 = arith.negf %66 : vector<8x192xf32>
    %68 = math.exp %67 : vector<8x192xf32>
    %cst_30 = arith.constant 1.000000e+00 : f32
    %69 = vector.broadcast %cst_30 : f32 to vector<8x192xf32>
    %70 = arith.addf %69, %68 : vector<8x192xf32>
    %71 = arith.divf %69, %70 : vector<8x192xf32>
    %72 = vector.extract_strided_slice %65 {offsets = [0, 192], sizes = [8, 64], strides = [1, 1]} : vector<8x256xf32> to vector<8x64xf32>
    %73 = math.tanh %72 : vector<8x64xf32>
    %74 = vector.extract_strided_slice %71 {offsets = [0, 0], sizes = [8, 64], strides = [1, 1]} : vector<8x192xf32> to vector<8x64xf32>
    %75 = vector.extract_strided_slice %71 {offsets = [0, 64], sizes = [8, 64], strides = [1, 1]} : vector<8x192xf32> to vector<8x64xf32>
    %76 = vector.extract_strided_slice %71 {offsets = [0, 128], sizes = [8, 64], strides = [1, 1]} : vector<8x192xf32> to vector<8x64xf32>
    %77 = arith.mulf %75, %34 : vector<8x64xf32>
    %78 = arith.mulf %74, %73 : vector<8x64xf32>
    %79 = arith.addf %77, %78 : vector<8x64xf32>
    %80 = math.tanh %79 : vector<8x64xf32>
    %81 = arith.mulf %76, %80 : vector<8x64xf32>
    %82 = arith.addf %60, %10 : vector<8x256xf32>
    %c0_31 = arith.constant 0 : index
    %c0_32 = arith.constant 0 : index
    %83 = vector.load %arg4[%c0_31, %c0_32] : memref<64x256xf32, #tpu.memory_space<vmem>>, vector<64x256xf32>
    %cst_33 = arith.constant dense<0.000000e+00> : vector<8x256xf32>
    %84 = tpu.matmul %81, %83, %cst_33 {dimension_numbers = #tpu.dot_dimension_numbers<[1], [0], [0], [1], [0, 0, 1, 1], [], []>} : vector<8x64xf32>, vector<64x256xf32>, vector<8x256xf32> -> vector<8x256xf32>
    %85 = arith.addf %82, %84 : vector<8x256xf32>
    %86 = vector.extract_strided_slice %85 {offsets = [0, 0], sizes = [8, 192], strides = [1, 1]} : vector<8x256xf32> to vector<8x192xf32>
    %87 = arith.negf %86 : vector<8x192xf32>
    %88 = math.exp %87 : vector<8x192xf32>
    %cst_34 = arith.constant 1.000000e+00 : f32
    %89 = vector.broadcast %cst_34 : f32 to vector<8x192xf32>
    %90 = arith.addf %89, %88 : vector<8x192xf32>
    %91 = arith.divf %89, %90 : vector<8x192xf32>
    %92 = vector.extract_strided_slice %85 {offsets = [0, 192], sizes = [8, 64], strides = [1, 1]} : vector<8x256xf32> to vector<8x64xf32>
    %93 = math.tanh %92 : vector<8x64xf32>
    %94 = vector.extract_strided_slice %91 {offsets = [0, 0], sizes = [8, 64], strides = [1, 1]} : vector<8x192xf32> to vector<8x64xf32>
    %95 = vector.extract_strided_slice %91 {offsets = [0, 64], sizes = [8, 64], strides = [1, 1]} : vector<8x192xf32> to vector<8x64xf32>
    %96 = vector.extract_strided_slice %91 {offsets = [0, 128], sizes = [8, 64], strides = [1, 1]} : vector<8x192xf32> to vector<8x64xf32>
    %97 = arith.mulf %95, %54 : vector<8x64xf32>
    %98 = arith.mulf %94, %93 : vector<8x64xf32>
    %99 = arith.addf %97, %98 : vector<8x64xf32>
    %100 = math.tanh %99 : vector<8x64xf32>
    %101 = arith.mulf %96, %100 : vector<8x64xf32>
    %c2_i32 = arith.constant 2 : i32
    %c8_i32_35 = arith.constant 8 : i32
    %102 = arith.muli %c2_i32, %c8_i32_35 : i32
    %103 = tpu.assume_multiple %102, 8 : i32
    %c0_36 = arith.constant 0 : index
    %c0_37 = arith.constant 0 : index
    %104 = vector.load %arg5[%c0_36, %c0_37] : memref<64x256xf32, #tpu.memory_space<vmem>>, vector<64x256xf32>
    %cst_38 = arith.constant dense<0.000000e+00> : vector<8x256xf32>
    %105 = tpu.matmul %101, %104, %cst_38 {dimension_numbers = #tpu.dot_dimension_numbers<[1], [0], [0], [1], [0, 0, 1, 1], [], []>} : vector<8x64xf32>, vector<64x256xf32>, vector<8x256xf32> -> vector<8x256xf32>
    %106 = arith.index_cast %103 : i32 to index
    %c0_39 = arith.constant 0 : index
    %107 = vector.load %arg10[%106, %c0_39] : memref<64x256xf32, #tpu.memory_space<vmem>>, vector<8x256xf32>
    %c0_40 = arith.constant 0 : index
    %c0_41 = arith.constant 0 : index
    %108 = vector.load %arg2[%c0_40, %c0_41] : memref<64x256xf32, #tpu.memory_space<vmem>>, vector<64x256xf32>
    %cst_42 = arith.constant dense<0.000000e+00> : vector<8x256xf32>
    %109 = tpu.matmul %81, %108, %cst_42 {dimension_numbers = #tpu.dot_dimension_numbers<[1], [0], [0], [1], [0, 0, 1, 1], [], []>} : vector<8x64xf32>, vector<64x256xf32>, vector<8x256xf32> -> vector<8x256xf32>
    %110 = arith.addf %107, %109 : vector<8x256xf32>
    %111 = vector.extract_strided_slice %110 {offsets = [0, 0], sizes = [8, 192], strides = [1, 1]} : vector<8x256xf32> to vector<8x192xf32>
    %112 = arith.negf %111 : vector<8x192xf32>
    %113 = math.exp %112 : vector<8x192xf32>
    %cst_43 = arith.constant 1.000000e+00 : f32
    %114 = vector.broadcast %cst_43 : f32 to vector<8x192xf32>
    %115 = arith.addf %114, %113 : vector<8x192xf32>
    %116 = arith.divf %114, %115 : vector<8x192xf32>
    %117 = vector.extract_strided_slice %110 {offsets = [0, 192], sizes = [8, 64], strides = [1, 1]} : vector<8x256xf32> to vector<8x64xf32>
    %118 = math.tanh %117 : vector<8x64xf32>
    %119 = vector.extract_strided_slice %116 {offsets = [0, 0], sizes = [8, 64], strides = [1, 1]} : vector<8x192xf32> to vector<8x64xf32>
    %120 = vector.extract_strided_slice %116 {offsets = [0, 64], sizes = [8, 64], strides = [1, 1]} : vector<8x192xf32> to vector<8x64xf32>
    %121 = vector.extract_strided_slice %116 {offsets = [0, 128], sizes = [8, 64], strides = [1, 1]} : vector<8x192xf32> to vector<8x64xf32>
    %122 = arith.mulf %120, %79 : vector<8x64xf32>
    %123 = arith.mulf %119, %118 : vector<8x64xf32>
    %124 = arith.addf %122, %123 : vector<8x64xf32>
    %125 = math.tanh %124 : vector<8x64xf32>
    %126 = arith.mulf %121, %125 : vector<8x64xf32>
    %127 = arith.addf %105, %10 : vector<8x256xf32>
    %c0_44 = arith.constant 0 : index
    %c0_45 = arith.constant 0 : index
    %128 = vector.load %arg4[%c0_44, %c0_45] : memref<64x256xf32, #tpu.memory_space<vmem>>, vector<64x256xf32>
    %cst_46 = arith.constant dense<0.000000e+00> : vector<8x256xf32>
    %129 = tpu.matmul %126, %128, %cst_46 {dimension_numbers = #tpu.dot_dimension_numbers<[1], [0], [0], [1], [0, 0, 1, 1], [], []>} : vector<8x64xf32>, vector<64x256xf32>, vector<8x256xf32> -> vector<8x256xf32>
    %130 = arith.addf %127, %129 : vector<8x256xf32>
    %131 = vector.extract_strided_slice %130 {offsets = [0, 0], sizes = [8, 192], strides = [1, 1]} : vector<8x256xf32> to vector<8x192xf32>
    %132 = arith.negf %131 : vector<8x192xf32>
    %133 = math.exp %132 : vector<8x192xf32>
    %cst_47 = arith.constant 1.000000e+00 : f32
    %134 = vector.broadcast %cst_47 : f32 to vector<8x192xf32>
    %135 = arith.addf %134, %133 : vector<8x192xf32>
    %136 = arith.divf %134, %135 : vector<8x192xf32>
    %137 = vector.extract_strided_slice %130 {offsets = [0, 192], sizes = [8, 64], strides = [1, 1]} : vector<8x256xf32> to vector<8x64xf32>
    %138 = math.tanh %137 : vector<8x64xf32>
    %139 = vector.extract_strided_slice %136 {offsets = [0, 0], sizes = [8, 64], strides = [1, 1]} : vector<8x192xf32> to vector<8x64xf32>
    %140 = vector.extract_strided_slice %136 {offsets = [0, 64], sizes = [8, 64], strides = [1, 1]} : vector<8x192xf32> to vector<8x64xf32>
    %141 = vector.extract_strided_slice %136 {offsets = [0, 128], sizes = [8, 64], strides = [1, 1]} : vector<8x192xf32> to vector<8x64xf32>
    %142 = arith.mulf %140, %99 : vector<8x64xf32>
    %143 = arith.mulf %139, %138 : vector<8x64xf32>
    %144 = arith.addf %142, %143 : vector<8x64xf32>
    %145 = math.tanh %144 : vector<8x64xf32>
    %146 = arith.mulf %141, %145 : vector<8x64xf32>
    %c3_i32 = arith.constant 3 : i32
    %c8_i32_48 = arith.constant 8 : i32
    %147 = arith.muli %c3_i32, %c8_i32_48 : i32
    %148 = tpu.assume_multiple %147, 8 : i32
    %c0_49 = arith.constant 0 : index
    %c0_50 = arith.constant 0 : index
    %149 = vector.load %arg5[%c0_49, %c0_50] : memref<64x256xf32, #tpu.memory_space<vmem>>, vector<64x256xf32>
    %cst_51 = arith.constant dense<0.000000e+00> : vector<8x256xf32>
    %150 = tpu.matmul %146, %149, %cst_51 {dimension_numbers = #tpu.dot_dimension_numbers<[1], [0], [0], [1], [0, 0, 1, 1], [], []>} : vector<8x64xf32>, vector<64x256xf32>, vector<8x256xf32> -> vector<8x256xf32>
    %151 = arith.index_cast %148 : i32 to index
    %c0_52 = arith.constant 0 : index
    %152 = vector.load %arg10[%151, %c0_52] : memref<64x256xf32, #tpu.memory_space<vmem>>, vector<8x256xf32>
    %c0_53 = arith.constant 0 : index
    %c0_54 = arith.constant 0 : index
    %153 = vector.load %arg2[%c0_53, %c0_54] : memref<64x256xf32, #tpu.memory_space<vmem>>, vector<64x256xf32>
    %cst_55 = arith.constant dense<0.000000e+00> : vector<8x256xf32>
    %154 = tpu.matmul %126, %153, %cst_55 {dimension_numbers = #tpu.dot_dimension_numbers<[1], [0], [0], [1], [0, 0, 1, 1], [], []>} : vector<8x64xf32>, vector<64x256xf32>, vector<8x256xf32> -> vector<8x256xf32>
    %155 = arith.addf %152, %154 : vector<8x256xf32>
    %156 = vector.extract_strided_slice %155 {offsets = [0, 0], sizes = [8, 192], strides = [1, 1]} : vector<8x256xf32> to vector<8x192xf32>
    %157 = arith.negf %156 : vector<8x192xf32>
    %158 = math.exp %157 : vector<8x192xf32>
    %cst_56 = arith.constant 1.000000e+00 : f32
    %159 = vector.broadcast %cst_56 : f32 to vector<8x192xf32>
    %160 = arith.addf %159, %158 : vector<8x192xf32>
    %161 = arith.divf %159, %160 : vector<8x192xf32>
    %162 = vector.extract_strided_slice %155 {offsets = [0, 192], sizes = [8, 64], strides = [1, 1]} : vector<8x256xf32> to vector<8x64xf32>
    %163 = math.tanh %162 : vector<8x64xf32>
    %164 = vector.extract_strided_slice %161 {offsets = [0, 0], sizes = [8, 64], strides = [1, 1]} : vector<8x192xf32> to vector<8x64xf32>
    %165 = vector.extract_strided_slice %161 {offsets = [0, 64], sizes = [8, 64], strides = [1, 1]} : vector<8x192xf32> to vector<8x64xf32>
    %166 = vector.extract_strided_slice %161 {offsets = [0, 128], sizes = [8, 64], strides = [1, 1]} : vector<8x192xf32> to vector<8x64xf32>
    %167 = arith.mulf %165, %124 : vector<8x64xf32>
    %168 = arith.mulf %164, %163 : vector<8x64xf32>
    %169 = arith.addf %167, %168 : vector<8x64xf32>
    %170 = math.tanh %169 : vector<8x64xf32>
    %171 = arith.mulf %166, %170 : vector<8x64xf32>
    %172 = arith.addf %150, %10 : vector<8x256xf32>
    %c0_57 = arith.constant 0 : index
    %c0_58 = arith.constant 0 : index
    %173 = vector.load %arg4[%c0_57, %c0_58] : memref<64x256xf32, #tpu.memory_space<vmem>>, vector<64x256xf32>
    %cst_59 = arith.constant dense<0.000000e+00> : vector<8x256xf32>
    %174 = tpu.matmul %171, %173, %cst_59 {dimension_numbers = #tpu.dot_dimension_numbers<[1], [0], [0], [1], [0, 0, 1, 1], [], []>} : vector<8x64xf32>, vector<64x256xf32>, vector<8x256xf32> -> vector<8x256xf32>
    %175 = arith.addf %172, %174 : vector<8x256xf32>
    %176 = vector.extract_strided_slice %175 {offsets = [0, 0], sizes = [8, 192], strides = [1, 1]} : vector<8x256xf32> to vector<8x192xf32>
    %177 = arith.negf %176 : vector<8x192xf32>
    %178 = math.exp %177 : vector<8x192xf32>
    %cst_60 = arith.constant 1.000000e+00 : f32
    %179 = vector.broadcast %cst_60 : f32 to vector<8x192xf32>
    %180 = arith.addf %179, %178 : vector<8x192xf32>
    %181 = arith.divf %179, %180 : vector<8x192xf32>
    %182 = vector.extract_strided_slice %175 {offsets = [0, 192], sizes = [8, 64], strides = [1, 1]} : vector<8x256xf32> to vector<8x64xf32>
    %183 = math.tanh %182 : vector<8x64xf32>
    %184 = vector.extract_strided_slice %181 {offsets = [0, 0], sizes = [8, 64], strides = [1, 1]} : vector<8x192xf32> to vector<8x64xf32>
    %185 = vector.extract_strided_slice %181 {offsets = [0, 64], sizes = [8, 64], strides = [1, 1]} : vector<8x192xf32> to vector<8x64xf32>
    %186 = vector.extract_strided_slice %181 {offsets = [0, 128], sizes = [8, 64], strides = [1, 1]} : vector<8x192xf32> to vector<8x64xf32>
    %187 = arith.mulf %185, %144 : vector<8x64xf32>
    %188 = arith.mulf %184, %183 : vector<8x64xf32>
    %189 = arith.addf %187, %188 : vector<8x64xf32>
    %190 = math.tanh %189 : vector<8x64xf32>
    %191 = arith.mulf %186, %190 : vector<8x64xf32>
    %c4_i32 = arith.constant 4 : i32
    %c8_i32_61 = arith.constant 8 : i32
    %192 = arith.muli %c4_i32, %c8_i32_61 : i32
    %193 = tpu.assume_multiple %192, 8 : i32
    %c0_62 = arith.constant 0 : index
    %c0_63 = arith.constant 0 : index
    %194 = vector.load %arg5[%c0_62, %c0_63] : memref<64x256xf32, #tpu.memory_space<vmem>>, vector<64x256xf32>
    %cst_64 = arith.constant dense<0.000000e+00> : vector<8x256xf32>
    %195 = tpu.matmul %191, %194, %cst_64 {dimension_numbers = #tpu.dot_dimension_numbers<[1], [0], [0], [1], [0, 0, 1, 1], [], []>} : vector<8x64xf32>, vector<64x256xf32>, vector<8x256xf32> -> vector<8x256xf32>
    %196 = arith.index_cast %193 : i32 to index
    %c0_65 = arith.constant 0 : index
    %197 = vector.load %arg10[%196, %c0_65] : memref<64x256xf32, #tpu.memory_space<vmem>>, vector<8x256xf32>
    %c0_66 = arith.constant 0 : index
    %c0_67 = arith.constant 0 : index
    %198 = vector.load %arg2[%c0_66, %c0_67] : memref<64x256xf32, #tpu.memory_space<vmem>>, vector<64x256xf32>
    %cst_68 = arith.constant dense<0.000000e+00> : vector<8x256xf32>
    %199 = tpu.matmul %171, %198, %cst_68 {dimension_numbers = #tpu.dot_dimension_numbers<[1], [0], [0], [1], [0, 0, 1, 1], [], []>} : vector<8x64xf32>, vector<64x256xf32>, vector<8x256xf32> -> vector<8x256xf32>
    %200 = arith.addf %197, %199 : vector<8x256xf32>
    %201 = vector.extract_strided_slice %200 {offsets = [0, 0], sizes = [8, 192], strides = [1, 1]} : vector<8x256xf32> to vector<8x192xf32>
    %202 = arith.negf %201 : vector<8x192xf32>
    %203 = math.exp %202 : vector<8x192xf32>
    %cst_69 = arith.constant 1.000000e+00 : f32
    %204 = vector.broadcast %cst_69 : f32 to vector<8x192xf32>
    %205 = arith.addf %204, %203 : vector<8x192xf32>
    %206 = arith.divf %204, %205 : vector<8x192xf32>
    %207 = vector.extract_strided_slice %200 {offsets = [0, 192], sizes = [8, 64], strides = [1, 1]} : vector<8x256xf32> to vector<8x64xf32>
    %208 = math.tanh %207 : vector<8x64xf32>
    %209 = vector.extract_strided_slice %206 {offsets = [0, 0], sizes = [8, 64], strides = [1, 1]} : vector<8x192xf32> to vector<8x64xf32>
    %210 = vector.extract_strided_slice %206 {offsets = [0, 64], sizes = [8, 64], strides = [1, 1]} : vector<8x192xf32> to vector<8x64xf32>
    %211 = vector.extract_strided_slice %206 {offsets = [0, 128], sizes = [8, 64], strides = [1, 1]} : vector<8x192xf32> to vector<8x64xf32>
    %212 = arith.mulf %210, %169 : vector<8x64xf32>
    %213 = arith.mulf %209, %208 : vector<8x64xf32>
    %214 = arith.addf %212, %213 : vector<8x64xf32>
    %215 = math.tanh %214 : vector<8x64xf32>
    %216 = arith.mulf %211, %215 : vector<8x64xf32>
    %217 = arith.addf %195, %10 : vector<8x256xf32>
    %c0_70 = arith.constant 0 : index
    %c0_71 = arith.constant 0 : index
    %218 = vector.load %arg4[%c0_70, %c0_71] : memref<64x256xf32, #tpu.memory_space<vmem>>, vector<64x256xf32>
    %cst_72 = arith.constant dense<0.000000e+00> : vector<8x256xf32>
    %219 = tpu.matmul %216, %218, %cst_72 {dimension_numbers = #tpu.dot_dimension_numbers<[1], [0], [0], [1], [0, 0, 1, 1], [], []>} : vector<8x64xf32>, vector<64x256xf32>, vector<8x256xf32> -> vector<8x256xf32>
    %220 = arith.addf %217, %219 : vector<8x256xf32>
    %221 = vector.extract_strided_slice %220 {offsets = [0, 0], sizes = [8, 192], strides = [1, 1]} : vector<8x256xf32> to vector<8x192xf32>
    %222 = arith.negf %221 : vector<8x192xf32>
    %223 = math.exp %222 : vector<8x192xf32>
    %cst_73 = arith.constant 1.000000e+00 : f32
    %224 = vector.broadcast %cst_73 : f32 to vector<8x192xf32>
    %225 = arith.addf %224, %223 : vector<8x192xf32>
    %226 = arith.divf %224, %225 : vector<8x192xf32>
    %227 = vector.extract_strided_slice %220 {offsets = [0, 192], sizes = [8, 64], strides = [1, 1]} : vector<8x256xf32> to vector<8x64xf32>
    %228 = math.tanh %227 : vector<8x64xf32>
    %229 = vector.extract_strided_slice %226 {offsets = [0, 0], sizes = [8, 64], strides = [1, 1]} : vector<8x192xf32> to vector<8x64xf32>
    %230 = vector.extract_strided_slice %226 {offsets = [0, 64], sizes = [8, 64], strides = [1, 1]} : vector<8x192xf32> to vector<8x64xf32>
    %231 = vector.extract_strided_slice %226 {offsets = [0, 128], sizes = [8, 64], strides = [1, 1]} : vector<8x192xf32> to vector<8x64xf32>
    %232 = arith.mulf %230, %189 : vector<8x64xf32>
    %233 = arith.mulf %229, %228 : vector<8x64xf32>
    %234 = arith.addf %232, %233 : vector<8x64xf32>
    %235 = math.tanh %234 : vector<8x64xf32>
    %236 = arith.mulf %231, %235 : vector<8x64xf32>
    %c5_i32 = arith.constant 5 : i32
    %c8_i32_74 = arith.constant 8 : i32
    %237 = arith.muli %c5_i32, %c8_i32_74 : i32
    %238 = tpu.assume_multiple %237, 8 : i32
    %c0_75 = arith.constant 0 : index
    %c0_76 = arith.constant 0 : index
    %239 = vector.load %arg5[%c0_75, %c0_76] : memref<64x256xf32, #tpu.memory_space<vmem>>, vector<64x256xf32>
    %cst_77 = arith.constant dense<0.000000e+00> : vector<8x256xf32>
    %240 = tpu.matmul %236, %239, %cst_77 {dimension_numbers = #tpu.dot_dimension_numbers<[1], [0], [0], [1], [0, 0, 1, 1], [], []>} : vector<8x64xf32>, vector<64x256xf32>, vector<8x256xf32> -> vector<8x256xf32>
    %241 = arith.index_cast %238 : i32 to index
    %c0_78 = arith.constant 0 : index
    %242 = vector.load %arg10[%241, %c0_78] : memref<64x256xf32, #tpu.memory_space<vmem>>, vector<8x256xf32>
    %c0_79 = arith.constant 0 : index
    %c0_80 = arith.constant 0 : index
    %243 = vector.load %arg2[%c0_79, %c0_80] : memref<64x256xf32, #tpu.memory_space<vmem>>, vector<64x256xf32>
    %cst_81 = arith.constant dense<0.000000e+00> : vector<8x256xf32>
    %244 = tpu.matmul %216, %243, %cst_81 {dimension_numbers = #tpu.dot_dimension_numbers<[1], [0], [0], [1], [0, 0, 1, 1], [], []>} : vector<8x64xf32>, vector<64x256xf32>, vector<8x256xf32> -> vector<8x256xf32>
    %245 = arith.addf %242, %244 : vector<8x256xf32>
    %246 = vector.extract_strided_slice %245 {offsets = [0, 0], sizes = [8, 192], strides = [1, 1]} : vector<8x256xf32> to vector<8x192xf32>
    %247 = arith.negf %246 : vector<8x192xf32>
    %248 = math.exp %247 : vector<8x192xf32>
    %cst_82 = arith.constant 1.000000e+00 : f32
    %249 = vector.broadcast %cst_82 : f32 to vector<8x192xf32>
    %250 = arith.addf %249, %248 : vector<8x192xf32>
    %251 = arith.divf %249, %250 : vector<8x192xf32>
    %252 = vector.extract_strided_slice %245 {offsets = [0, 192], sizes = [8, 64], strides = [1, 1]} : vector<8x256xf32> to vector<8x64xf32>
    %253 = math.tanh %252 : vector<8x64xf32>
    %254 = vector.extract_strided_slice %251 {offsets = [0, 0], sizes = [8, 64], strides = [1, 1]} : vector<8x192xf32> to vector<8x64xf32>
    %255 = vector.extract_strided_slice %251 {offsets = [0, 64], sizes = [8, 64], strides = [1, 1]} : vector<8x192xf32> to vector<8x64xf32>
    %256 = vector.extract_strided_slice %251 {offsets = [0, 128], sizes = [8, 64], strides = [1, 1]} : vector<8x192xf32> to vector<8x64xf32>
    %257 = arith.mulf %255, %214 : vector<8x64xf32>
    %258 = arith.mulf %254, %253 : vector<8x64xf32>
    %259 = arith.addf %257, %258 : vector<8x64xf32>
    %260 = math.tanh %259 : vector<8x64xf32>
    %261 = arith.mulf %256, %260 : vector<8x64xf32>
    %262 = arith.addf %240, %10 : vector<8x256xf32>
    %c0_83 = arith.constant 0 : index
    %c0_84 = arith.constant 0 : index
    %263 = vector.load %arg4[%c0_83, %c0_84] : memref<64x256xf32, #tpu.memory_space<vmem>>, vector<64x256xf32>
    %cst_85 = arith.constant dense<0.000000e+00> : vector<8x256xf32>
    %264 = tpu.matmul %261, %263, %cst_85 {dimension_numbers = #tpu.dot_dimension_numbers<[1], [0], [0], [1], [0, 0, 1, 1], [], []>} : vector<8x64xf32>, vector<64x256xf32>, vector<8x256xf32> -> vector<8x256xf32>
    %265 = arith.addf %262, %264 : vector<8x256xf32>
    %266 = vector.extract_strided_slice %265 {offsets = [0, 0], sizes = [8, 192], strides = [1, 1]} : vector<8x256xf32> to vector<8x192xf32>
    %267 = arith.negf %266 : vector<8x192xf32>
    %268 = math.exp %267 : vector<8x192xf32>
    %cst_86 = arith.constant 1.000000e+00 : f32
    %269 = vector.broadcast %cst_86 : f32 to vector<8x192xf32>
    %270 = arith.addf %269, %268 : vector<8x192xf32>
    %271 = arith.divf %269, %270 : vector<8x192xf32>
    %272 = vector.extract_strided_slice %265 {offsets = [0, 192], sizes = [8, 64], strides = [1, 1]} : vector<8x256xf32> to vector<8x64xf32>
    %273 = math.tanh %272 : vector<8x64xf32>
    %274 = vector.extract_strided_slice %271 {offsets = [0, 0], sizes = [8, 64], strides = [1, 1]} : vector<8x192xf32> to vector<8x64xf32>
    %275 = vector.extract_strided_slice %271 {offsets = [0, 64], sizes = [8, 64], strides = [1, 1]} : vector<8x192xf32> to vector<8x64xf32>
    %276 = vector.extract_strided_slice %271 {offsets = [0, 128], sizes = [8, 64], strides = [1, 1]} : vector<8x192xf32> to vector<8x64xf32>
    %277 = arith.mulf %275, %234 : vector<8x64xf32>
    %278 = arith.mulf %274, %273 : vector<8x64xf32>
    %279 = arith.addf %277, %278 : vector<8x64xf32>
    %280 = math.tanh %279 : vector<8x64xf32>
    %281 = arith.mulf %276, %280 : vector<8x64xf32>
    %c6_i32 = arith.constant 6 : i32
    %c8_i32_87 = arith.constant 8 : i32
    %282 = arith.muli %c6_i32, %c8_i32_87 : i32
    %283 = tpu.assume_multiple %282, 8 : i32
    %c0_88 = arith.constant 0 : index
    %c0_89 = arith.constant 0 : index
    %284 = vector.load %arg5[%c0_88, %c0_89] : memref<64x256xf32, #tpu.memory_space<vmem>>, vector<64x256xf32>
    %cst_90 = arith.constant dense<0.000000e+00> : vector<8x256xf32>
    %285 = tpu.matmul %281, %284, %cst_90 {dimension_numbers = #tpu.dot_dimension_numbers<[1], [0], [0], [1], [0, 0, 1, 1], [], []>} : vector<8x64xf32>, vector<64x256xf32>, vector<8x256xf32> -> vector<8x256xf32>
    %286 = arith.index_cast %283 : i32 to index
    %c0_91 = arith.constant 0 : index
    %287 = vector.load %arg10[%286, %c0_91] : memref<64x256xf32, #tpu.memory_space<vmem>>, vector<8x256xf32>
    %c0_92 = arith.constant 0 : index
    %c0_93 = arith.constant 0 : index
    %288 = vector.load %arg2[%c0_92, %c0_93] : memref<64x256xf32, #tpu.memory_space<vmem>>, vector<64x256xf32>
    %cst_94 = arith.constant dense<0.000000e+00> : vector<8x256xf32>
    %289 = tpu.matmul %261, %288, %cst_94 {dimension_numbers = #tpu.dot_dimension_numbers<[1], [0], [0], [1], [0, 0, 1, 1], [], []>} : vector<8x64xf32>, vector<64x256xf32>, vector<8x256xf32> -> vector<8x256xf32>
    %290 = arith.addf %287, %289 : vector<8x256xf32>
    %291 = vector.extract_strided_slice %290 {offsets = [0, 0], sizes = [8, 192], strides = [1, 1]} : vector<8x256xf32> to vector<8x192xf32>
    %292 = arith.negf %291 : vector<8x192xf32>
    %293 = math.exp %292 : vector<8x192xf32>
    %cst_95 = arith.constant 1.000000e+00 : f32
    %294 = vector.broadcast %cst_95 : f32 to vector<8x192xf32>
    %295 = arith.addf %294, %293 : vector<8x192xf32>
    %296 = arith.divf %294, %295 : vector<8x192xf32>
    %297 = vector.extract_strided_slice %290 {offsets = [0, 192], sizes = [8, 64], strides = [1, 1]} : vector<8x256xf32> to vector<8x64xf32>
    %298 = math.tanh %297 : vector<8x64xf32>
    %299 = vector.extract_strided_slice %296 {offsets = [0, 0], sizes = [8, 64], strides = [1, 1]} : vector<8x192xf32> to vector<8x64xf32>
    %300 = vector.extract_strided_slice %296 {offsets = [0, 64], sizes = [8, 64], strides = [1, 1]} : vector<8x192xf32> to vector<8x64xf32>
    %301 = vector.extract_strided_slice %296 {offsets = [0, 128], sizes = [8, 64], strides = [1, 1]} : vector<8x192xf32> to vector<8x64xf32>
    %302 = arith.mulf %300, %259 : vector<8x64xf32>
    %303 = arith.mulf %299, %298 : vector<8x64xf32>
    %304 = arith.addf %302, %303 : vector<8x64xf32>
    %305 = math.tanh %304 : vector<8x64xf32>
    %306 = arith.mulf %301, %305 : vector<8x64xf32>
    %307 = arith.addf %285, %10 : vector<8x256xf32>
    %c0_96 = arith.constant 0 : index
    %c0_97 = arith.constant 0 : index
    %308 = vector.load %arg4[%c0_96, %c0_97] : memref<64x256xf32, #tpu.memory_space<vmem>>, vector<64x256xf32>
    %cst_98 = arith.constant dense<0.000000e+00> : vector<8x256xf32>
    %309 = tpu.matmul %306, %308, %cst_98 {dimension_numbers = #tpu.dot_dimension_numbers<[1], [0], [0], [1], [0, 0, 1, 1], [], []>} : vector<8x64xf32>, vector<64x256xf32>, vector<8x256xf32> -> vector<8x256xf32>
    %310 = arith.addf %307, %309 : vector<8x256xf32>
    %311 = vector.extract_strided_slice %310 {offsets = [0, 0], sizes = [8, 192], strides = [1, 1]} : vector<8x256xf32> to vector<8x192xf32>
    %312 = arith.negf %311 : vector<8x192xf32>
    %313 = math.exp %312 : vector<8x192xf32>
    %cst_99 = arith.constant 1.000000e+00 : f32
    %314 = vector.broadcast %cst_99 : f32 to vector<8x192xf32>
    %315 = arith.addf %314, %313 : vector<8x192xf32>
    %316 = arith.divf %314, %315 : vector<8x192xf32>
    %317 = vector.extract_strided_slice %310 {offsets = [0, 192], sizes = [8, 64], strides = [1, 1]} : vector<8x256xf32> to vector<8x64xf32>
    %318 = math.tanh %317 : vector<8x64xf32>
    %319 = vector.extract_strided_slice %316 {offsets = [0, 0], sizes = [8, 64], strides = [1, 1]} : vector<8x192xf32> to vector<8x64xf32>
    %320 = vector.extract_strided_slice %316 {offsets = [0, 64], sizes = [8, 64], strides = [1, 1]} : vector<8x192xf32> to vector<8x64xf32>
    %321 = vector.extract_strided_slice %316 {offsets = [0, 128], sizes = [8, 64], strides = [1, 1]} : vector<8x192xf32> to vector<8x64xf32>
    %322 = arith.mulf %320, %279 : vector<8x64xf32>
    %323 = arith.mulf %319, %318 : vector<8x64xf32>
    %324 = arith.addf %322, %323 : vector<8x64xf32>
    %325 = math.tanh %324 : vector<8x64xf32>
    %326 = arith.mulf %321, %325 : vector<8x64xf32>
    %c7_i32 = arith.constant 7 : i32
    %c8_i32_100 = arith.constant 8 : i32
    %327 = arith.muli %c7_i32, %c8_i32_100 : i32
    %328 = tpu.assume_multiple %327, 8 : i32
    %c0_101 = arith.constant 0 : index
    %c0_102 = arith.constant 0 : index
    %329 = vector.load %arg5[%c0_101, %c0_102] : memref<64x256xf32, #tpu.memory_space<vmem>>, vector<64x256xf32>
    %cst_103 = arith.constant dense<0.000000e+00> : vector<8x256xf32>
    %330 = tpu.matmul %326, %329, %cst_103 {dimension_numbers = #tpu.dot_dimension_numbers<[1], [0], [0], [1], [0, 0, 1, 1], [], []>} : vector<8x64xf32>, vector<64x256xf32>, vector<8x256xf32> -> vector<8x256xf32>
    %331 = arith.index_cast %328 : i32 to index
    %c0_104 = arith.constant 0 : index
    %332 = vector.load %arg10[%331, %c0_104] : memref<64x256xf32, #tpu.memory_space<vmem>>, vector<8x256xf32>
    %c0_105 = arith.constant 0 : index
    %c0_106 = arith.constant 0 : index
    %333 = vector.load %arg2[%c0_105, %c0_106] : memref<64x256xf32, #tpu.memory_space<vmem>>, vector<64x256xf32>
    %cst_107 = arith.constant dense<0.000000e+00> : vector<8x256xf32>
    %334 = tpu.matmul %306, %333, %cst_107 {dimension_numbers = #tpu.dot_dimension_numbers<[1], [0], [0], [1], [0, 0, 1, 1], [], []>} : vector<8x64xf32>, vector<64x256xf32>, vector<8x256xf32> -> vector<8x256xf32>
    %335 = arith.addf %332, %334 : vector<8x256xf32>
    %336 = vector.extract_strided_slice %335 {offsets = [0, 0], sizes = [8, 192], strides = [1, 1]} : vector<8x256xf32> to vector<8x192xf32>
    %337 = arith.negf %336 : vector<8x192xf32>
    %338 = math.exp %337 : vector<8x192xf32>
    %cst_108 = arith.constant 1.000000e+00 : f32
    %339 = vector.broadcast %cst_108 : f32 to vector<8x192xf32>
    %340 = arith.addf %339, %338 : vector<8x192xf32>
    %341 = arith.divf %339, %340 : vector<8x192xf32>
    %342 = vector.extract_strided_slice %335 {offsets = [0, 192], sizes = [8, 64], strides = [1, 1]} : vector<8x256xf32> to vector<8x64xf32>
    %343 = math.tanh %342 : vector<8x64xf32>
    %344 = vector.extract_strided_slice %341 {offsets = [0, 0], sizes = [8, 64], strides = [1, 1]} : vector<8x192xf32> to vector<8x64xf32>
    %345 = vector.extract_strided_slice %341 {offsets = [0, 64], sizes = [8, 64], strides = [1, 1]} : vector<8x192xf32> to vector<8x64xf32>
    %346 = vector.extract_strided_slice %341 {offsets = [0, 128], sizes = [8, 64], strides = [1, 1]} : vector<8x192xf32> to vector<8x64xf32>
    %347 = arith.mulf %345, %304 : vector<8x64xf32>
    %348 = arith.mulf %344, %343 : vector<8x64xf32>
    %349 = arith.addf %347, %348 : vector<8x64xf32>
    %350 = math.tanh %349 : vector<8x64xf32>
    %351 = arith.mulf %346, %350 : vector<8x64xf32>
    %352 = arith.addf %330, %10 : vector<8x256xf32>
    %c0_109 = arith.constant 0 : index
    %c0_110 = arith.constant 0 : index
    %353 = vector.load %arg4[%c0_109, %c0_110] : memref<64x256xf32, #tpu.memory_space<vmem>>, vector<64x256xf32>
    %cst_111 = arith.constant dense<0.000000e+00> : vector<8x256xf32>
    %354 = tpu.matmul %351, %353, %cst_111 {dimension_numbers = #tpu.dot_dimension_numbers<[1], [0], [0], [1], [0, 0, 1, 1], [], []>} : vector<8x64xf32>, vector<64x256xf32>, vector<8x256xf32> -> vector<8x256xf32>
    %355 = arith.addf %352, %354 : vector<8x256xf32>
    %356 = vector.extract_strided_slice %355 {offsets = [0, 0], sizes = [8, 192], strides = [1, 1]} : vector<8x256xf32> to vector<8x192xf32>
    %357 = arith.negf %356 : vector<8x192xf32>
    %358 = math.exp %357 : vector<8x192xf32>
    %cst_112 = arith.constant 1.000000e+00 : f32
    %359 = vector.broadcast %cst_112 : f32 to vector<8x192xf32>
    %360 = arith.addf %359, %358 : vector<8x192xf32>
    %361 = arith.divf %359, %360 : vector<8x192xf32>
    %362 = vector.extract_strided_slice %355 {offsets = [0, 192], sizes = [8, 64], strides = [1, 1]} : vector<8x256xf32> to vector<8x64xf32>
    %363 = math.tanh %362 : vector<8x64xf32>
    %364 = vector.extract_strided_slice %361 {offsets = [0, 0], sizes = [8, 64], strides = [1, 1]} : vector<8x192xf32> to vector<8x64xf32>
    %365 = vector.extract_strided_slice %361 {offsets = [0, 64], sizes = [8, 64], strides = [1, 1]} : vector<8x192xf32> to vector<8x64xf32>
    %366 = vector.extract_strided_slice %361 {offsets = [0, 128], sizes = [8, 64], strides = [1, 1]} : vector<8x192xf32> to vector<8x64xf32>
    %367 = arith.mulf %365, %324 : vector<8x64xf32>
    %368 = arith.mulf %364, %363 : vector<8x64xf32>
    %369 = arith.addf %367, %368 : vector<8x64xf32>
    %370 = math.tanh %369 : vector<8x64xf32>
    %371 = arith.mulf %366, %370 : vector<8x64xf32>
    %c8_i32_113 = arith.constant 8 : i32
    %c0_114 = arith.constant 0 : index
    %c0_115 = arith.constant 0 : index
    %372 = vector.load %arg7[%c0_114, %c0_115] : memref<1x64xf32, #tpu.memory_space<vmem>>, vector<1x64xf32>
    %373 = vector.broadcast %372 : vector<1x64xf32> to vector<8x64xf32>
    %374 = arith.mulf %371, %373 : vector<8x64xf32>
    %cst_116 = arith.constant dense<0.000000e+00> : vector<8xf32>
    %375 = vector.multi_reduction <add>, %374, %cst_116 [1] : vector<8x64xf32> to vector<8xf32>
    %376 = vector.shape_cast %375 : vector<8xf32> to vector<8x1xf32>
    %c0_117 = arith.constant 0 : index
    %c0_118 = arith.constant 0 : index
    %377 = vector.load %arg8[%c0_117, %c0_118] : memref<1x1xf32, #tpu.memory_space<vmem>>, vector<1x1xf32>
    %378 = vector.broadcast %377 : vector<1x1xf32> to vector<8x1xf32>
    %379 = arith.addf %376, %378 : vector<8x1xf32>
    %c0_119 = arith.constant 0 : index
    %c0_120 = arith.constant 0 : index
    %380 = vector.load %arg9[%c0_119, %c0_120] : memref<8x1xf32, #tpu.memory_space<vmem>>, vector<8x1xf32>
    tpu.vector_store %arg9[%c0_119, %c0_120], %379 {strides = array<i32>} : memref<8x1xf32, #tpu.memory_space<vmem>>, vector<8x1xf32>,
    return
  }
}

</mosaic_0001>

<llo_original>
// kernel: tpu_custom_call.1
$region0: #{tpu_custom_call.1}
  #allocation0 [shape = 'u32[]', space=smem, size = 0x4, offset = 0x4, fixed_abs, tag = 'smem constant byte address 0x4 - core index']
  #allocation1 [shape = 'u32[144,128]{1,0:T(1,128)}', space=vmem, size = 0x12000, scoped, tag = 'internal scratch']
  #allocation2 [shape = 'f32[64,256]{1,0:T(8,128)}', space=vmem, size = 0x10000, scoped, tag = 'scratch operand']
  #allocation3 [shape = 'f32[1,1]{1,0:T(1,128)S(1)}', space=vmem, size = 0x200, scoped, tag = 'scoped memory for tpu_custom_call.1']
  %s0 = inlined_call_operand.hbm [shape: f32[64,64], index: 0, kind: input, shape index: {}]
  %s1 = inlined_call_operand.hbm [shape: f32[64,256], index: 1, kind: input, shape index: {}]
  %s2 = inlined_call_operand.hbm [shape: f32[64,256], index: 2, kind: input, shape index: {}]
  %s3 = inlined_call_operand.vmem [shape: f32[1,256], index: 3, kind: input, shape index: {}]
  %s4 = inlined_call_operand.hbm [shape: f32[64,256], index: 4, kind: input, shape index: {}]
  %s5 = inlined_call_operand.hbm [shape: f32[64,256], index: 5, kind: input, shape index: {}]
  %s6 = inlined_call_operand.vmem [shape: f32[1,256], index: 6, kind: input, shape index: {}]
  %s7 = inlined_call_operand.vmem [shape: f32[1,64], index: 7, kind: input, shape index: {}]
  %s8 = inlined_call_operand.<no memory space> [shape: f32[1,1], index: 8, kind: input, shape index: {}]
  %s9 = inlined_call_operand.vmem [shape: f32[8,1], index: 9, kind: output, shape index: {}]
  %s10 = sld [smem:[#allocation0]]
  $region66: #{tpu_custom_call.1} parent=0
    _
  %s12 = ssub.s32 1, %s10
  %s13 = scalar_select 0, %s12, %s10
  %v14 = vstv %s8
  %15 = vst [vmem:[#allocation3] sm:$0x1] %v14
  $region1: #{tpu_custom_call.1} parent=0
    #allocation4 [shape = 'u8[32768]{0}', space=vmem, size = 0x8000, scoped, tag = 'input window, operand 0, single buffered']
    #allocation5 [shape = 's32[1]{0}', space=sflag, size = 0x4, scoped, tag = 'scoped memory for tpu_custom_call.1']
    #allocation6 [shape = 'u8[65536]{0}', space=vmem, size = 0x10000, scoped, tag = 'input window, operand 1, single buffered']
    #allocation7 [shape = 's32[1]{0}', space=sflag, size = 0x4, scoped, tag = 'scoped memory for tpu_custom_call.1']
    #allocation8 [shape = 'u8[65536]{0}', space=vmem, size = 0x10000, scoped, tag = 'input window, operand 2, single buffered']
    #allocation9 [shape = 'u8[65536]{0}', space=vmem, size = 0x10000, scoped, tag = 'input window, operand 4, single buffered']
    #allocation10 [shape = 's32[1]{0}', space=sflag, size = 0x4, scoped, tag = 'scoped memory for tpu_custom_call.1']
    #allocation11 [shape = 'u8[65536]{0}', space=vmem, size = 0x10000, scoped, tag = 'input window, operand 5, single buffered']
    %16 = vsyncpa [#allocation5], 0
    %17 = vsyncpa [#allocation7], 0
    %18 = vsyncpa [#allocation10], 0
    // Predicated region
    $region2: #{tpu_custom_call.1} parent=1 // pred_check
      _
    $region3: #{tpu_custom_call.1} parent=1 // pred_check_branch
      %20 = sbr.rel (0) target = $region5
    $region4: #{tpu_custom_call.1} parent=1 // pred_region
      %s22 = ssub.s32 1024, 1024
      %23 = vsyncadd [#allocation5], %s22
      %s24 = sshll.u32 [#allocation4], 4
      %s25 = int_to_ptr.vmem [resolvable:$true] %s24
      %30 = dma.hbm_to_vmem [thread:$0]  %s0, 1024, %s25, [#allocation5], 128, 128, 8
    $region5: #{tpu_custom_call.1} parent=1 // pred_fallthru
      _
    // Predicated region
    $region6: #{tpu_custom_call.1} parent=1 // pred_check
      _
    $region7: #{tpu_custom_call.1} parent=1 // pred_check_branch
      %32 = sbr.rel (0) target = $region9
    $region8: #{tpu_custom_call.1} parent=1 // pred_region
      %s34 = ssub.s32 2048, 2048
      %35 = vsyncadd [#allocation7], %s34
      %s36 = sshll.u32 [#allocation6], 4
      %s37 = int_to_ptr.vmem [resolvable:$true] %s36
      %42 = dma.hbm_to_vmem [thread:$0]  %s1, 2048, %s37, [#allocation7], 256, 256, 16
    $region9: #{tpu_custom_call.1} parent=1 // pred_fallthru
      _
    // Predicated region
    $region10: #{tpu_custom_call.1} parent=1 // pred_check
      _
    $region11: #{tpu_custom_call.1} parent=1 // pred_check_branch
      %44 = sbr.rel (0) target = $region13
    $region12: #{tpu_custom_call.1} parent=1 // pred_region
      %s46 = ssub.s32 2048, 2048
      %47 = vsyncadd [#allocation7], %s46
      %s48 = sshll.u32 [#allocation8], 4
      %s49 = int_to_ptr.vmem [resolvable:$true] %s48
      %54 = dma.hbm_to_vmem [thread:$0]  %s2, 2048, %s49, [#allocation7], 256, 256, 16
    $region13: #{tpu_custom_call.1} parent=1 // pred_fallthru
      _
    // Predicated region
    $region14: #{tpu_custom_call.1} parent=1 // pred_check
      _
    $region15: #{tpu_custom_call.1} parent=1 // pred_check_branch
      %56 = sbr.rel (0) target = $region17
    $region16: #{tpu_custom_call.1} parent=1 // pred_region
      _
    $region17: #{tpu_custom_call.1} parent=1 // pred_fallthru
      _
    // Predicated region
    $region18: #{tpu_custom_call.1} parent=1 // pred_check
      _
    $region19: #{tpu_custom_call.1} parent=1 // pred_check_branch
      %58 = sbr.rel (0) target = $region21
    $region20: #{tpu_custom_call.1} parent=1 // pred_region
      %s60 = ssub.s32 2048, 2048
      %61 = vsyncadd [#allocation10], %s60
      %s62 = sshll.u32 [#allocation9], 4
      %s63 = int_to_ptr.vmem [resolvable:$true] %s62
      %68 = dma.hbm_to_vmem [thread:$0]  %s4, 2048, %s63, [#allocation10], 256, 256, 16
    $region21: #{tpu_custom_call.1} parent=1 // pred_fallthru
      _
    // Predicated region
    $region22: #{tpu_custom_call.1} parent=1 // pred_check
      _
    $region23: #{tpu_custom_call.1} parent=1 // pred_check_branch
      %70 = sbr.rel (0) target = $region25
    $region24: #{tpu_custom_call.1} parent=1 // pred_region
      %s72 = ssub.s32 2048, 2048
      %73 = vsyncadd [#allocation10], %s72
      %s74 = sshll.u32 [#allocation11], 4
      %s75 = int_to_ptr.vmem [resolvable:$true] %s74
      %80 = dma.hbm_to_vmem [thread:$0]  %s5, 2048, %s75, [#allocation10], 256, 256, 16
    $region25: #{tpu_custom_call.1} parent=1 // pred_fallthru
      _
    // Predicated region
    $region26: #{tpu_custom_call.1} parent=1 // pred_check
      _
    $region27: #{tpu_custom_call.1} parent=1 // pred_check_branch
      %82 = sbr.rel (0) target = $region29
    $region28: #{tpu_custom_call.1} parent=1 // pred_region
      _
    $region29: #{tpu_custom_call.1} parent=1 // pred_fallthru
      _
    // Predicated region
    $region30: #{tpu_custom_call.1} parent=1 // pred_check
      _
    $region31: #{tpu_custom_call.1} parent=1 // pred_check_branch
      %84 = sbr.rel (0) target = $region33
    $region32: #{tpu_custom_call.1} parent=1 // pred_region
      _
    $region33: #{tpu_custom_call.1} parent=1 // pred_fallthru
      _
    // Predicated region
    $region34: #{tpu_custom_call.1} parent=1 // pred_check
      _
    $region35: #{tpu_custom_call.1} parent=1 // pred_check_branch
      %86 = sbr.rel (0) target = $region37
    $region36: #{tpu_custom_call.1} parent=1 // pred_region
      _
    $region37: #{tpu_custom_call.1} parent=1 // pred_fallthru
      _
    // Predicated region
    $region38: #{tpu_custom_call.1} parent=1 // pred_check
      _
    $region39: #{tpu_custom_call.1} parent=1 // pred_check_branch
      %88 = sbr.rel (0) target = $region41
    $region40: #{tpu_custom_call.1} parent=1 // pred_region
      %89 = dma.done [#allocation5], 1024
    $region41: #{tpu_custom_call.1} parent=1 // pred_fallthru
      _
    // Predicated region
    $region42: #{tpu_custom_call.1} parent=1 // pred_check
      _
    $region43: #{tpu_custom_call.1} parent=1 // pred_check_branch
      %91 = sbr.rel (0) target = $region45
    $region44: #{tpu_custom_call.1} parent=1 // pred_region
      %92 = dma.done [#allocation7], 2048
    $region45: #{tpu_custom_call.1} parent=1 // pred_fallthru
      _
    // Predicated region
    $region46: #{tpu_custom_call.1} parent=1 // pred_check
      _
    $region47: #{tpu_custom_call.1} parent=1 // pred_check_branch
      %94 = sbr.rel (0) target = $region49
    $region48: #{tpu_custom_call.1} parent=1 // pred_region
      %95 = dma.done [#allocation7], 2048
    $region49: #{tpu_custom_call.1} parent=1 // pred_fallthru
      _
    // Predicated region
    $region50: #{tpu_custom_call.1} parent=1 // pred_check
      _
    $region51: #{tpu_custom_call.1} parent=1 // pred_check_branch
      %97 = sbr.rel (0) target = $region53
    $region52: #{tpu_custom_call.1} parent=1 // pred_region
      %98 = dma.done [#allocation10], 2048
    $region53: #{tpu_custom_call.1} parent=1 // pred_fallthru
      _
    // Predicated region
    $region54: #{tpu_custom_call.1} parent=1 // pred_check
      _
    $region55: #{tpu_custom_call.1} parent=1 // pred_check_branch
      %100 = sbr.rel (0) target = $region57
    $region56: #{tpu_custom_call.1} parent=1 // pred_region
      %101 = dma.done [#allocation10], 2048
    $region57: #{tpu_custom_call.1} parent=1 // pred_fallthru
      _
    %v102 = vld [vmem:[#allocation4] sm:$0xff]
    %v103 = vld [vmem:[#allocation4 + $0x8] sm:$0xff]
    %v104 = vld [vmem:[#allocation4 + $0x10] sm:$0xff]
    %v105 = vld [vmem:[#allocation4 + $0x18] sm:$0xff]
    %v106 = vld [vmem:[#allocation4 + $0x20] sm:$0xff]
    %v107 = vld [vmem:[#allocation4 + $0x28] sm:$0xff]
    %v108 = vld [vmem:[#allocation4 + $0x30] sm:$0xff]
    %v109 = vld [vmem:[#allocation4 + $0x38] sm:$0xff]
    %v110 = vld [vmem:[#allocation6] sm:$0xff]
    %v111 = vld [vmem:[#allocation6 + $0x8] sm:$0xff]
    %v112 = vld [vmem:[#allocation6 + $0x10] sm:$0xff]
    %v113 = vld [vmem:[#allocation6 + $0x18] sm:$0xff]
    %v114 = vld [vmem:[#allocation6 + $0x20] sm:$0xff]
    %v115 = vld [vmem:[#allocation6 + $0x28] sm:$0xff]
    %v116 = vld [vmem:[#allocation6 + $0x30] sm:$0xff]
    %v117 = vld [vmem:[#allocation6 + $0x38] sm:$0xff]
    %v118 = vld [vmem:[#allocation6 + $0x40] sm:$0xff]
    %v119 = vld [vmem:[#allocation6 + $0x48] sm:$0xff]
    %v120 = vld [vmem:[#allocation6 + $0x50] sm:$0xff]
    %v121 = vld [vmem:[#allocation6 + $0x58] sm:$0xff]
    %v122 = vld [vmem:[#allocation6 + $0x60] sm:$0xff]
    %v123 = vld [vmem:[#allocation6 + $0x68] sm:$0xff]
    %v124 = vld [vmem:[#allocation6 + $0x70] sm:$0xff]
    %v125 = vld [vmem:[#allocation6 + $0x78] sm:$0xff]
    %v126 = vld [vmem:[%s3] sm:$0x3]
    %v128 = vlaneseq
    %v129 = vshrl.u32 %v128, 7
    %v130 = vsub.s32 0, %v129
    %v131 = vrot.slane %v126, %v130
    %v132 = vlaneseq
    %v133 = vshrl.u32 %v132, 7
    %v134 = vsub.s32 1, %v133
    %v135 = vrot.slane %v126, %v134
    %vm138 = vcmask 523264
    %v140 = vsel %vm138, %v102, 0
    %v143 = vsel %vm138, %v103, 0
    %v146 = vsel %vm138, %v104, 0
    %v149 = vsel %vm138, %v105, 0
    %v152 = vsel %vm138, %v106, 0
    %v155 = vsel %vm138, %v107, 0
    %v158 = vsel %vm138, %v108, 0
    %v161 = vsel %vm138, %v109, 0
    %163 = vmatprep.subr.mxu0 %v111
    %164 = vmatpush1.msra.mxu0 %v110
    %165 = vmatprep.subr.mxu0 %v113
    %166 = vmatpush1.msra.mxu0 %v112
    %167 = vmatprep.subr.mxu0 %v115
    %168 = vmatpush1.msra.mxu0 %v114
    %169 = vmatprep.subr.mxu0 %v117
    %170 = vmatpush1.msra.mxu0 %v116
    %171 = vmatprep.subr.mxu0 %v119
    %172 = vmatpush1.msra.mxu0 %v118
    %173 = vmatprep.subr.mxu0 %v121
    %174 = vmatpush1.msra.mxu0 %v120
    %175 = vmatprep.subr.mxu0 %v123
    %176 = vmatpush1.msra.mxu0 %v122
    %177 = vmatprep.subr.mxu0 %v125
    %178 = vmatpush1.msra.mxu0 %v124
    %179 = vmatprep.subr.mxu0 0.0
    %180 = vmatpush1.msra.mxu0 0.0
    %181 = vmatprep.subr.mxu0 0.0
    %182 = vmatpush1.msra.mxu0 0.0
    %183 = vmatprep.subr.mxu0 0.0
    %184 = vmatpush1.msra.mxu0 0.0
    %185 = vmatprep.subr.mxu0 0.0
    %186 = vmatpush1.msra.mxu0 0.0
    %187 = vmatprep.subr.mxu0 0.0
    %188 = vmatpush1.msra.mxu0 0.0
    %189 = vmatprep.subr.mxu0 0.0
    %190 = vmatpush1.msra.mxu0 0.0
    %191 = vmatprep.subr.mxu0 0.0
    %192 = vmatpush1.msra.mxu0 0.0
    %193 = vmatprep.subr.mxu0 0.0
    %194 = vmatpush1.msra.mxu0 0.0
    %195 = vmatprep.subr.mxu0 0.0
    %196 = vmatpush1.msra.mxu0 0.0
    %197 = vmatprep.subr.mxu0 0.0
    %198 = vmatpush1.msra.mxu0 0.0
    %199 = vmatprep.subr.mxu0 0.0
    %200 = vmatpush1.msra.mxu0 0.0
    %201 = vmatprep.subr.mxu0 0.0
    %202 = vmatpush1.msra.mxu0 0.0
    %203 = vmatprep.subr.mxu0 0.0
    %204 = vmatpush1.msra.mxu0 0.0
    %205 = vmatprep.subr.mxu0 0.0
    %206 = vmatpush1.msra.mxu0 0.0
    %207 = vmatprep.subr.mxu0 0.0
    %208 = vmatpush1.msra.mxu0 0.0
    %209 = vmatprep.subr.mxu0 0.0
    %210 = vmatpush1.msra.mxu0 0.0
    %211 = vmatprep.subr.mxu0 0.0
    %212 = vmatpush1.msra.mxu0 0.0
    %213 = vmatprep.subr.mxu0 0.0
    %214 = vmatpush1.msra.mxu0 0.0
    %215 = vmatprep.subr.mxu0 0.0
    %216 = vmatpush1.msra.mxu0 0.0
    %217 = vmatprep.subr.mxu0 0.0
    %218 = vmatpush1.msra.mxu0 0.0
    %219 = vmatprep.subr.mxu0 0.0
    %220 = vmatpush1.msra.mxu0 0.0
    %221 = vmatprep.subr.mxu0 0.0
    %222 = vmatpush1.msra.mxu0 0.0
    %223 = vmatprep.subr.mxu0 0.0
    %224 = vmatpush1.msra.mxu0 0.0
    %225 = vmatprep.subr.mxu0 0.0
    %226 = vmatpush1.msra.mxu0 0.0
    %227 = vmatprep.mubr.f32.mxu0 0.0
    %228 = vmatmul.mubr.f32.gmra.mrb[0].mxu0 %v140
    %v229 = vpop.f32.mrb[0].mxu0
    %v230 = vadd.f32 %v131, %v229
    %v231 = vpop.f32.mrb[0].mxu0
    %v232 = vadd.f32 %v135, %v231
    %233 = vmatprep.mubr.f32.mxu0 0.0
    %234 = vmatmul.mubr.f32.gmra.mrb[0].mxu0 %v143
    %v235 = vpop.f32.mrb[0].mxu0
    %v236 = vadd.f32 %v131, %v235
    %v237 = vpop.f32.mrb[0].mxu0
    %v238 = vadd.f32 %v135, %v237
    %239 = vmatprep.mubr.f32.mxu0 0.0
    %240 = vmatmul.mubr.f32.gmra.mrb[0].mxu0 %v146
    %v241 = vpop.f32.mrb[0].mxu0
    %v242 = vadd.f32 %v131, %v241
    %v243 = vpop.f32.mrb[0].mxu0
    %v244 = vadd.f32 %v135, %v243
    %245 = vmatprep.mubr.f32.mxu0 0.0
    %246 = vmatmul.mubr.f32.gmra.mrb[0].mxu0 %v149
    %v247 = vpop.f32.mrb[0].mxu0
    %v248 = vadd.f32 %v131, %v247
    %v249 = vpop.f32.mrb[0].mxu0
    %v250 = vadd.f32 %v135, %v249
    %251 = vmatprep.mubr.f32.mxu0 0.0
    %252 = vmatmul.mubr.f32.gmra.mrb[0].mxu0 %v152
    %v253 = vpop.f32.mrb[0].mxu0
    %v254 = vadd.f32 %v131, %v253
    %v255 = vpop.f32.mrb[0].mxu0
    %v256 = vadd.f32 %v135, %v255
    %257 = vmatprep.mubr.f32.mxu0 0.0
    %258 = vmatmul.mubr.f32.gmra.mrb[0].mxu0 %v155
    %v259 = vpop.f32.mrb[0].mxu0
    %v260 = vadd.f32 %v131, %v259
    %v261 = vpop.f32.mrb[0].mxu0
    %v262 = vadd.f32 %v135, %v261
    %263 = vmatprep.mubr.f32.mxu0 0.0
    %264 = vmatmul.mubr.f32.gmra.mrb[0].mxu0 %v158
    %v265 = vpop.f32.mrb[0].mxu0
    %v266 = vadd.f32 %v131, %v265
    %v267 = vpop.f32.mrb[0].mxu0
    %v268 = vadd.f32 %v135, %v267
    %269 = vmatprep.mubr.f32.mxu0 0.0
    %270 = vmatmul.mubr.f32.gmra.mrb[0].mxu0 %v161
    %v271 = vpop.f32.mrb[0].mxu0
    %v272 = vadd.f32 %v131, %v271
    %v273 = vpop.f32.mrb[0].mxu0
    %v274 = vadd.f32 %v135, %v273
    %275 = vdwg.mxu0
    %276 = vst [vmem:[#allocation2] sm:$0xff] %v230
    %277 = vst [vmem:[#allocation2 + $0x8] sm:$0xff] %v232
    %278 = vst [vmem:[#allocation2 + $0x10] sm:$0xff] %v236
    %279 = vst [vmem:[#allocation2 + $0x18] sm:$0xff] %v238
    %280 = vst [vmem:[#allocation2 + $0x20] sm:$0xff] %v242
    %281 = vst [vmem:[#allocation2 + $0x28] sm:$0xff] %v244
    %282 = vst [vmem:[#allocation2 + $0x30] sm:$0xff] %v248
    %283 = vst [vmem:[#allocation2 + $0x38] sm:$0xff] %v250
    %284 = vst [vmem:[#allocation2 + $0x40] sm:$0xff] %v254
    %285 = vst [vmem:[#allocation2 + $0x48] sm:$0xff] %v256
    %286 = vst [vmem:[#allocation2 + $0x50] sm:$0xff] %v260
    %287 = vst [vmem:[#allocation2 + $0x58] sm:$0xff] %v262
    %288 = vst [vmem:[#allocation2 + $0x60] sm:$0xff] %v266
    %289 = vst [vmem:[#allocation2 + $0x68] sm:$0xff] %v268
    %290 = vst [vmem:[#allocation2 + $0x70] sm:$0xff] %v272
    %291 = vst [vmem:[#allocation2 + $0x78] sm:$0xff] %v274
    %v292 = vld [vmem:[%s6] sm:$0x3]
    %v294 = vlaneseq
    %v295 = vshrl.u32 %v294, 7
    %v296 = vsub.s32 0, %v295
    %v297 = vrot.slane %v292, %v296
    %v298 = vlaneseq
    %v299 = vshrl.u32 %v298, 7
    %v300 = vsub.s32 1, %v299
    %v301 = vrot.slane %v292, %v300
    %v304 = vld [vmem:[#allocation11] sm:$0xff]
    %v305 = vld [vmem:[#allocation11 + $0x8] sm:$0xff]
    %v306 = vld [vmem:[#allocation11 + $0x10] sm:$0xff]
    %v307 = vld [vmem:[#allocation11 + $0x18] sm:$0xff]
    %v308 = vld [vmem:[#allocation11 + $0x20] sm:$0xff]
    %v309 = vld [vmem:[#allocation11 + $0x28] sm:$0xff]
    %v310 = vld [vmem:[#allocation11 + $0x30] sm:$0xff]
    %v311 = vld [vmem:[#allocation11 + $0x38] sm:$0xff]
    %v312 = vld [vmem:[#allocation11 + $0x40] sm:$0xff]
    %v313 = vld [vmem:[#allocation11 + $0x48] sm:$0xff]
    %v314 = vld [vmem:[#allocation11 + $0x50] sm:$0xff]
    %v315 = vld [vmem:[#allocation11 + $0x58] sm:$0xff]
    %v316 = vld [vmem:[#allocation11 + $0x60] sm:$0xff]
    %v317 = vld [vmem:[#allocation11 + $0x68] sm:$0xff]
    %v318 = vld [vmem:[#allocation11 + $0x70] sm:$0xff]
    %v319 = vld [vmem:[#allocation11 + $0x78] sm:$0xff]
    %s320 = smul.u32 0, 2
    %s321 = smul.addr %s320, 8
    %s322 = scalar_lea.vmem [#allocation2], %s321
    %v323 = vld [vmem:[%s322] sm:$0xff]
    %v324 = vld [vmem:[%s322 + $0x8] sm:$0xff]
    %v325 = vld [vmem:[#allocation8] sm:$0xff]
    %v326 = vld [vmem:[#allocation8 + $0x8] sm:$0xff]
    %v327 = vld [vmem:[#allocation8 + $0x10] sm:$0xff]
    %v328 = vld [vmem:[#allocation8 + $0x18] sm:$0xff]
    %v329 = vld [vmem:[#allocation8 + $0x20] sm:$0xff]
    %v330 = vld [vmem:[#allocation8 + $0x28] sm:$0xff]
    %v331 = vld [vmem:[#allocation8 + $0x30] sm:$0xff]
    %v332 = vld [vmem:[#allocation8 + $0x38] sm:$0xff]
    %v333 = vld [vmem:[#allocation8 + $0x40] sm:$0xff]
    %v334 = vld [vmem:[#allocation8 + $0x48] sm:$0xff]
    %v335 = vld [vmem:[#allocation8 + $0x50] sm:$0xff]
    %v336 = vld [vmem:[#allocation8 + $0x58] sm:$0xff]
    %v337 = vld [vmem:[#allocation8 + $0x60] sm:$0xff]
    %v338 = vld [vmem:[#allocation8 + $0x68] sm:$0xff]
    %v339 = vld [vmem:[#allocation8 + $0x70] sm:$0xff]
    %v340 = vld [vmem:[#allocation8 + $0x78] sm:$0xff]
    %v342 = vsel %vm138, 0.0, 0
    %344 = vmatprep.subr.mxu0 %v326
    %345 = vmatpush1.msra.mxu0 %v325
    %346 = vmatprep.subr.mxu0 %v328
    %347 = vmatpush1.msra.mxu0 %v327
    %348 = vmatprep.subr.mxu0 %v330
    %349 = vmatpush1.msra.mxu0 %v329
    %350 = vmatprep.subr.mxu0 %v332
    %351 = vmatpush1.msra.mxu0 %v331
    %352 = vmatprep.subr.mxu0 %v334
    %353 = vmatpush1.msra.mxu0 %v333
    %354 = vmatprep.subr.mxu0 %v336
    %355 = vmatpush1.msra.mxu0 %v335
    %356 = vmatprep.subr.mxu0 %v338
    %357 = vmatpush1.msra.mxu0 %v337
    %358 = vmatprep.subr.mxu0 %v340
    %359 = vmatpush1.msra.mxu0 %v339
    %360 = vmatprep.subr.mxu0 0.0
    %361 = vmatpush1.msra.mxu0 0.0
    %362 = vmatprep.subr.mxu0 0.0
    %363 = vmatpush1.msra.mxu0 0.0
    %364 = vmatprep.subr.mxu0 0.0
    %365 = vmatpush1.msra.mxu0 0.0
    %366 = vmatprep.subr.mxu0 0.0
    %367 = vmatpush1.msra.mxu0 0.0
    %368 = vmatprep.subr.mxu0 0.0
    %369 = vmatpush1.msra.mxu0 0.0
    %370 = vmatprep.subr.mxu0 0.0
    %371 = vmatpush1.msra.mxu0 0.0
    %372 = vmatprep.subr.mxu0 0.0
    %373 = vmatpush1.msra.mxu0 0.0
    %374 = vmatprep.subr.mxu0 0.0
    %375 = vmatpush1.msra.mxu0 0.0
    %376 = vmatprep.subr.mxu0 0.0
    %377 = vmatpush1.msra.mxu0 0.0
    %378 = vmatprep.subr.mxu0 0.0
    %379 = vmatpush1.msra.mxu0 0.0
    %380 = vmatprep.subr.mxu0 0.0
    %381 = vmatpush1.msra.mxu0 0.0
    %382 = vmatprep.subr.mxu0 0.0
    %383 = vmatpush1.msra.mxu0 0.0
    %384 = vmatprep.subr.mxu0 0.0
    %385 = vmatpush1.msra.mxu0 0.0
    %386 = vmatprep.subr.mxu0 0.0
    %387 = vmatpush1.msra.mxu0 0.0
    %388 = vmatprep.subr.mxu0 0.0
    %389 = vmatpush1.msra.mxu0 0.0
    %390 = vmatprep.subr.mxu0 0.0
    %391 = vmatpush1.msra.mxu0 0.0
    %392 = vmatprep.subr.mxu0 0.0
    %393 = vmatpush1.msra.mxu0 0.0
    %394 = vmatprep.subr.mxu0 0.0
    %395 = vmatpush1.msra.mxu0 0.0
    %396 = vmatprep.subr.mxu0 0.0
    %397 = vmatpush1.msra.mxu0 0.0
    %398 = vmatprep.subr.mxu0 0.0
    %399 = vmatpush1.msra.mxu0 0.0
    %400 = vmatprep.subr.mxu0 0.0
    %401 = vmatpush1.msra.mxu0 0.0
    %402 = vmatprep.subr.mxu0 0.0
    %403 = vmatpush1.msra.mxu0 0.0
    %404 = vmatprep.subr.mxu0 0.0
    %405 = vmatpush1.msra.mxu0 0.0
    %406 = vmatprep.subr.mxu0 0.0
    %407 = vmatpush1.msra.mxu0 0.0
    %408 = vmatprep.mubr.f32.mxu0 0.0
    %409 = vmatmul.mubr.f32.gmra.mrb[0].mxu0 %v342
    %v410 = vpop.f32.mrb[0].mxu0
    %v411 = vadd.f32 0.0, %v410
    %v412 = vpop.f32.mrb[0].mxu0
    %v413 = vadd.f32 0.0, %v412
    %414 = vdwg.mxu0
    %v415 = vadd.f32 %v323, %v411
    %v416 = vadd.f32 %v324, %v413
    %v417 = vxor.u32 %v415, 2147483648
    %v418 = vxor.u32 %v416, 2147483648
    %v419 = vmul.f32 %v417, 1.442695
    %v420 = vpow.pop %v419
    %v421 = vmul.f32 %v418, 1.442695
    %v422 = vpow.pop %v421
    %v423 = vadd.f32 %v420, 1.0
    %v424 = vadd.f32 %v422, 1.0
    %v425 = vrcp.pop %v423
    %v426 = vmul.f32 1.0, %v425
    %v427 = vrcp.pop %v424
    %v428 = vmul.f32 1.0, %v427
    %v429 = vtanh.pop %v416
    %v430 = vmul.f32 %v426, 0.0
    %432 = vrot.lane.b32.xlu0 %v429, 64
    %v433 = vpop.permute.xlu0 %432
    %v435 = vmul.f32 %v426, %v433
    %437 = vrot.lane.b32.xlu0 %v435, 64
    %v438 = vpop.permute.xlu0 %437
    %v440 = vadd.f32 %v430, %v438
    %v441 = vtanh.pop %v440
    %443 = vrot.lane.b32.xlu0 %v441, 64
    %v444 = vpop.permute.xlu0 %443
    %v446 = vmul.f32 %v428, %v444
    %447 = vmatprep.subr.mxu0 %v305
    %448 = vmatpush1.msra.mxu0 %v304
    %449 = vmatprep.subr.mxu0 %v307
    %450 = vmatpush1.msra.mxu0 %v306
    %451 = vmatprep.subr.mxu0 %v309
    %452 = vmatpush1.msra.mxu0 %v308
    %453 = vmatprep.subr.mxu0 %v311
    %454 = vmatpush1.msra.mxu0 %v310
    %455 = vmatprep.subr.mxu0 %v313
    %456 = vmatpush1.msra.mxu0 %v312
    %457 = vmatprep.subr.mxu0 %v315
    %458 = vmatpush1.msra.mxu0 %v314
    %459 = vmatprep.subr.mxu0 %v317
    %460 = vmatpush1.msra.mxu0 %v316
    %461 = vmatprep.subr.mxu0 %v319
    %462 = vmatpush1.msra.mxu0 %v318
    %463 = vmatprep.subr.mxu0 0.0
    %464 = vmatpush1.msra.mxu0 0.0
    %465 = vmatprep.subr.mxu0 0.0
    %466 = vmatpush1.msra.mxu0 0.0
    %467 = vmatprep.subr.mxu0 0.0
    %468 = vmatpush1.msra.mxu0 0.0
    %469 = vmatprep.subr.mxu0 0.0
    %470 = vmatpush1.msra.mxu0 0.0
    %471 = vmatprep.subr.mxu0 0.0
    %472 = vmatpush1.msra.mxu0 0.0
    %473 = vmatprep.subr.mxu0 0.0
    %474 = vmatpush1.msra.mxu0 0.0
    %475 = vmatprep.subr.mxu0 0.0
    %476 = vmatpush1.msra.mxu0 0.0
    %477 = vmatprep.subr.mxu0 0.0
    %478 = vmatpush1.msra.mxu0 0.0
    %479 = vmatprep.subr.mxu0 0.0
    %480 = vmatpush1.msra.mxu0 0.0
    %481 = vmatprep.subr.mxu0 0.0
    %482 = vmatpush1.msra.mxu0 0.0
    %483 = vmatprep.subr.mxu0 0.0
    %484 = vmatpush1.msra.mxu0 0.0
    %485 = vmatprep.subr.mxu0 0.0
    %486 = vmatpush1.msra.mxu0 0.0
    %487 = vmatprep.subr.mxu0 0.0
    %488 = vmatpush1.msra.mxu0 0.0
    %489 = vmatprep.subr.mxu0 0.0
    %490 = vmatpush1.msra.mxu0 0.0
    %491 = vmatprep.subr.mxu0 0.0
    %492 = vmatpush1.msra.mxu0 0.0
    %493 = vmatprep.subr.mxu0 0.0
    %494 = vmatpush1.msra.mxu0 0.0
    %495 = vmatprep.subr.mxu0 0.0
    %496 = vmatpush1.msra.mxu0 0.0
    %497 = vmatprep.subr.mxu0 0.0
    %498 = vmatpush1.msra.mxu0 0.0
    %499 = vmatprep.subr.mxu0 0.0
    %500 = vmatpush1.msra.mxu0 0.0
    %501 = vmatprep.subr.mxu0 0.0
    %502 = vmatpush1.msra.mxu0 0.0
    %503 = vmatprep.subr.mxu0 0.0
    %504 = vmatpush1.msra.mxu0 0.0
    %505 = vmatprep.subr.mxu0 0.0
    %506 = vmatpush1.msra.mxu0 0.0
    %507 = vmatprep.subr.mxu0 0.0
    %508 = vmatpush1.msra.mxu0 0.0
    %509 = vmatprep.subr.mxu0 0.0
    %510 = vmatpush1.msra.mxu0 0.0
    %511 = vmatprep.mubr.f32.mxu0 0.0
    %512 = vmatmul.mubr.f32.gmra.mrb[0].mxu0 %v342
    %v513 = vpop.f32.mrb[0].mxu0
    %v514 = vadd.f32 %v297, %v513
    %v515 = vpop.f32.mrb[0].mxu0
    %v516 = vadd.f32 %v301, %v515
    %517 = vdwg.mxu0
    %v518 = vld [vmem:[#allocation9] sm:$0xff]
    %v519 = vld [vmem:[#allocation9 + $0x8] sm:$0xff]
    %v520 = vld [vmem:[#allocation9 + $0x10] sm:$0xff]
    %v521 = vld [vmem:[#allocation9 + $0x18] sm:$0xff]
    %v522 = vld [vmem:[#allocation9 + $0x20] sm:$0xff]
    %v523 = vld [vmem:[#allocation9 + $0x28] sm:$0xff]
    %v524 = vld [vmem:[#allocation9 + $0x30] sm:$0xff]
    %v525 = vld [vmem:[#allocation9 + $0x38] sm:$0xff]
    %v526 = vld [vmem:[#allocation9 + $0x40] sm:$0xff]
    %v527 = vld [vmem:[#allocation9 + $0x48] sm:$0xff]
    %v528 = vld [vmem:[#allocation9 + $0x50] sm:$0xff]
    %v529 = vld [vmem:[#allocation9 + $0x58] sm:$0xff]
    %v530 = vld [vmem:[#allocation9 + $0x60] sm:$0xff]
    %v531 = vld [vmem:[#allocation9 + $0x68] sm:$0xff]
    %v532 = vld [vmem:[#allocation9 + $0x70] sm:$0xff]
    %v533 = vld [vmem:[#allocation9 + $0x78] sm:$0xff]
    %v535 = vsel %vm138, %v446, 0
    %537 = vmatprep.subr.mxu0 %v519
    %538 = vmatpush1.msra.mxu0 %v518
    %539 = vmatprep.subr.mxu0 %v521
    %540 = vmatpush1.msra.mxu0 %v520
    %541 = vmatprep.subr.mxu0 %v523
    %542 = vmatpush1.msra.mxu0 %v522
    %543 = vmatprep.subr.mxu0 %v525
    %544 = vmatpush1.msra.mxu0 %v524
    %545 = vmatprep.subr.mxu0 %v527
    %546 = vmatpush1.msra.mxu0 %v526
    %547 = vmatprep.subr.mxu0 %v529
    %548 = vmatpush1.msra.mxu0 %v528
    %549 = vmatprep.subr.mxu0 %v531
    %550 = vmatpush1.msra.mxu0 %v530
    %551 = vmatprep.subr.mxu0 %v533
    %552 = vmatpush1.msra.mxu0 %v532
    %553 = vmatprep.subr.mxu0 0.0
    %554 = vmatpush1.msra.mxu0 0.0
    %555 = vmatprep.subr.mxu0 0.0
    %556 = vmatpush1.msra.mxu0 0.0
    %557 = vmatprep.subr.mxu0 0.0
    %558 = vmatpush1.msra.mxu0 0.0
    %559 = vmatprep.subr.mxu0 0.0
    %560 = vmatpush1.msra.mxu0 0.0
    %561 = vmatprep.subr.mxu0 0.0
    %562 = vmatpush1.msra.mxu0 0.0
    %563 = vmatprep.subr.mxu0 0.0
    %564 = vmatpush1.msra.mxu0 0.0
    %565 = vmatprep.subr.mxu0 0.0
    %566 = vmatpush1.msra.mxu0 0.0
    %567 = vmatprep.subr.mxu0 0.0
    %568 = vmatpush1.msra.mxu0 0.0
    %569 = vmatprep.subr.mxu0 0.0
    %570 = vmatpush1.msra.mxu0 0.0
    %571 = vmatprep.subr.mxu0 0.0
    %572 = vmatpush1.msra.mxu0 0.0
    %573 = vmatprep.subr.mxu0 0.0
    %574 = vmatpush1.msra.mxu0 0.0
    %575 = vmatprep.subr.mxu0 0.0
    %576 = vmatpush1.msra.mxu0 0.0
    %577 = vmatprep.subr.mxu0 0.0
    %578 = vmatpush1.msra.mxu0 0.0
    %579 = vmatprep.subr.mxu0 0.0
    %580 = vmatpush1.msra.mxu0 0.0
    %581 = vmatprep.subr.mxu0 0.0
    %582 = vmatpush1.msra.mxu0 0.0
    %583 = vmatprep.subr.mxu0 0.0
    %584 = vmatpush1.msra.mxu0 0.0
    %585 = vmatprep.subr.mxu0 0.0
    %586 = vmatpush1.msra.mxu0 0.0
    %587 = vmatprep.subr.mxu0 0.0
    %588 = vmatpush1.msra.mxu0 0.0
    %589 = vmatprep.subr.mxu0 0.0
    %590 = vmatpush1.msra.mxu0 0.0
    %591 = vmatprep.subr.mxu0 0.0
    %592 = vmatpush1.msra.mxu0 0.0
    %593 = vmatprep.subr.mxu0 0.0
    %594 = vmatpush1.msra.mxu0 0.0
    %595 = vmatprep.subr.mxu0 0.0
    %596 = vmatpush1.msra.mxu0 0.0
    %597 = vmatprep.subr.mxu0 0.0
    %598 = vmatpush1.msra.mxu0 0.0
    %599 = vmatprep.subr.mxu0 0.0
    %600 = vmatpush1.msra.mxu0 0.0
    %601 = vmatprep.mubr.f32.mxu0 0.0
    %602 = vmatmul.mubr.f32.gmra.mrb[0].mxu0 %v535
    %v603 = vpop.f32.mrb[0].mxu0
    %v604 = vadd.f32 0.0, %v603
    %v605 = vpop.f32.mrb[0].mxu0
    %v606 = vadd.f32 0.0, %v605
    %607 = vdwg.mxu0
    %v608 = vadd.f32 %v514, %v604
    %v609 = vadd.f32 %v516, %v606
    %v610 = vxor.u32 %v608, 2147483648
    %v611 = vxor.u32 %v609, 2147483648
    %v612 = vmul.f32 %v610, 1.442695
    %v613 = vpow.pop %v612
    %v614 = vmul.f32 %v611, 1.442695
    %v615 = vpow.pop %v614
    %v616 = vadd.f32 %v613, 1.0
    %v617 = vadd.f32 %v615, 1.0
    %v618 = vrcp.pop %v616
    %v619 = vmul.f32 1.0, %v618
    %v620 = vrcp.pop %v617
    %v621 = vmul.f32 1.0, %v620
    %v622 = vtanh.pop %v609
    %v623 = vmul.f32 %v619, 0.0
    %625 = vrot.lane.b32.xlu0 %v622, 64
    %v626 = vpop.permute.xlu0 %625
    %v628 = vmul.f32 %v619, %v626
    %630 = vrot.lane.b32.xlu0 %v628, 64
    %v631 = vpop.permute.xlu0 %630
    %v633 = vadd.f32 %v623, %v631
    %v634 = vtanh.pop %v633
    %636 = vrot.lane.b32.xlu0 %v634, 64
    %v637 = vpop.permute.xlu0 %636
    %v639 = vmul.f32 %v621, %v637
    %s640 = smul.u32 1, 2
    %s641 = smul.addr %s640, 8
    %s642 = scalar_lea.vmem [#allocation2], %s641
    %v643 = vld [vmem:[%s642] sm:$0xff]
    %v644 = vld [vmem:[%s642 + $0x8] sm:$0xff]
    %645 = vmatprep.subr.mxu0 %v326
    %646 = vmatpush1.msra.mxu0 %v325
    %647 = vmatprep.subr.mxu0 %v328
    %648 = vmatpush1.msra.mxu0 %v327
    %649 = vmatprep.subr.mxu0 %v330
    %650 = vmatpush1.msra.mxu0 %v329
    %651 = vmatprep.subr.mxu0 %v332
    %652 = vmatpush1.msra.mxu0 %v331
    %653 = vmatprep.subr.mxu0 %v334
    %654 = vmatpush1.msra.mxu0 %v333
    %655 = vmatprep.subr.mxu0 %v336
    %656 = vmatpush1.msra.mxu0 %v335
    %657 = vmatprep.subr.mxu0 %v338
    %658 = vmatpush1.msra.mxu0 %v337
    %659 = vmatprep.subr.mxu0 %v340
    %660 = vmatpush1.msra.mxu0 %v339
    %661 = vmatprep.subr.mxu0 0.0
    %662 = vmatpush1.msra.mxu0 0.0
    %663 = vmatprep.subr.mxu0 0.0
    %664 = vmatpush1.msra.mxu0 0.0
    %665 = vmatprep.subr.mxu0 0.0
    %666 = vmatpush1.msra.mxu0 0.0
    %667 = vmatprep.subr.mxu0 0.0
    %668 = vmatpush1.msra.mxu0 0.0
    %669 = vmatprep.subr.mxu0 0.0
    %670 = vmatpush1.msra.mxu0 0.0
    %671 = vmatprep.subr.mxu0 0.0
    %672 = vmatpush1.msra.mxu0 0.0
    %673 = vmatprep.subr.mxu0 0.0
    %674 = vmatpush1.msra.mxu0 0.0
    %675 = vmatprep.subr.mxu0 0.0
    %676 = vmatpush1.msra.mxu0 0.0
    %677 = vmatprep.subr.mxu0 0.0
    %678 = vmatpush1.msra.mxu0 0.0
    %679 = vmatprep.subr.mxu0 0.0
    %680 = vmatpush1.msra.mxu0 0.0
    %681 = vmatprep.subr.mxu0 0.0
    %682 = vmatpush1.msra.mxu0 0.0
    %683 = vmatprep.subr.mxu0 0.0
    %684 = vmatpush1.msra.mxu0 0.0
    %685 = vmatprep.subr.mxu0 0.0
    %686 = vmatpush1.msra.mxu0 0.0
    %687 = vmatprep.subr.mxu0 0.0
    %688 = vmatpush1.msra.mxu0 0.0
    %689 = vmatprep.subr.mxu0 0.0
    %690 = vmatpush1.msra.mxu0 0.0
    %691 = vmatprep.subr.mxu0 0.0
    %692 = vmatpush1.msra.mxu0 0.0
    %693 = vmatprep.subr.mxu0 0.0
    %694 = vmatpush1.msra.mxu0 0.0
    %695 = vmatprep.subr.mxu0 0.0
    %696 = vmatpush1.msra.mxu0 0.0
    %697 = vmatprep.subr.mxu0 0.0
    %698 = vmatpush1.msra.mxu0 0.0
    %699 = vmatprep.subr.mxu0 0.0
    %700 = vmatpush1.msra.mxu0 0.0
    %701 = vmatprep.subr.mxu0 0.0
    %702 = vmatpush1.msra.mxu0 0.0
    %703 = vmatprep.subr.mxu0 0.0
    %704 = vmatpush1.msra.mxu0 0.0
    %705 = vmatprep.subr.mxu0 0.0
    %706 = vmatpush1.msra.mxu0 0.0
    %707 = vmatprep.subr.mxu0 0.0
    %708 = vmatpush1.msra.mxu0 0.0
    %709 = vmatprep.mubr.f32.mxu0 0.0
    %710 = vmatmul.mubr.f32.gmra.mrb[0].mxu0 %v535
    %v711 = vpop.f32.mrb[0].mxu0
    %v712 = vadd.f32 0.0, %v711
    %v713 = vpop.f32.mrb[0].mxu0
    %v714 = vadd.f32 0.0, %v713
    %715 = vdwg.mxu0
    %v716 = vadd.f32 %v643, %v712
    %v717 = vadd.f32 %v644, %v714
    %v718 = vxor.u32 %v716, 2147483648
    %v719 = vxor.u32 %v717, 2147483648
    %v720 = vmul.f32 %v718, 1.442695
    %v721 = vpow.pop %v720
    %v722 = vmul.f32 %v719, 1.442695
    %v723 = vpow.pop %v722
    %v724 = vadd.f32 %v721, 1.0
    %v725 = vadd.f32 %v723, 1.0
    %v726 = vrcp.pop %v724
    %v727 = vmul.f32 1.0, %v726
    %v728 = vrcp.pop %v725
    %v729 = vmul.f32 1.0, %v728
    %v730 = vtanh.pop %v717
    %v731 = vmul.f32 %v727, %v440
    %733 = vrot.lane.b32.xlu0 %v730, 64
    %v734 = vpop.permute.xlu0 %733
    %v736 = vmul.f32 %v727, %v734
    %738 = vrot.lane.b32.xlu0 %v736, 64
    %v739 = vpop.permute.xlu0 %738
    %v741 = vadd.f32 %v731, %v739
    %v742 = vtanh.pop %v741
    %744 = vrot.lane.b32.xlu0 %v742, 64
    %v745 = vpop.permute.xlu0 %744
    %v747 = vmul.f32 %v729, %v745
    %v749 = vsel %vm138, %v639, 0
    %751 = vmatprep.subr.mxu0 %v305
    %752 = vmatpush1.msra.mxu0 %v304
    %753 = vmatprep.subr.mxu0 %v307
    %754 = vmatpush1.msra.mxu0 %v306
    %755 = vmatprep.subr.mxu0 %v309
    %756 = vmatpush1.msra.mxu0 %v308
    %757 = vmatprep.subr.mxu0 %v311
    %758 = vmatpush1.msra.mxu0 %v310
    %759 = vmatprep.subr.mxu0 %v313
    %760 = vmatpush1.msra.mxu0 %v312
    %761 = vmatprep.subr.mxu0 %v315
    %762 = vmatpush1.msra.mxu0 %v314
    %763 = vmatprep.subr.mxu0 %v317
    %764 = vmatpush1.msra.mxu0 %v316
    %765 = vmatprep.subr.mxu0 %v319
    %766 = vmatpush1.msra.mxu0 %v318
    %767 = vmatprep.subr.mxu0 0.0
    %768 = vmatpush1.msra.mxu0 0.0
    %769 = vmatprep.subr.mxu0 0.0
    %770 = vmatpush1.msra.mxu0 0.0
    %771 = vmatprep.subr.mxu0 0.0
    %772 = vmatpush1.msra.mxu0 0.0
    %773 = vmatprep.subr.mxu0 0.0
    %774 = vmatpush1.msra.mxu0 0.0
    %775 = vmatprep.subr.mxu0 0.0
    %776 = vmatpush1.msra.mxu0 0.0
    %777 = vmatprep.subr.mxu0 0.0
    %778 = vmatpush1.msra.mxu0 0.0
    %779 = vmatprep.subr.mxu0 0.0
    %780 = vmatpush1.msra.mxu0 0.0
    %781 = vmatprep.subr.mxu0 0.0
    %782 = vmatpush1.msra.mxu0 0.0
    %783 = vmatprep.subr.mxu0 0.0
    %784 = vmatpush1.msra.mxu0 0.0
    %785 = vmatprep.subr.mxu0 0.0
    %786 = vmatpush1.msra.mxu0 0.0
    %787 = vmatprep.subr.mxu0 0.0
    %788 = vmatpush1.msra.mxu0 0.0
    %789 = vmatprep.subr.mxu0 0.0
    %790 = vmatpush1.msra.mxu0 0.0
    %791 = vmatprep.subr.mxu0 0.0
    %792 = vmatpush1.msra.mxu0 0.0
    %793 = vmatprep.subr.mxu0 0.0
    %794 = vmatpush1.msra.mxu0 0.0
    %795 = vmatprep.subr.mxu0 0.0
    %796 = vmatpush1.msra.mxu0 0.0
    %797 = vmatprep.subr.mxu0 0.0
    %798 = vmatpush1.msra.mxu0 0.0
    %799 = vmatprep.subr.mxu0 0.0
    %800 = vmatpush1.msra.mxu0 0.0
    %801 = vmatprep.subr.mxu0 0.0
    %802 = vmatpush1.msra.mxu0 0.0
    %803 = vmatprep.subr.mxu0 0.0
    %804 = vmatpush1.msra.mxu0 0.0
    %805 = vmatprep.subr.mxu0 0.0
    %806 = vmatpush1.msra.mxu0 0.0
    %807 = vmatprep.subr.mxu0 0.0
    %808 = vmatpush1.msra.mxu0 0.0
    %809 = vmatprep.subr.mxu0 0.0
    %810 = vmatpush1.msra.mxu0 0.0
    %811 = vmatprep.subr.mxu0 0.0
    %812 = vmatpush1.msra.mxu0 0.0
    %813 = vmatprep.subr.mxu0 0.0
    %814 = vmatpush1.msra.mxu0 0.0
    %815 = vmatprep.mubr.f32.mxu0 0.0
    %816 = vmatmul.mubr.f32.gmra.mrb[0].mxu0 %v749
    %v817 = vpop.f32.mrb[0].mxu0
    %v818 = vadd.f32 %v297, %v817
    %v819 = vpop.f32.mrb[0].mxu0
    %v820 = vadd.f32 %v301, %v819
    %821 = vdwg.mxu0
    %v823 = vsel %vm138, %v747, 0
    %825 = vmatprep.subr.mxu0 %v519
    %826 = vmatpush1.msra.mxu0 %v518
    %827 = vmatprep.subr.mxu0 %v521
    %828 = vmatpush1.msra.mxu0 %v520
    %829 = vmatprep.subr.mxu0 %v523
    %830 = vmatpush1.msra.mxu0 %v522
    %831 = vmatprep.subr.mxu0 %v525
    %832 = vmatpush1.msra.mxu0 %v524
    %833 = vmatprep.subr.mxu0 %v527
    %834 = vmatpush1.msra.mxu0 %v526
    %835 = vmatprep.subr.mxu0 %v529
    %836 = vmatpush1.msra.mxu0 %v528
    %837 = vmatprep.subr.mxu0 %v531
    %838 = vmatpush1.msra.mxu0 %v530
    %839 = vmatprep.subr.mxu0 %v533
    %840 = vmatpush1.msra.mxu0 %v532
    %841 = vmatprep.subr.mxu0 0.0
    %842 = vmatpush1.msra.mxu0 0.0
    %843 = vmatprep.subr.mxu0 0.0
    %844 = vmatpush1.msra.mxu0 0.0
    %845 = vmatprep.subr.mxu0 0.0
    %846 = vmatpush1.msra.mxu0 0.0
    %847 = vmatprep.subr.mxu0 0.0
    %848 = vmatpush1.msra.mxu0 0.0
    %849 = vmatprep.subr.mxu0 0.0
    %850 = vmatpush1.msra.mxu0 0.0
    %851 = vmatprep.subr.mxu0 0.0
    %852 = vmatpush1.msra.mxu0 0.0
    %853 = vmatprep.subr.mxu0 0.0
    %854 = vmatpush1.msra.mxu0 0.0
    %855 = vmatprep.subr.mxu0 0.0
    %856 = vmatpush1.msra.mxu0 0.0
    %857 = vmatprep.subr.mxu0 0.0
    %858 = vmatpush1.msra.mxu0 0.0
    %859 = vmatprep.subr.mxu0 0.0
    %860 = vmatpush1.msra.mxu0 0.0
    %861 = vmatprep.subr.mxu0 0.0
    %862 = vmatpush1.msra.mxu0 0.0
    %863 = vmatprep.subr.mxu0 0.0
    %864 = vmatpush1.msra.mxu0 0.0
    %865 = vmatprep.subr.mxu0 0.0
    %866 = vmatpush1.msra.mxu0 0.0
    %867 = vmatprep.subr.mxu0 0.0
    %868 = vmatpush1.msra.mxu0 0.0
    %869 = vmatprep.subr.mxu0 0.0
    %870 = vmatpush1.msra.mxu0 0.0
    %871 = vmatprep.subr.mxu0 0.0
    %872 = vmatpush1.msra.mxu0 0.0
    %873 = vmatprep.subr.mxu0 0.0
    %874 = vmatpush1.msra.mxu0 0.0
    %875 = vmatprep.subr.mxu0 0.0
    %876 = vmatpush1.msra.mxu0 0.0
    %877 = vmatprep.subr.mxu0 0.0
    %878 = vmatpush1.msra.mxu0 0.0
    %879 = vmatprep.subr.mxu0 0.0
    %880 = vmatpush1.msra.mxu0 0.0
    %881 = vmatprep.subr.mxu0 0.0
    %882 = vmatpush1.msra.mxu0 0.0
    %883 = vmatprep.subr.mxu0 0.0
    %884 = vmatpush1.msra.mxu0 0.0
    %885 = vmatprep.subr.mxu0 0.0
    %886 = vmatpush1.msra.mxu0 0.0
    %887 = vmatprep.subr.mxu0 0.0
    %888 = vmatpush1.msra.mxu0 0.0
    %889 = vmatprep.mubr.f32.mxu0 0.0
    %890 = vmatmul.mubr.f32.gmra.mrb[0].mxu0 %v823
    %v891 = vpop.f32.mrb[0].mxu0
    %v892 = vadd.f32 0.0, %v891
    %v893 = vpop.f32.mrb[0].mxu0
    %v894 = vadd.f32 0.0, %v893
    %895 = vdwg.mxu0
    %v896 = vadd.f32 %v818, %v892
    %v897 = vadd.f32 %v820, %v894
    %v898 = vxor.u32 %v896, 2147483648
    %v899 = vxor.u32 %v897, 2147483648
    %v900 = vmul.f32 %v898, 1.442695
    %v901 = vpow.pop %v900
    %v902 = vmul.f32 %v899, 1.442695
    %v903 = vpow.pop %v902
    %v904 = vadd.f32 %v901, 1.0
    %v905 = vadd.f32 %v903, 1.0
    %v906 = vrcp.pop %v904
    %v907 = vmul.f32 1.0, %v906
    %v908 = vrcp.pop %v905
    %v909 = vmul.f32 1.0, %v908
    %v910 = vtanh.pop %v897
    %v911 = vmul.f32 %v907, %v633
    %913 = vrot.lane.b32.xlu0 %v910, 64
    %v914 = vpop.permute.xlu0 %913
    %v916 = vmul.f32 %v907, %v914
    %918 = vrot.lane.b32.xlu0 %v916, 64
    %v919 = vpop.permute.xlu0 %918
    %v921 = vadd.f32 %v911, %v919
    %v922 = vtanh.pop %v921
    %924 = vrot.lane.b32.xlu0 %v922, 64
    %v925 = vpop.permute.xlu0 %924
    %v927 = vmul.f32 %v909, %v925
    %s928 = smul.u32 2, 2
    %s929 = smul.addr %s928, 8
    %s930 = scalar_lea.vmem [#allocation2], %s929
    %v931 = vld [vmem:[%s930] sm:$0xff]
    %v932 = vld [vmem:[%s930 + $0x8] sm:$0xff]
    %933 = vmatprep.subr.mxu0 %v326
    %934 = vmatpush1.msra.mxu0 %v325
    %935 = vmatprep.subr.mxu0 %v328
    %936 = vmatpush1.msra.mxu0 %v327
    %937 = vmatprep.subr.mxu0 %v330
    %938 = vmatpush1.msra.mxu0 %v329
    %939 = vmatprep.subr.mxu0 %v332
    %940 = vmatpush1.msra.mxu0 %v331
    %941 = vmatprep.subr.mxu0 %v334
    %942 = vmatpush1.msra.mxu0 %v333
    %943 = vmatprep.subr.mxu0 %v336
    %944 = vmatpush1.msra.mxu0 %v335
    %945 = vmatprep.subr.mxu0 %v338
    %946 = vmatpush1.msra.mxu0 %v337
    %947 = vmatprep.subr.mxu0 %v340
    %948 = vmatpush1.msra.mxu0 %v339
    %949 = vmatprep.subr.mxu0 0.0
    %950 = vmatpush1.msra.mxu0 0.0
    %951 = vmatprep.subr.mxu0 0.0
    %952 = vmatpush1.msra.mxu0 0.0
    %953 = vmatprep.subr.mxu0 0.0
    %954 = vmatpush1.msra.mxu0 0.0
    %955 = vmatprep.subr.mxu0 0.0
    %956 = vmatpush1.msra.mxu0 0.0
    %957 = vmatprep.subr.mxu0 0.0
    %958 = vmatpush1.msra.mxu0 0.0
    %959 = vmatprep.subr.mxu0 0.0
    %960 = vmatpush1.msra.mxu0 0.0
    %961 = vmatprep.subr.mxu0 0.0
    %962 = vmatpush1.msra.mxu0 0.0
    %963 = vmatprep.subr.mxu0 0.0
    %964 = vmatpush1.msra.mxu0 0.0
    %965 = vmatprep.subr.mxu0 0.0
    %966 = vmatpush1.msra.mxu0 0.0
    %967 = vmatprep.subr.mxu0 0.0
    %968 = vmatpush1.msra.mxu0 0.0
    %969 = vmatprep.subr.mxu0 0.0
    %970 = vmatpush1.msra.mxu0 0.0
    %971 = vmatprep.subr.mxu0 0.0
    %972 = vmatpush1.msra.mxu0 0.0
    %973 = vmatprep.subr.mxu0 0.0
    %974 = vmatpush1.msra.mxu0 0.0
    %975 = vmatprep.subr.mxu0 0.0
    %976 = vmatpush1.msra.mxu0 0.0
    %977 = vmatprep.subr.mxu0 0.0
    %978 = vmatpush1.msra.mxu0 0.0
    %979 = vmatprep.subr.mxu0 0.0
    %980 = vmatpush1.msra.mxu0 0.0
    %981 = vmatprep.subr.mxu0 0.0
    %982 = vmatpush1.msra.mxu0 0.0
    %983 = vmatprep.subr.mxu0 0.0
    %984 = vmatpush1.msra.mxu0 0.0
    %985 = vmatprep.subr.mxu0 0.0
    %986 = vmatpush1.msra.mxu0 0.0
    %987 = vmatprep.subr.mxu0 0.0
    %988 = vmatpush1.msra.mxu0 0.0
    %989 = vmatprep.subr.mxu0 0.0
    %990 = vmatpush1.msra.mxu0 0.0
    %991 = vmatprep.subr.mxu0 0.0
    %992 = vmatpush1.msra.mxu0 0.0
    %993 = vmatprep.subr.mxu0 0.0
    %994 = vmatpush1.msra.mxu0 0.0
    %995 = vmatprep.subr.mxu0 0.0
    %996 = vmatpush1.msra.mxu0 0.0
    %997 = vmatprep.mubr.f32.mxu0 0.0
    %998 = vmatmul.mubr.f32.gmra.mrb[0].mxu0 %v823
    %v999 = vpop.f32.mrb[0].mxu0
    %v1000 = vadd.f32 0.0, %v999
    %v1001 = vpop.f32.mrb[0].mxu0
    %v1002 = vadd.f32 0.0, %v1001
    %1003 = vdwg.mxu0
    %v1004 = vadd.f32 %v931, %v1000
    %v1005 = vadd.f32 %v932, %v1002
    %v1006 = vxor.u32 %v1004, 2147483648
    %v1007 = vxor.u32 %v1005, 2147483648
    %v1008 = vmul.f32 %v1006, 1.442695
    %v1009 = vpow.pop %v1008
    %v1010 = vmul.f32 %v1007, 1.442695
    %v1011 = vpow.pop %v1010
    %v1012 = vadd.f32 %v1009, 1.0
    %v1013 = vadd.f32 %v1011, 1.0
    %v1014 = vrcp.pop %v1012
    %v1015 = vmul.f32 1.0, %v1014
    %v1016 = vrcp.pop %v1013
    %v1017 = vmul.f32 1.0, %v1016
    %v1018 = vtanh.pop %v1005
    %v1019 = vmul.f32 %v1015, %v741
    %1021 = vrot.lane.b32.xlu0 %v1018, 64
    %v1022 = vpop.permute.xlu0 %1021
    %v1024 = vmul.f32 %v1015, %v1022
    %1026 = vrot.lane.b32.xlu0 %v1024, 64
    %v1027 = vpop.permute.xlu0 %1026
    %v1029 = vadd.f32 %v1019, %v1027
    %v1030 = vtanh.pop %v1029
    %1032 = vrot.lane.b32.xlu0 %v1030, 64
    %v1033 = vpop.permute.xlu0 %1032
    %v1035 = vmul.f32 %v1017, %v1033
    %v1037 = vsel %vm138, %v927, 0
    %1039 = vmatprep.subr.mxu0 %v305
    %1040 = vmatpush1.msra.mxu0 %v304
    %1041 = vmatprep.subr.mxu0 %v307
    %1042 = vmatpush1.msra.mxu0 %v306
    %1043 = vmatprep.subr.mxu0 %v309
    %1044 = vmatpush1.msra.mxu0 %v308
    %1045 = vmatprep.subr.mxu0 %v311
    %1046 = vmatpush1.msra.mxu0 %v310
    %1047 = vmatprep.subr.mxu0 %v313
    %1048 = vmatpush1.msra.mxu0 %v312
    %1049 = vmatprep.subr.mxu0 %v315
    %1050 = vmatpush1.msra.mxu0 %v314
    %1051 = vmatprep.subr.mxu0 %v317
    %1052 = vmatpush1.msra.mxu0 %v316
    %1053 = vmatprep.subr.mxu0 %v319
    %1054 = vmatpush1.msra.mxu0 %v318
    %1055 = vmatprep.subr.mxu0 0.0
    %1056 = vmatpush1.msra.mxu0 0.0
    %1057 = vmatprep.subr.mxu0 0.0
    %1058 = vmatpush1.msra.mxu0 0.0
    %1059 = vmatprep.subr.mxu0 0.0
    %1060 = vmatpush1.msra.mxu0 0.0
    %1061 = vmatprep.subr.mxu0 0.0
    %1062 = vmatpush1.msra.mxu0 0.0
    %1063 = vmatprep.subr.mxu0 0.0
    %1064 = vmatpush1.msra.mxu0 0.0
    %1065 = vmatprep.subr.mxu0 0.0
    %1066 = vmatpush1.msra.mxu0 0.0
    %1067 = vmatprep.subr.mxu0 0.0
    %1068 = vmatpush1.msra.mxu0 0.0
    %1069 = vmatprep.subr.mxu0 0.0
    %1070 = vmatpush1.msra.mxu0 0.0
    %1071 = vmatprep.subr.mxu0 0.0
    %1072 = vmatpush1.msra.mxu0 0.0
    %1073 = vmatprep.subr.mxu0 0.0
    %1074 = vmatpush1.msra.mxu0 0.0
    %1075 = vmatprep.subr.mxu0 0.0
    %1076 = vmatpush1.msra.mxu0 0.0
    %1077 = vmatprep.subr.mxu0 0.0
    %1078 = vmatpush1.msra.mxu0 0.0
    %1079 = vmatprep.subr.mxu0 0.0
    %1080 = vmatpush1.msra.mxu0 0.0
    %1081 = vmatprep.subr.mxu0 0.0
    %1082 = vmatpush1.msra.mxu0 0.0
    %1083 = vmatprep.subr.mxu0 0.0
    %1084 = vmatpush1.msra.mxu0 0.0
    %1085 = vmatprep.subr.mxu0 0.0
    %1086 = vmatpush1.msra.mxu0 0.0
    %1087 = vmatprep.subr.mxu0 0.0
    %1088 = vmatpush1.msra.mxu0 0.0
    %1089 = vmatprep.subr.mxu0 0.0
    %1090 = vmatpush1.msra.mxu0 0.0
    %1091 = vmatprep.subr.mxu0 0.0
    %1092 = vmatpush1.msra.mxu0 0.0
    %1093 = vmatprep.subr.mxu0 0.0
    %1094 = vmatpush1.msra.mxu0 0.0
    %1095 = vmatprep.subr.mxu0 0.0
    %1096 = vmatpush1.msra.mxu0 0.0
    %1097 = vmatprep.subr.mxu0 0.0
    %1098 = vmatpush1.msra.mxu0 0.0
    %1099 = vmatprep.subr.mxu0 0.0
    %1100 = vmatpush1.msra.mxu0 0.0
    %1101 = vmatprep.subr.mxu0 0.0
    %1102 = vmatpush1.msra.mxu0 0.0
    %1103 = vmatprep.mubr.f32.mxu0 0.0
    %1104 = vmatmul.mubr.f32.gmra.mrb[0].mxu0 %v1037
    %v1105 = vpop.f32.mrb[0].mxu0
    %v1106 = vadd.f32 %v297, %v1105
    %v1107 = vpop.f32.mrb[0].mxu0
    %v1108 = vadd.f32 %v301, %v1107
    %1109 = vdwg.mxu0
    %v1111 = vsel %vm138, %v1035, 0
    %1113 = vmatprep.subr.mxu0 %v519
    %1114 = vmatpush1.msra.mxu0 %v518
    %1115 = vmatprep.subr.mxu0 %v521
    %1116 = vmatpush1.msra.mxu0 %v520
    %1117 = vmatprep.subr.mxu0 %v523
    %1118 = vmatpush1.msra.mxu0 %v522
    %1119 = vmatprep.subr.mxu0 %v525
    %1120 = vmatpush1.msra.mxu0 %v524
    %1121 = vmatprep.subr.mxu0 %v527
    %1122 = vmatpush1.msra.mxu0 %v526
    %1123 = vmatprep.subr.mxu0 %v529
    %1124 = vmatpush1.msra.mxu0 %v528
    %1125 = vmatprep.subr.mxu0 %v531
    %1126 = vmatpush1.msra.mxu0 %v530
    %1127 = vmatprep.subr.mxu0 %v533
    %1128 = vmatpush1.msra.mxu0 %v532
    %1129 = vmatprep.subr.mxu0 0.0
    %1130 = vmatpush1.msra.mxu0 0.0
    %1131 = vmatprep.subr.mxu0 0.0
    %1132 = vmatpush1.msra.mxu0 0.0
    %1133 = vmatprep.subr.mxu0 0.0
    %1134 = vmatpush1.msra.mxu0 0.0
    %1135 = vmatprep.subr.mxu0 0.0
    %1136 = vmatpush1.msra.mxu0 0.0
    %1137 = vmatprep.subr.mxu0 0.0
    %1138 = vmatpush1.msra.mxu0 0.0
    %1139 = vmatprep.subr.mxu0 0.0
    %1140 = vmatpush1.msra.mxu0 0.0
    %1141 = vmatprep.subr.mxu0 0.0
    %1142 = vmatpush1.msra.mxu0 0.0
    %1143 = vmatprep.subr.mxu0 0.0
    %1144 = vmatpush1.msra.mxu0 0.0
    %1145 = vmatprep.subr.mxu0 0.0
    %1146 = vmatpush1.msra.mxu0 0.0
    %1147 = vmatprep.subr.mxu0 0.0
    %1148 = vmatpush1.msra.mxu0 0.0
    %1149 = vmatprep.subr.mxu0 0.0
    %1150 = vmatpush1.msra.mxu0 0.0
    %1151 = vmatprep.subr.mxu0 0.0
    %1152 = vmatpush1.msra.mxu0 0.0
    %1153 = vmatprep.subr.mxu0 0.0
    %1154 = vmatpush1.msra.mxu0 0.0
    %1155 = vmatprep.subr.mxu0 0.0
    %1156 = vmatpush1.msra.mxu0 0.0
    %1157 = vmatprep.subr.mxu0 0.0
    %1158 = vmatpush1.msra.mxu0 0.0
    %1159 = vmatprep.subr.mxu0 0.0
    %1160 = vmatpush1.msra.mxu0 0.0
    %1161 = vmatprep.subr.mxu0 0.0
    %1162 = vmatpush1.msra.mxu0 0.0
    %1163 = vmatprep.subr.mxu0 0.0
    %1164 = vmatpush1.msra.mxu0 0.0
    %1165 = vmatprep.subr.mxu0 0.0
    %1166 = vmatpush1.msra.mxu0 0.0
    %1167 = vmatprep.subr.mxu0 0.0
    %1168 = vmatpush1.msra.mxu0 0.0
    %1169 = vmatprep.subr.mxu0 0.0
    %1170 = vmatpush1.msra.mxu0 0.0
    %1171 = vmatprep.subr.mxu0 0.0
    %1172 = vmatpush1.msra.mxu0 0.0
    %1173 = vmatprep.subr.mxu0 0.0
    %1174 = vmatpush1.msra.mxu0 0.0
    %1175 = vmatprep.subr.mxu0 0.0
    %1176 = vmatpush1.msra.mxu0 0.0
    %1177 = vmatprep.mubr.f32.mxu0 0.0
    %1178 = vmatmul.mubr.f32.gmra.mrb[0].mxu0 %v1111
    %v1179 = vpop.f32.mrb[0].mxu0
    %v1180 = vadd.f32 0.0, %v1179
    %v1181 = vpop.f32.mrb[0].mxu0
    %v1182 = vadd.f32 0.0, %v1181
    %1183 = vdwg.mxu0
    %v1184 = vadd.f32 %v1106, %v1180
    %v1185 = vadd.f32 %v1108, %v1182
    %v1186 = vxor.u32 %v1184, 2147483648
    %v1187 = vxor.u32 %v1185, 2147483648
    %v1188 = vmul.f32 %v1186, 1.442695
    %v1189 = vpow.pop %v1188
    %v1190 = vmul.f32 %v1187, 1.442695
    %v1191 = vpow.pop %v1190
    %v1192 = vadd.f32 %v1189, 1.0
    %v1193 = vadd.f32 %v1191, 1.0
    %v1194 = vrcp.pop %v1192
    %v1195 = vmul.f32 1.0, %v1194
    %v1196 = vrcp.pop %v1193
    %v1197 = vmul.f32 1.0, %v1196
    %v1198 = vtanh.pop %v1185
    %v1199 = vmul.f32 %v1195, %v921
    %1201 = vrot.lane.b32.xlu0 %v1198, 64
    %v1202 = vpop.permute.xlu0 %1201
    %v1204 = vmul.f32 %v1195, %v1202
    %1206 = vrot.lane.b32.xlu0 %v1204, 64
    %v1207 = vpop.permute.xlu0 %1206
    %v1209 = vadd.f32 %v1199, %v1207
    %v1210 = vtanh.pop %v1209
    %1212 = vrot.lane.b32.xlu0 %v1210, 64
    %v1213 = vpop.permute.xlu0 %1212
    %v1215 = vmul.f32 %v1197, %v1213
    %s1216 = smul.u32 3, 2
    %s1217 = smul.addr %s1216, 8
    %s1218 = scalar_lea.vmem [#allocation2], %s1217
    %v1219 = vld [vmem:[%s1218] sm:$0xff]
    %v1220 = vld [vmem:[%s1218 + $0x8] sm:$0xff]
    %1221 = vmatprep.subr.mxu0 %v326
    %1222 = vmatpush1.msra.mxu0 %v325
    %1223 = vmatprep.subr.mxu0 %v328
    %1224 = vmatpush1.msra.mxu0 %v327
    %1225 = vmatprep.subr.mxu0 %v330
    %1226 = vmatpush1.msra.mxu0 %v329
    %1227 = vmatprep.subr.mxu0 %v332
    %1228 = vmatpush1.msra.mxu0 %v331
    %1229 = vmatprep.subr.mxu0 %v334
    %1230 = vmatpush1.msra.mxu0 %v333
    %1231 = vmatprep.subr.mxu0 %v336
    %1232 = vmatpush1.msra.mxu0 %v335
    %1233 = vmatprep.subr.mxu0 %v338
    %1234 = vmatpush1.msra.mxu0 %v337
    %1235 = vmatprep.subr.mxu0 %v340
    %1236 = vmatpush1.msra.mxu0 %v339
    %1237 = vmatprep.subr.mxu0 0.0
    %1238 = vmatpush1.msra.mxu0 0.0
    %1239 = vmatprep.subr.mxu0 0.0
    %1240 = vmatpush1.msra.mxu0 0.0
    %1241 = vmatprep.subr.mxu0 0.0
    %1242 = vmatpush1.msra.mxu0 0.0
    %1243 = vmatprep.subr.mxu0 0.0
    %1244 = vmatpush1.msra.mxu0 0.0
    %1245 = vmatprep.subr.mxu0 0.0
    %1246 = vmatpush1.msra.mxu0 0.0
    %1247 = vmatprep.subr.mxu0 0.0
    %1248 = vmatpush1.msra.mxu0 0.0
    %1249 = vmatprep.subr.mxu0 0.0
    %1250 = vmatpush1.msra.mxu0 0.0
    %1251 = vmatprep.subr.mxu0 0.0
    %1252 = vmatpush1.msra.mxu0 0.0
    %1253 = vmatprep.subr.mxu0 0.0
    %1254 = vmatpush1.msra.mxu0 0.0
    %1255 = vmatprep.subr.mxu0 0.0
    %1256 = vmatpush1.msra.mxu0 0.0
    %1257 = vmatprep.subr.mxu0 0.0
    %1258 = vmatpush1.msra.mxu0 0.0
    %1259 = vmatprep.subr.mxu0 0.0
    %1260 = vmatpush1.msra.mxu0 0.0
    %1261 = vmatprep.subr.mxu0 0.0
    %1262 = vmatpush1.msra.mxu0 0.0
    %1263 = vmatprep.subr.mxu0 0.0
    %1264 = vmatpush1.msra.mxu0 0.0
    %1265 = vmatprep.subr.mxu0 0.0
    %1266 = vmatpush1.msra.mxu0 0.0
    %1267 = vmatprep.subr.mxu0 0.0
    %1268 = vmatpush1.msra.mxu0 0.0
    %1269 = vmatprep.subr.mxu0 0.0
    %1270 = vmatpush1.msra.mxu0 0.0
    %1271 = vmatprep.subr.mxu0 0.0
    %1272 = vmatpush1.msra.mxu0 0.0
    %1273 = vmatprep.subr.mxu0 0.0
    %1274 = vmatpush1.msra.mxu0 0.0
    %1275 = vmatprep.subr.mxu0 0.0
    %1276 = vmatpush1.msra.mxu0 0.0
    %1277 = vmatprep.subr.mxu0 0.0
    %1278 = vmatpush1.msra.mxu0 0.0
    %1279 = vmatprep.subr.mxu0 0.0
    %1280 = vmatpush1.msra.mxu0 0.0
    %1281 = vmatprep.subr.mxu0 0.0
    %1282 = vmatpush1.msra.mxu0 0.0
    %1283 = vmatprep.subr.mxu0 0.0
    %1284 = vmatpush1.msra.mxu0 0.0
    %1285 = vmatprep.mubr.f32.mxu0 0.0
    %1286 = vmatmul.mubr.f32.gmra.mrb[0].mxu0 %v1111
    %v1287 = vpop.f32.mrb[0].mxu0
    %v1288 = vadd.f32 0.0, %v1287
    %v1289 = vpop.f32.mrb[0].mxu0
    %v1290 = vadd.f32 0.0, %v1289
    %1291 = vdwg.mxu0
    %v1292 = vadd.f32 %v1219, %v1288
    %v1293 = vadd.f32 %v1220, %v1290
    %v1294 = vxor.u32 %v1292, 2147483648
    %v1295 = vxor.u32 %v1293, 2147483648
    %v1296 = vmul.f32 %v1294, 1.442695
    %v1297 = vpow.pop %v1296
    %v1298 = vmul.f32 %v1295, 1.442695
    %v1299 = vpow.pop %v1298
    %v1300 = vadd.f32 %v1297, 1.0
    %v1301 = vadd.f32 %v1299, 1.0
    %v1302 = vrcp.pop %v1300
    %v1303 = vmul.f32 1.0, %v1302
    %v1304 = vrcp.pop %v1301
    %v1305 = vmul.f32 1.0, %v1304
    %v1306 = vtanh.pop %v1293
    %v1307 = vmul.f32 %v1303, %v1029
    %1309 = vrot.lane.b32.xlu0 %v1306, 64
    %v1310 = vpop.permute.xlu0 %1309
    %v1312 = vmul.f32 %v1303, %v1310
    %1314 = vrot.lane.b32.xlu0 %v1312, 64
    %v1315 = vpop.permute.xlu0 %1314
    %v1317 = vadd.f32 %v1307, %v1315
    %v1318 = vtanh.pop %v1317
    %1320 = vrot.lane.b32.xlu0 %v1318, 64
    %v1321 = vpop.permute.xlu0 %1320
    %v1323 = vmul.f32 %v1305, %v1321
    %v1325 = vsel %vm138, %v1215, 0
    %1327 = vmatprep.subr.mxu0 %v305
    %1328 = vmatpush1.msra.mxu0 %v304
    %1329 = vmatprep.subr.mxu0 %v307
    %1330 = vmatpush1.msra.mxu0 %v306
    %1331 = vmatprep.subr.mxu0 %v309
    %1332 = vmatpush1.msra.mxu0 %v308
    %1333 = vmatprep.subr.mxu0 %v311
    %1334 = vmatpush1.msra.mxu0 %v310
    %1335 = vmatprep.subr.mxu0 %v313
    %1336 = vmatpush1.msra.mxu0 %v312
    %1337 = vmatprep.subr.mxu0 %v315
    %1338 = vmatpush1.msra.mxu0 %v314
    %1339 = vmatprep.subr.mxu0 %v317
    %1340 = vmatpush1.msra.mxu0 %v316
    %1341 = vmatprep.subr.mxu0 %v319
    %1342 = vmatpush1.msra.mxu0 %v318
    %1343 = vmatprep.subr.mxu0 0.0
    %1344 = vmatpush1.msra.mxu0 0.0
    %1345 = vmatprep.subr.mxu0 0.0
    %1346 = vmatpush1.msra.mxu0 0.0
    %1347 = vmatprep.subr.mxu0 0.0
    %1348 = vmatpush1.msra.mxu0 0.0
    %1349 = vmatprep.subr.mxu0 0.0
    %1350 = vmatpush1.msra.mxu0 0.0
    %1351 = vmatprep.subr.mxu0 0.0
    %1352 = vmatpush1.msra.mxu0 0.0
    %1353 = vmatprep.subr.mxu0 0.0
    %1354 = vmatpush1.msra.mxu0 0.0
    %1355 = vmatprep.subr.mxu0 0.0
    %1356 = vmatpush1.msra.mxu0 0.0
    %1357 = vmatprep.subr.mxu0 0.0
    %1358 = vmatpush1.msra.mxu0 0.0
    %1359 = vmatprep.subr.mxu0 0.0
    %1360 = vmatpush1.msra.mxu0 0.0
    %1361 = vmatprep.subr.mxu0 0.0
    %1362 = vmatpush1.msra.mxu0 0.0
    %1363 = vmatprep.subr.mxu0 0.0
    %1364 = vmatpush1.msra.mxu0 0.0
    %1365 = vmatprep.subr.mxu0 0.0
    %1366 = vmatpush1.msra.mxu0 0.0
    %1367 = vmatprep.subr.mxu0 0.0
    %1368 = vmatpush1.msra.mxu0 0.0
    %1369 = vmatprep.subr.mxu0 0.0
    %1370 = vmatpush1.msra.mxu0 0.0
    %1371 = vmatprep.subr.mxu0 0.0
    %1372 = vmatpush1.msra.mxu0 0.0
    %1373 = vmatprep.subr.mxu0 0.0
    %1374 = vmatpush1.msra.mxu0 0.0
    %1375 = vmatprep.subr.mxu0 0.0
    %1376 = vmatpush1.msra.mxu0 0.0
    %1377 = vmatprep.subr.mxu0 0.0
    %1378 = vmatpush1.msra.mxu0 0.0
    %1379 = vmatprep.subr.mxu0 0.0
    %1380 = vmatpush1.msra.mxu0 0.0
    %1381 = vmatprep.subr.mxu0 0.0
    %1382 = vmatpush1.msra.mxu0 0.0
    %1383 = vmatprep.subr.mxu0 0.0
    %1384 = vmatpush1.msra.mxu0 0.0
    %1385 = vmatprep.subr.mxu0 0.0
    %1386 = vmatpush1.msra.mxu0 0.0
    %1387 = vmatprep.subr.mxu0 0.0
    %1388 = vmatpush1.msra.mxu0 0.0
    %1389 = vmatprep.subr.mxu0 0.0
    %1390 = vmatpush1.msra.mxu0 0.0
    %1391 = vmatprep.mubr.f32.mxu0 0.0
    %1392 = vmatmul.mubr.f32.gmra.mrb[0].mxu0 %v1325
    %v1393 = vpop.f32.mrb[0].mxu0
    %v1394 = vadd.f32 %v297, %v1393
    %v1395 = vpop.f32.mrb[0].mxu0
    %v1396 = vadd.f32 %v301, %v1395
    %1397 = vdwg.mxu0
    %v1399 = vsel %vm138, %v1323, 0
    %1401 = vmatprep.subr.mxu0 %v519
    %1402 = vmatpush1.msra.mxu0 %v518
    %1403 = vmatprep.subr.mxu0 %v521
    %1404 = vmatpush1.msra.mxu0 %v520
    %1405 = vmatprep.subr.mxu0 %v523
    %1406 = vmatpush1.msra.mxu0 %v522
    %1407 = vmatprep.subr.mxu0 %v525
    %1408 = vmatpush1.msra.mxu0 %v524
    %1409 = vmatprep.subr.mxu0 %v527
    %1410 = vmatpush1.msra.mxu0 %v526
    %1411 = vmatprep.subr.mxu0 %v529
    %1412 = vmatpush1.msra.mxu0 %v528
    %1413 = vmatprep.subr.mxu0 %v531
    %1414 = vmatpush1.msra.mxu0 %v530
    %1415 = vmatprep.subr.mxu0 %v533
    %1416 = vmatpush1.msra.mxu0 %v532
    %1417 = vmatprep.subr.mxu0 0.0
    %1418 = vmatpush1.msra.mxu0 0.0
    %1419 = vmatprep.subr.mxu0 0.0
    %1420 = vmatpush1.msra.mxu0 0.0
    %1421 = vmatprep.subr.mxu0 0.0
    %1422 = vmatpush1.msra.mxu0 0.0
    %1423 = vmatprep.subr.mxu0 0.0
    %1424 = vmatpush1.msra.mxu0 0.0
    %1425 = vmatprep.subr.mxu0 0.0
    %1426 = vmatpush1.msra.mxu0 0.0
    %1427 = vmatprep.subr.mxu0 0.0
    %1428 = vmatpush1.msra.mxu0 0.0
    %1429 = vmatprep.subr.mxu0 0.0
    %1430 = vmatpush1.msra.mxu0 0.0
    %1431 = vmatprep.subr.mxu0 0.0
    %1432 = vmatpush1.msra.mxu0 0.0
    %1433 = vmatprep.subr.mxu0 0.0
    %1434 = vmatpush1.msra.mxu0 0.0
    %1435 = vmatprep.subr.mxu0 0.0
    %1436 = vmatpush1.msra.mxu0 0.0
    %1437 = vmatprep.subr.mxu0 0.0
    %1438 = vmatpush1.msra.mxu0 0.0
    %1439 = vmatprep.subr.mxu0 0.0
    %1440 = vmatpush1.msra.mxu0 0.0
    %1441 = vmatprep.subr.mxu0 0.0
    %1442 = vmatpush1.msra.mxu0 0.0
    %1443 = vmatprep.subr.mxu0 0.0
    %1444 = vmatpush1.msra.mxu0 0.0
    %1445 = vmatprep.subr.mxu0 0.0
    %1446 = vmatpush1.msra.mxu0 0.0
    %1447 = vmatprep.subr.mxu0 0.0
    %1448 = vmatpush1.msra.mxu0 0.0
    %1449 = vmatprep.subr.mxu0 0.0
    %1450 = vmatpush1.msra.mxu0 0.0
    %1451 = vmatprep.subr.mxu0 0.0
    %1452 = vmatpush1.msra.mxu0 0.0
    %1453 = vmatprep.subr.mxu0 0.0
    %1454 = vmatpush1.msra.mxu0 0.0
    %1455 = vmatprep.subr.mxu0 0.0
    %1456 = vmatpush1.msra.mxu0 0.0
    %1457 = vmatprep.subr.mxu0 0.0
    %1458 = vmatpush1.msra.mxu0 0.0
    %1459 = vmatprep.subr.mxu0 0.0
    %1460 = vmatpush1.msra.mxu0 0.0
    %1461 = vmatprep.subr.mxu0 0.0
    %1462 = vmatpush1.msra.mxu0 0.0
    %1463 = vmatprep.subr.mxu0 0.0
    %1464 = vmatpush1.msra.mxu0 0.0
    %1465 = vmatprep.mubr.f32.mxu0 0.0
    %1466 = vmatmul.mubr.f32.gmra.mrb[0].mxu0 %v1399
    %v1467 = vpop.f32.mrb[0].mxu0
    %v1468 = vadd.f32 0.0, %v1467
    %v1469 = vpop.f32.mrb[0].mxu0
    %v1470 = vadd.f32 0.0, %v1469
    %1471 = vdwg.mxu0
    %v1472 = vadd.f32 %v1394, %v1468
    %v1473 = vadd.f32 %v1396, %v1470
    %v1474 = vxor.u32 %v1472, 2147483648
    %v1475 = vxor.u32 %v1473, 2147483648
    %v1476 = vmul.f32 %v1474, 1.442695
    %v1477 = vpow.pop %v1476
    %v1478 = vmul.f32 %v1475, 1.442695
    %v1479 = vpow.pop %v1478
    %v1480 = vadd.f32 %v1477, 1.0
    %v1481 = vadd.f32 %v1479, 1.0
    %v1482 = vrcp.pop %v1480
    %v1483 = vmul.f32 1.0, %v1482
    %v1484 = vrcp.pop %v1481
    %v1485 = vmul.f32 1.0, %v1484
    %v1486 = vtanh.pop %v1473
    %v1487 = vmul.f32 %v1483, %v1209
    %1489 = vrot.lane.b32.xlu0 %v1486, 64
    %v1490 = vpop.permute.xlu0 %1489
    %v1492 = vmul.f32 %v1483, %v1490
    %1494 = vrot.lane.b32.xlu0 %v1492, 64
    %v1495 = vpop.permute.xlu0 %1494
    %v1497 = vadd.f32 %v1487, %v1495
    %v1498 = vtanh.pop %v1497
    %1500 = vrot.lane.b32.xlu0 %v1498, 64
    %v1501 = vpop.permute.xlu0 %1500
    %v1503 = vmul.f32 %v1485, %v1501
    %s1504 = smul.u32 4, 2
    %s1505 = smul.addr %s1504, 8
    %s1506 = scalar_lea.vmem [#allocation2], %s1505
    %v1507 = vld [vmem:[%s1506] sm:$0xff]
    %v1508 = vld [vmem:[%s1506 + $0x8] sm:$0xff]
    %1509 = vmatprep.subr.mxu0 %v326
    %1510 = vmatpush1.msra.mxu0 %v325
    %1511 = vmatprep.subr.mxu0 %v328
    %1512 = vmatpush1.msra.mxu0 %v327
    %1513 = vmatprep.subr.mxu0 %v330
    %1514 = vmatpush1.msra.mxu0 %v329
    %1515 = vmatprep.subr.mxu0 %v332
    %1516 = vmatpush1.msra.mxu0 %v331
    %1517 = vmatprep.subr.mxu0 %v334
    %1518 = vmatpush1.msra.mxu0 %v333
    %1519 = vmatprep.subr.mxu0 %v336
    %1520 = vmatpush1.msra.mxu0 %v335
    %1521 = vmatprep.subr.mxu0 %v338
    %1522 = vmatpush1.msra.mxu0 %v337
    %1523 = vmatprep.subr.mxu0 %v340
    %1524 = vmatpush1.msra.mxu0 %v339
    %1525 = vmatprep.subr.mxu0 0.0
    %1526 = vmatpush1.msra.mxu0 0.0
    %1527 = vmatprep.subr.mxu0 0.0
    %1528 = vmatpush1.msra.mxu0 0.0
    %1529 = vmatprep.subr.mxu0 0.0
    %1530 = vmatpush1.msra.mxu0 0.0
    %1531 = vmatprep.subr.mxu0 0.0
    %1532 = vmatpush1.msra.mxu0 0.0
    %1533 = vmatprep.subr.mxu0 0.0
    %1534 = vmatpush1.msra.mxu0 0.0
    %1535 = vmatprep.subr.mxu0 0.0
    %1536 = vmatpush1.msra.mxu0 0.0
    %1537 = vmatprep.subr.mxu0 0.0
    %1538 = vmatpush1.msra.mxu0 0.0
    %1539 = vmatprep.subr.mxu0 0.0
    %1540 = vmatpush1.msra.mxu0 0.0
    %1541 = vmatprep.subr.mxu0 0.0
    %1542 = vmatpush1.msra.mxu0 0.0
    %1543 = vmatprep.subr.mxu0 0.0
    %1544 = vmatpush1.msra.mxu0 0.0
    %1545 = vmatprep.subr.mxu0 0.0
    %1546 = vmatpush1.msra.mxu0 0.0
    %1547 = vmatprep.subr.mxu0 0.0
    %1548 = vmatpush1.msra.mxu0 0.0
    %1549 = vmatprep.subr.mxu0 0.0
    %1550 = vmatpush1.msra.mxu0 0.0
    %1551 = vmatprep.subr.mxu0 0.0
    %1552 = vmatpush1.msra.mxu0 0.0
    %1553 = vmatprep.subr.mxu0 0.0
    %1554 = vmatpush1.msra.mxu0 0.0
    %1555 = vmatprep.subr.mxu0 0.0
    %1556 = vmatpush1.msra.mxu0 0.0
    %1557 = vmatprep.subr.mxu0 0.0
    %1558 = vmatpush1.msra.mxu0 0.0
    %1559 = vmatprep.subr.mxu0 0.0
    %1560 = vmatpush1.msra.mxu0 0.0
    %1561 = vmatprep.subr.mxu0 0.0
    %1562 = vmatpush1.msra.mxu0 0.0
    %1563 = vmatprep.subr.mxu0 0.0
    %1564 = vmatpush1.msra.mxu0 0.0
    %1565 = vmatprep.subr.mxu0 0.0
    %1566 = vmatpush1.msra.mxu0 0.0
    %1567 = vmatprep.subr.mxu0 0.0
    %1568 = vmatpush1.msra.mxu0 0.0
    %1569 = vmatprep.subr.mxu0 0.0
    %1570 = vmatpush1.msra.mxu0 0.0
    %1571 = vmatprep.subr.mxu0 0.0
    %1572 = vmatpush1.msra.mxu0 0.0
    %1573 = vmatprep.mubr.f32.mxu0 0.0
    %1574 = vmatmul.mubr.f32.gmra.mrb[0].mxu0 %v1399
    %v1575 = vpop.f32.mrb[0].mxu0
    %v1576 = vadd.f32 0.0, %v1575
    %v1577 = vpop.f32.mrb[0].mxu0
    %v1578 = vadd.f32 0.0, %v1577
    %1579 = vdwg.mxu0
    %v1580 = vadd.f32 %v1507, %v1576
    %v1581 = vadd.f32 %v1508, %v1578
    %v1582 = vxor.u32 %v1580, 2147483648
    %v1583 = vxor.u32 %v1581, 2147483648
    %v1584 = vmul.f32 %v1582, 1.442695
    %v1585 = vpow.pop %v1584
    %v1586 = vmul.f32 %v1583, 1.442695
    %v1587 = vpow.pop %v1586
    %v1588 = vadd.f32 %v1585, 1.0
    %v1589 = vadd.f32 %v1587, 1.0
    %v1590 = vrcp.pop %v1588
    %v1591 = vmul.f32 1.0, %v1590
    %v1592 = vrcp.pop %v1589
    %v1593 = vmul.f32 1.0, %v1592
    %v1594 = vtanh.pop %v1581
    %v1595 = vmul.f32 %v1591, %v1317
    %1597 = vrot.lane.b32.xlu0 %v1594, 64
    %v1598 = vpop.permute.xlu0 %1597
    %v1600 = vmul.f32 %v1591, %v1598
    %1602 = vrot.lane.b32.xlu0 %v1600, 64
    %v1603 = vpop.permute.xlu0 %1602
    %v1605 = vadd.f32 %v1595, %v1603
    %v1606 = vtanh.pop %v1605
    %1608 = vrot.lane.b32.xlu0 %v1606, 64
    %v1609 = vpop.permute.xlu0 %1608
    %v1611 = vmul.f32 %v1593, %v1609
    %v1613 = vsel %vm138, %v1503, 0
    %1615 = vmatprep.subr.mxu0 %v305
    %1616 = vmatpush1.msra.mxu0 %v304
    %1617 = vmatprep.subr.mxu0 %v307
    %1618 = vmatpush1.msra.mxu0 %v306
    %1619 = vmatprep.subr.mxu0 %v309
    %1620 = vmatpush1.msra.mxu0 %v308
    %1621 = vmatprep.subr.mxu0 %v311
    %1622 = vmatpush1.msra.mxu0 %v310
    %1623 = vmatprep.subr.mxu0 %v313
    %1624 = vmatpush1.msra.mxu0 %v312
    %1625 = vmatprep.subr.mxu0 %v315
    %1626 = vmatpush1.msra.mxu0 %v314
    %1627 = vmatprep.subr.mxu0 %v317
    %1628 = vmatpush1.msra.mxu0 %v316
    %1629 = vmatprep.subr.mxu0 %v319
    %1630 = vmatpush1.msra.mxu0 %v318
    %1631 = vmatprep.subr.mxu0 0.0
    %1632 = vmatpush1.msra.mxu0 0.0
    %1633 = vmatprep.subr.mxu0 0.0
    %1634 = vmatpush1.msra.mxu0 0.0
    %1635 = vmatprep.subr.mxu0 0.0
    %1636 = vmatpush1.msra.mxu0 0.0
    %1637 = vmatprep.subr.mxu0 0.0
    %1638 = vmatpush1.msra.mxu0 0.0
    %1639 = vmatprep.subr.mxu0 0.0
    %1640 = vmatpush1.msra.mxu0 0.0
    %1641 = vmatprep.subr.mxu0 0.0
    %1642 = vmatpush1.msra.mxu0 0.0
    %1643 = vmatprep.subr.mxu0 0.0
    %1644 = vmatpush1.msra.mxu0 0.0
    %1645 = vmatprep.subr.mxu0 0.0
    %1646 = vmatpush1.msra.mxu0 0.0
    %1647 = vmatprep.subr.mxu0 0.0
    %1648 = vmatpush1.msra.mxu0 0.0
    %1649 = vmatprep.subr.mxu0 0.0
    %1650 = vmatpush1.msra.mxu0 0.0
    %1651 = vmatprep.subr.mxu0 0.0
    %1652 = vmatpush1.msra.mxu0 0.0
    %1653 = vmatprep.subr.mxu0 0.0
    %1654 = vmatpush1.msra.mxu0 0.0
    %1655 = vmatprep.subr.mxu0 0.0
    %1656 = vmatpush1.msra.mxu0 0.0
    %1657 = vmatprep.subr.mxu0 0.0
    %1658 = vmatpush1.msra.mxu0 0.0
    %1659 = vmatprep.subr.mxu0 0.0
    %1660 = vmatpush1.msra.mxu0 0.0
    %1661 = vmatprep.subr.mxu0 0.0
    %1662 = vmatpush1.msra.mxu0 0.0
    %1663 = vmatprep.subr.mxu0 0.0
    %1664 = vmatpush1.msra.mxu0 0.0
    %1665 = vmatprep.subr.mxu0 0.0
    %1666 = vmatpush1.msra.mxu0 0.0
    %1667 = vmatprep.subr.mxu0 0.0
    %1668 = vmatpush1.msra.mxu0 0.0
    %1669 = vmatprep.subr.mxu0 0.0
    %1670 = vmatpush1.msra.mxu0 0.0
    %1671 = vmatprep.subr.mxu0 0.0
    %1672 = vmatpush1.msra.mxu0 0.0
    %1673 = vmatprep.subr.mxu0 0.0
    %1674 = vmatpush1.msra.mxu0 0.0
    %1675 = vmatprep.subr.mxu0 0.0
    %1676 = vmatpush1.msra.mxu0 0.0
    %1677 = vmatprep.subr.mxu0 0.0
    %1678 = vmatpush1.msra.mxu0 0.0
    %1679 = vmatprep.mubr.f32.mxu0 0.0
    %1680 = vmatmul.mubr.f32.gmra.mrb[0].mxu0 %v1613
    %v1681 = vpop.f32.mrb[0].mxu0
    %v1682 = vadd.f32 %v297, %v1681
    %v1683 = vpop.f32.mrb[0].mxu0
    %v1684 = vadd.f32 %v301, %v1683
    %1685 = vdwg.mxu0
    %v1687 = vsel %vm138, %v1611, 0
    %1689 = vmatprep.subr.mxu0 %v519
    %1690 = vmatpush1.msra.mxu0 %v518
    %1691 = vmatprep.subr.mxu0 %v521
    %1692 = vmatpush1.msra.mxu0 %v520
    %1693 = vmatprep.subr.mxu0 %v523
    %1694 = vmatpush1.msra.mxu0 %v522
    %1695 = vmatprep.subr.mxu0 %v525
    %1696 = vmatpush1.msra.mxu0 %v524
    %1697 = vmatprep.subr.mxu0 %v527
    %1698 = vmatpush1.msra.mxu0 %v526
    %1699 = vmatprep.subr.mxu0 %v529
    %1700 = vmatpush1.msra.mxu0 %v528
    %1701 = vmatprep.subr.mxu0 %v531
    %1702 = vmatpush1.msra.mxu0 %v530
    %1703 = vmatprep.subr.mxu0 %v533
    %1704 = vmatpush1.msra.mxu0 %v532
    %1705 = vmatprep.subr.mxu0 0.0
    %1706 = vmatpush1.msra.mxu0 0.0
    %1707 = vmatprep.subr.mxu0 0.0
    %1708 = vmatpush1.msra.mxu0 0.0
    %1709 = vmatprep.subr.mxu0 0.0
    %1710 = vmatpush1.msra.mxu0 0.0
    %1711 = vmatprep.subr.mxu0 0.0
    %1712 = vmatpush1.msra.mxu0 0.0
    %1713 = vmatprep.subr.mxu0 0.0
    %1714 = vmatpush1.msra.mxu0 0.0
    %1715 = vmatprep.subr.mxu0 0.0
    %1716 = vmatpush1.msra.mxu0 0.0
    %1717 = vmatprep.subr.mxu0 0.0
    %1718 = vmatpush1.msra.mxu0 0.0
    %1719 = vmatprep.subr.mxu0 0.0
    %1720 = vmatpush1.msra.mxu0 0.0
    %1721 = vmatprep.subr.mxu0 0.0
    %1722 = vmatpush1.msra.mxu0 0.0
    %1723 = vmatprep.subr.mxu0 0.0
    %1724 = vmatpush1.msra.mxu0 0.0
    %1725 = vmatprep.subr.mxu0 0.0
    %1726 = vmatpush1.msra.mxu0 0.0
    %1727 = vmatprep.subr.mxu0 0.0
    %1728 = vmatpush1.msra.mxu0 0.0
    %1729 = vmatprep.subr.mxu0 0.0
    %1730 = vmatpush1.msra.mxu0 0.0
    %1731 = vmatprep.subr.mxu0 0.0
    %1732 = vmatpush1.msra.mxu0 0.0
    %1733 = vmatprep.subr.mxu0 0.0
    %1734 = vmatpush1.msra.mxu0 0.0
    %1735 = vmatprep.subr.mxu0 0.0
    %1736 = vmatpush1.msra.mxu0 0.0
    %1737 = vmatprep.subr.mxu0 0.0
    %1738 = vmatpush1.msra.mxu0 0.0
    %1739 = vmatprep.subr.mxu0 0.0
    %1740 = vmatpush1.msra.mxu0 0.0
    %1741 = vmatprep.subr.mxu0 0.0
    %1742 = vmatpush1.msra.mxu0 0.0
    %1743 = vmatprep.subr.mxu0 0.0
    %1744 = vmatpush1.msra.mxu0 0.0
    %1745 = vmatprep.subr.mxu0 0.0
    %1746 = vmatpush1.msra.mxu0 0.0
    %1747 = vmatprep.subr.mxu0 0.0
    %1748 = vmatpush1.msra.mxu0 0.0
    %1749 = vmatprep.subr.mxu0 0.0
    %1750 = vmatpush1.msra.mxu0 0.0
    %1751 = vmatprep.subr.mxu0 0.0
    %1752 = vmatpush1.msra.mxu0 0.0
    %1753 = vmatprep.mubr.f32.mxu0 0.0
    %1754 = vmatmul.mubr.f32.gmra.mrb[0].mxu0 %v1687
    %v1755 = vpop.f32.mrb[0].mxu0
    %v1756 = vadd.f32 0.0, %v1755
    %v1757 = vpop.f32.mrb[0].mxu0
    %v1758 = vadd.f32 0.0, %v1757
    %1759 = vdwg.mxu0
    %v1760 = vadd.f32 %v1682, %v1756
    %v1761 = vadd.f32 %v1684, %v1758
    %v1762 = vxor.u32 %v1760, 2147483648
    %v1763 = vxor.u32 %v1761, 2147483648
    %v1764 = vmul.f32 %v1762, 1.442695
    %v1765 = vpow.pop %v1764
    %v1766 = vmul.f32 %v1763, 1.442695
    %v1767 = vpow.pop %v1766
    %v1768 = vadd.f32 %v1765, 1.0
    %v1769 = vadd.f32 %v1767, 1.0
    %v1770 = vrcp.pop %v1768
    %v1771 = vmul.f32 1.0, %v1770
    %v1772 = vrcp.pop %v1769
    %v1773 = vmul.f32 1.0, %v1772
    %v1774 = vtanh.pop %v1761
    %v1775 = vmul.f32 %v1771, %v1497
    %1777 = vrot.lane.b32.xlu0 %v1774, 64
    %v1778 = vpop.permute.xlu0 %1777
    %v1780 = vmul.f32 %v1771, %v1778
    %1782 = vrot.lane.b32.xlu0 %v1780, 64
    %v1783 = vpop.permute.xlu0 %1782
    %v1785 = vadd.f32 %v1775, %v1783
    %v1786 = vtanh.pop %v1785
    %1788 = vrot.lane.b32.xlu0 %v1786, 64
    %v1789 = vpop.permute.xlu0 %1788
    %v1791 = vmul.f32 %v1773, %v1789
    %s1792 = smul.u32 5, 2
    %s1793 = smul.addr %s1792, 8
    %s1794 = scalar_lea.vmem [#allocation2], %s1793
    %v1795 = vld [vmem:[%s1794] sm:$0xff]
    %v1796 = vld [vmem:[%s1794 + $0x8] sm:$0xff]
    %1797 = vmatprep.subr.mxu0 %v326
    %1798 = vmatpush1.msra.mxu0 %v325
    %1799 = vmatprep.subr.mxu0 %v328
    %1800 = vmatpush1.msra.mxu0 %v327
    %1801 = vmatprep.subr.mxu0 %v330
    %1802 = vmatpush1.msra.mxu0 %v329
    %1803 = vmatprep.subr.mxu0 %v332
    %1804 = vmatpush1.msra.mxu0 %v331
    %1805 = vmatprep.subr.mxu0 %v334
    %1806 = vmatpush1.msra.mxu0 %v333
    %1807 = vmatprep.subr.mxu0 %v336
    %1808 = vmatpush1.msra.mxu0 %v335
    %1809 = vmatprep.subr.mxu0 %v338
    %1810 = vmatpush1.msra.mxu0 %v337
    %1811 = vmatprep.subr.mxu0 %v340
    %1812 = vmatpush1.msra.mxu0 %v339
    %1813 = vmatprep.subr.mxu0 0.0
    %1814 = vmatpush1.msra.mxu0 0.0
    %1815 = vmatprep.subr.mxu0 0.0
    %1816 = vmatpush1.msra.mxu0 0.0
    %1817 = vmatprep.subr.mxu0 0.0
    %1818 = vmatpush1.msra.mxu0 0.0
    %1819 = vmatprep.subr.mxu0 0.0
    %1820 = vmatpush1.msra.mxu0 0.0
    %1821 = vmatprep.subr.mxu0 0.0
    %1822 = vmatpush1.msra.mxu0 0.0
    %1823 = vmatprep.subr.mxu0 0.0
    %1824 = vmatpush1.msra.mxu0 0.0
    %1825 = vmatprep.subr.mxu0 0.0
    %1826 = vmatpush1.msra.mxu0 0.0
    %1827 = vmatprep.subr.mxu0 0.0
    %1828 = vmatpush1.msra.mxu0 0.0
    %1829 = vmatprep.subr.mxu0 0.0
    %1830 = vmatpush1.msra.mxu0 0.0
    %1831 = vmatprep.subr.mxu0 0.0
    %1832 = vmatpush1.msra.mxu0 0.0
    %1833 = vmatprep.subr.mxu0 0.0
    %1834 = vmatpush1.msra.mxu0 0.0
    %1835 = vmatprep.subr.mxu0 0.0
    %1836 = vmatpush1.msra.mxu0 0.0
    %1837 = vmatprep.subr.mxu0 0.0
    %1838 = vmatpush1.msra.mxu0 0.0
    %1839 = vmatprep.subr.mxu0 0.0
    %1840 = vmatpush1.msra.mxu0 0.0
    %1841 = vmatprep.subr.mxu0 0.0
    %1842 = vmatpush1.msra.mxu0 0.0
    %1843 = vmatprep.subr.mxu0 0.0
    %1844 = vmatpush1.msra.mxu0 0.0
    %1845 = vmatprep.subr.mxu0 0.0
    %1846 = vmatpush1.msra.mxu0 0.0
    %1847 = vmatprep.subr.mxu0 0.0
    %1848 = vmatpush1.msra.mxu0 0.0
    %1849 = vmatprep.subr.mxu0 0.0
    %1850 = vmatpush1.msra.mxu0 0.0
    %1851 = vmatprep.subr.mxu0 0.0
    %1852 = vmatpush1.msra.mxu0 0.0
    %1853 = vmatprep.subr.mxu0 0.0
    %1854 = vmatpush1.msra.mxu0 0.0
    %1855 = vmatprep.subr.mxu0 0.0
    %1856 = vmatpush1.msra.mxu0 0.0
    %1857 = vmatprep.subr.mxu0 0.0
    %1858 = vmatpush1.msra.mxu0 0.0
    %1859 = vmatprep.subr.mxu0 0.0
    %1860 = vmatpush1.msra.mxu0 0.0
    %1861 = vmatprep.mubr.f32.mxu0 0.0
    %1862 = vmatmul.mubr.f32.gmra.mrb[0].mxu0 %v1687
    %v1863 = vpop.f32.mrb[0].mxu0
    %v1864 = vadd.f32 0.0, %v1863
    %v1865 = vpop.f32.mrb[0].mxu0
    %v1866 = vadd.f32 0.0, %v1865
    %1867 = vdwg.mxu0
    %v1868 = vadd.f32 %v1795, %v1864
    %v1869 = vadd.f32 %v1796, %v1866
    %v1870 = vxor.u32 %v1868, 2147483648
    %v1871 = vxor.u32 %v1869, 2147483648
    %v1872 = vmul.f32 %v1870, 1.442695
    %v1873 = vpow.pop %v1872
    %v1874 = vmul.f32 %v1871, 1.442695
    %v1875 = vpow.pop %v1874
    %v1876 = vadd.f32 %v1873, 1.0
    %v1877 = vadd.f32 %v1875, 1.0
    %v1878 = vrcp.pop %v1876
    %v1879 = vmul.f32 1.0, %v1878
    %v1880 = vrcp.pop %v1877
    %v1881 = vmul.f32 1.0, %v1880
    %v1882 = vtanh.pop %v1869
    %v1883 = vmul.f32 %v1879, %v1605
    %1885 = vrot.lane.b32.xlu0 %v1882, 64
    %v1886 = vpop.permute.xlu0 %1885
    %v1888 = vmul.f32 %v1879, %v1886
    %1890 = vrot.lane.b32.xlu0 %v1888, 64
    %v1891 = vpop.permute.xlu0 %1890
    %v1893 = vadd.f32 %v1883, %v1891
    %v1894 = vtanh.pop %v1893
    %1896 = vrot.lane.b32.xlu0 %v1894, 64
    %v1897 = vpop.permute.xlu0 %1896
    %v1899 = vmul.f32 %v1881, %v1897
    %v1901 = vsel %vm138, %v1791, 0
    %1903 = vmatprep.subr.mxu0 %v305
    %1904 = vmatpush1.msra.mxu0 %v304
    %1905 = vmatprep.subr.mxu0 %v307
    %1906 = vmatpush1.msra.mxu0 %v306
    %1907 = vmatprep.subr.mxu0 %v309
    %1908 = vmatpush1.msra.mxu0 %v308
    %1909 = vmatprep.subr.mxu0 %v311
    %1910 = vmatpush1.msra.mxu0 %v310
    %1911 = vmatprep.subr.mxu0 %v313
    %1912 = vmatpush1.msra.mxu0 %v312
    %1913 = vmatprep.subr.mxu0 %v315
    %1914 = vmatpush1.msra.mxu0 %v314
    %1915 = vmatprep.subr.mxu0 %v317
    %1916 = vmatpush1.msra.mxu0 %v316
    %1917 = vmatprep.subr.mxu0 %v319
    %1918 = vmatpush1.msra.mxu0 %v318
    %1919 = vmatprep.subr.mxu0 0.0
    %1920 = vmatpush1.msra.mxu0 0.0
    %1921 = vmatprep.subr.mxu0 0.0
    %1922 = vmatpush1.msra.mxu0 0.0
    %1923 = vmatprep.subr.mxu0 0.0
    %1924 = vmatpush1.msra.mxu0 0.0
    %1925 = vmatprep.subr.mxu0 0.0
    %1926 = vmatpush1.msra.mxu0 0.0
    %1927 = vmatprep.subr.mxu0 0.0
    %1928 = vmatpush1.msra.mxu0 0.0
    %1929 = vmatprep.subr.mxu0 0.0
    %1930 = vmatpush1.msra.mxu0 0.0
    %1931 = vmatprep.subr.mxu0 0.0
    %1932 = vmatpush1.msra.mxu0 0.0
    %1933 = vmatprep.subr.mxu0 0.0
    %1934 = vmatpush1.msra.mxu0 0.0
    %1935 = vmatprep.subr.mxu0 0.0
    %1936 = vmatpush1.msra.mxu0 0.0
    %1937 = vmatprep.subr.mxu0 0.0
    %1938 = vmatpush1.msra.mxu0 0.0
    %1939 = vmatprep.subr.mxu0 0.0
    %1940 = vmatpush1.msra.mxu0 0.0
    %1941 = vmatprep.subr.mxu0 0.0
    %1942 = vmatpush1.msra.mxu0 0.0
    %1943 = vmatprep.subr.mxu0 0.0
    %1944 = vmatpush1.msra.mxu0 0.0
    %1945 = vmatprep.subr.mxu0 0.0
    %1946 = vmatpush1.msra.mxu0 0.0
    %1947 = vmatprep.subr.mxu0 0.0
    %1948 = vmatpush1.msra.mxu0 0.0
    %1949 = vmatprep.subr.mxu0 0.0
    %1950 = vmatpush1.msra.mxu0 0.0
    %1951 = vmatprep.subr.mxu0 0.0
    %1952 = vmatpush1.msra.mxu0 0.0
    %1953 = vmatprep.subr.mxu0 0.0
    %1954 = vmatpush1.msra.mxu0 0.0
    %1955 = vmatprep.subr.mxu0 0.0
    %1956 = vmatpush1.msra.mxu0 0.0
    %1957 = vmatprep.subr.mxu0 0.0
    %1958 = vmatpush1.msra.mxu0 0.0
    %1959 = vmatprep.subr.mxu0 0.0
    %1960 = vmatpush1.msra.mxu0 0.0
    %1961 = vmatprep.subr.mxu0 0.0
    %1962 = vmatpush1.msra.mxu0 0.0
    %1963 = vmatprep.subr.mxu0 0.0
    %1964 = vmatpush1.msra.mxu0 0.0
    %1965 = vmatprep.subr.mxu0 0.0
    %1966 = vmatpush1.msra.mxu0 0.0
    %1967 = vmatprep.mubr.f32.mxu0 0.0
    %1968 = vmatmul.mubr.f32.gmra.mrb[0].mxu0 %v1901
    %v1969 = vpop.f32.mrb[0].mxu0
    %v1970 = vadd.f32 %v297, %v1969
    %v1971 = vpop.f32.mrb[0].mxu0
    %v1972 = vadd.f32 %v301, %v1971
    %1973 = vdwg.mxu0
    %v1975 = vsel %vm138, %v1899, 0
    %1977 = vmatprep.subr.mxu0 %v519
    %1978 = vmatpush1.msra.mxu0 %v518
    %1979 = vmatprep.subr.mxu0 %v521
    %1980 = vmatpush1.msra.mxu0 %v520
    %1981 = vmatprep.subr.mxu0 %v523
    %1982 = vmatpush1.msra.mxu0 %v522
    %1983 = vmatprep.subr.mxu0 %v525
    %1984 = vmatpush1.msra.mxu0 %v524
    %1985 = vmatprep.subr.mxu0 %v527
    %1986 = vmatpush1.msra.mxu0 %v526
    %1987 = vmatprep.subr.mxu0 %v529
    %1988 = vmatpush1.msra.mxu0 %v528
    %1989 = vmatprep.subr.mxu0 %v531
    %1990 = vmatpush1.msra.mxu0 %v530
    %1991 = vmatprep.subr.mxu0 %v533
    %1992 = vmatpush1.msra.mxu0 %v532
    %1993 = vmatprep.subr.mxu0 0.0
    %1994 = vmatpush1.msra.mxu0 0.0
    %1995 = vmatprep.subr.mxu0 0.0
    %1996 = vmatpush1.msra.mxu0 0.0
    %1997 = vmatprep.subr.mxu0 0.0
    %1998 = vmatpush1.msra.mxu0 0.0
    %1999 = vmatprep.subr.mxu0 0.0
    %2000 = vmatpush1.msra.mxu0 0.0
    %2001 = vmatprep.subr.mxu0 0.0
    %2002 = vmatpush1.msra.mxu0 0.0
    %2003 = vmatprep.subr.mxu0 0.0
    %2004 = vmatpush1.msra.mxu0 0.0
    %2005 = vmatprep.subr.mxu0 0.0
    %2006 = vmatpush1.msra.mxu0 0.0
    %2007 = vmatprep.subr.mxu0 0.0
    %2008 = vmatpush1.msra.mxu0 0.0
    %2009 = vmatprep.subr.mxu0 0.0
    %2010 = vmatpush1.msra.mxu0 0.0
    %2011 = vmatprep.subr.mxu0 0.0
    %2012 = vmatpush1.msra.mxu0 0.0
    %2013 = vmatprep.subr.mxu0 0.0
    %2014 = vmatpush1.msra.mxu0 0.0
    %2015 = vmatprep.subr.mxu0 0.0
    %2016 = vmatpush1.msra.mxu0 0.0
    %2017 = vmatprep.subr.mxu0 0.0
    %2018 = vmatpush1.msra.mxu0 0.0
    %2019 = vmatprep.subr.mxu0 0.0
    %2020 = vmatpush1.msra.mxu0 0.0
    %2021 = vmatprep.subr.mxu0 0.0
    %2022 = vmatpush1.msra.mxu0 0.0
    %2023 = vmatprep.subr.mxu0 0.0
    %2024 = vmatpush1.msra.mxu0 0.0
    %2025 = vmatprep.subr.mxu0 0.0
    %2026 = vmatpush1.msra.mxu0 0.0
    %2027 = vmatprep.subr.mxu0 0.0
    %2028 = vmatpush1.msra.mxu0 0.0
    %2029 = vmatprep.subr.mxu0 0.0
    %2030 = vmatpush1.msra.mxu0 0.0
    %2031 = vmatprep.subr.mxu0 0.0
    %2032 = vmatpush1.msra.mxu0 0.0
    %2033 = vmatprep.subr.mxu0 0.0
    %2034 = vmatpush1.msra.mxu0 0.0
    %2035 = vmatprep.subr.mxu0 0.0
    %2036 = vmatpush1.msra.mxu0 0.0
    %2037 = vmatprep.subr.mxu0 0.0
    %2038 = vmatpush1.msra.mxu0 0.0
    %2039 = vmatprep.subr.mxu0 0.0
    %2040 = vmatpush1.msra.mxu0 0.0
    %2041 = vmatprep.mubr.f32.mxu0 0.0
    %2042 = vmatmul.mubr.f32.gmra.mrb[0].mxu0 %v1975
    %v2043 = vpop.f32.mrb[0].mxu0
    %v2044 = vadd.f32 0.0, %v2043
    %v2045 = vpop.f32.mrb[0].mxu0
    %v2046 = vadd.f32 0.0, %v2045
    %2047 = vdwg.mxu0
    %v2048 = vadd.f32 %v1970, %v2044
    %v2049 = vadd.f32 %v1972, %v2046
    %v2050 = vxor.u32 %v2048, 2147483648
    %v2051 = vxor.u32 %v2049, 2147483648
    %v2052 = vmul.f32 %v2050, 1.442695
    %v2053 = vpow.pop %v2052
    %v2054 = vmul.f32 %v2051, 1.442695
    %v2055 = vpow.pop %v2054
    %v2056 = vadd.f32 %v2053, 1.0
    %v2057 = vadd.f32 %v2055, 1.0
    %v2058 = vrcp.pop %v2056
    %v2059 = vmul.f32 1.0, %v2058
    %v2060 = vrcp.pop %v2057
    %v2061 = vmul.f32 1.0, %v2060
    %v2062 = vtanh.pop %v2049
    %v2063 = vmul.f32 %v2059, %v1785
    %2065 = vrot.lane.b32.xlu0 %v2062, 64
    %v2066 = vpop.permute.xlu0 %2065
    %v2068 = vmul.f32 %v2059, %v2066
    %2070 = vrot.lane.b32.xlu0 %v2068, 64
    %v2071 = vpop.permute.xlu0 %2070
    %v2073 = vadd.f32 %v2063, %v2071
    %v2074 = vtanh.pop %v2073
    %2076 = vrot.lane.b32.xlu0 %v2074, 64
    %v2077 = vpop.permute.xlu0 %2076
    %v2079 = vmul.f32 %v2061, %v2077
    %s2080 = smul.u32 6, 2
    %s2081 = smul.addr %s2080, 8
    %s2082 = scalar_lea.vmem [#allocation2], %s2081
    %v2083 = vld [vmem:[%s2082] sm:$0xff]
    %v2084 = vld [vmem:[%s2082 + $0x8] sm:$0xff]
    %2085 = vmatprep.subr.mxu0 %v326
    %2086 = vmatpush1.msra.mxu0 %v325
    %2087 = vmatprep.subr.mxu0 %v328
    %2088 = vmatpush1.msra.mxu0 %v327
    %2089 = vmatprep.subr.mxu0 %v330
    %2090 = vmatpush1.msra.mxu0 %v329
    %2091 = vmatprep.subr.mxu0 %v332
    %2092 = vmatpush1.msra.mxu0 %v331
    %2093 = vmatprep.subr.mxu0 %v334
    %2094 = vmatpush1.msra.mxu0 %v333
    %2095 = vmatprep.subr.mxu0 %v336
    %2096 = vmatpush1.msra.mxu0 %v335
    %2097 = vmatprep.subr.mxu0 %v338
    %2098 = vmatpush1.msra.mxu0 %v337
    %2099 = vmatprep.subr.mxu0 %v340
    %2100 = vmatpush1.msra.mxu0 %v339
    %2101 = vmatprep.subr.mxu0 0.0
    %2102 = vmatpush1.msra.mxu0 0.0
    %2103 = vmatprep.subr.mxu0 0.0
    %2104 = vmatpush1.msra.mxu0 0.0
    %2105 = vmatprep.subr.mxu0 0.0
    %2106 = vmatpush1.msra.mxu0 0.0
    %2107 = vmatprep.subr.mxu0 0.0
    %2108 = vmatpush1.msra.mxu0 0.0
    %2109 = vmatprep.subr.mxu0 0.0
    %2110 = vmatpush1.msra.mxu0 0.0
    %2111 = vmatprep.subr.mxu0 0.0
    %2112 = vmatpush1.msra.mxu0 0.0
    %2113 = vmatprep.subr.mxu0 0.0
    %2114 = vmatpush1.msra.mxu0 0.0
    %2115 = vmatprep.subr.mxu0 0.0
    %2116 = vmatpush1.msra.mxu0 0.0
    %2117 = vmatprep.subr.mxu0 0.0
    %2118 = vmatpush1.msra.mxu0 0.0
    %2119 = vmatprep.subr.mxu0 0.0
    %2120 = vmatpush1.msra.mxu0 0.0
    %2121 = vmatprep.subr.mxu0 0.0
    %2122 = vmatpush1.msra.mxu0 0.0
    %2123 = vmatprep.subr.mxu0 0.0
    %2124 = vmatpush1.msra.mxu0 0.0
    %2125 = vmatprep.subr.mxu0 0.0
    %2126 = vmatpush1.msra.mxu0 0.0
    %2127 = vmatprep.subr.mxu0 0.0
    %2128 = vmatpush1.msra.mxu0 0.0
    %2129 = vmatprep.subr.mxu0 0.0
    %2130 = vmatpush1.msra.mxu0 0.0
    %2131 = vmatprep.subr.mxu0 0.0
    %2132 = vmatpush1.msra.mxu0 0.0
    %2133 = vmatprep.subr.mxu0 0.0
    %2134 = vmatpush1.msra.mxu0 0.0
    %2135 = vmatprep.subr.mxu0 0.0
    %2136 = vmatpush1.msra.mxu0 0.0
    %2137 = vmatprep.subr.mxu0 0.0
    %2138 = vmatpush1.msra.mxu0 0.0
    %2139 = vmatprep.subr.mxu0 0.0
    %2140 = vmatpush1.msra.mxu0 0.0
    %2141 = vmatprep.subr.mxu0 0.0
    %2142 = vmatpush1.msra.mxu0 0.0
    %2143 = vmatprep.subr.mxu0 0.0
    %2144 = vmatpush1.msra.mxu0 0.0
    %2145 = vmatprep.subr.mxu0 0.0
    %2146 = vmatpush1.msra.mxu0 0.0
    %2147 = vmatprep.subr.mxu0 0.0
    %2148 = vmatpush1.msra.mxu0 0.0
    %2149 = vmatprep.mubr.f32.mxu0 0.0
    %2150 = vmatmul.mubr.f32.gmra.mrb[0].mxu0 %v1975
    %v2151 = vpop.f32.mrb[0].mxu0
    %v2152 = vadd.f32 0.0, %v2151
    %v2153 = vpop.f32.mrb[0].mxu0
    %v2154 = vadd.f32 0.0, %v2153
    %2155 = vdwg.mxu0
    %v2156 = vadd.f32 %v2083, %v2152
    %v2157 = vadd.f32 %v2084, %v2154
    %v2158 = vxor.u32 %v2156, 2147483648
    %v2159 = vxor.u32 %v2157, 2147483648
    %v2160 = vmul.f32 %v2158, 1.442695
    %v2161 = vpow.pop %v2160
    %v2162 = vmul.f32 %v2159, 1.442695
    %v2163 = vpow.pop %v2162
    %v2164 = vadd.f32 %v2161, 1.0
    %v2165 = vadd.f32 %v2163, 1.0
    %v2166 = vrcp.pop %v2164
    %v2167 = vmul.f32 1.0, %v2166
    %v2168 = vrcp.pop %v2165
    %v2169 = vmul.f32 1.0, %v2168
    %v2170 = vtanh.pop %v2157
    %v2171 = vmul.f32 %v2167, %v1893
    %2173 = vrot.lane.b32.xlu0 %v2170, 64
    %v2174 = vpop.permute.xlu0 %2173
    %v2176 = vmul.f32 %v2167, %v2174
    %2178 = vrot.lane.b32.xlu0 %v2176, 64
    %v2179 = vpop.permute.xlu0 %2178
    %v2181 = vadd.f32 %v2171, %v2179
    %v2182 = vtanh.pop %v2181
    %2184 = vrot.lane.b32.xlu0 %v2182, 64
    %v2185 = vpop.permute.xlu0 %2184
    %v2187 = vmul.f32 %v2169, %v2185
    %v2189 = vsel %vm138, %v2079, 0
    %2191 = vmatprep.subr.mxu0 %v305
    %2192 = vmatpush1.msra.mxu0 %v304
    %2193 = vmatprep.subr.mxu0 %v307
    %2194 = vmatpush1.msra.mxu0 %v306
    %2195 = vmatprep.subr.mxu0 %v309
    %2196 = vmatpush1.msra.mxu0 %v308
    %2197 = vmatprep.subr.mxu0 %v311
    %2198 = vmatpush1.msra.mxu0 %v310
    %2199 = vmatprep.subr.mxu0 %v313
    %2200 = vmatpush1.msra.mxu0 %v312
    %2201 = vmatprep.subr.mxu0 %v315
    %2202 = vmatpush1.msra.mxu0 %v314
    %2203 = vmatprep.subr.mxu0 %v317
    %2204 = vmatpush1.msra.mxu0 %v316
    %2205 = vmatprep.subr.mxu0 %v319
    %2206 = vmatpush1.msra.mxu0 %v318
    %2207 = vmatprep.subr.mxu0 0.0
    %2208 = vmatpush1.msra.mxu0 0.0
    %2209 = vmatprep.subr.mxu0 0.0
    %2210 = vmatpush1.msra.mxu0 0.0
    %2211 = vmatprep.subr.mxu0 0.0
    %2212 = vmatpush1.msra.mxu0 0.0
    %2213 = vmatprep.subr.mxu0 0.0
    %2214 = vmatpush1.msra.mxu0 0.0
    %2215 = vmatprep.subr.mxu0 0.0
    %2216 = vmatpush1.msra.mxu0 0.0
    %2217 = vmatprep.subr.mxu0 0.0
    %2218 = vmatpush1.msra.mxu0 0.0
    %2219 = vmatprep.subr.mxu0 0.0
    %2220 = vmatpush1.msra.mxu0 0.0
    %2221 = vmatprep.subr.mxu0 0.0
    %2222 = vmatpush1.msra.mxu0 0.0
    %2223 = vmatprep.subr.mxu0 0.0
    %2224 = vmatpush1.msra.mxu0 0.0
    %2225 = vmatprep.subr.mxu0 0.0
    %2226 = vmatpush1.msra.mxu0 0.0
    %2227 = vmatprep.subr.mxu0 0.0
    %2228 = vmatpush1.msra.mxu0 0.0
    %2229 = vmatprep.subr.mxu0 0.0
    %2230 = vmatpush1.msra.mxu0 0.0
    %2231 = vmatprep.subr.mxu0 0.0
    %2232 = vmatpush1.msra.mxu0 0.0
    %2233 = vmatprep.subr.mxu0 0.0
    %2234 = vmatpush1.msra.mxu0 0.0
    %2235 = vmatprep.subr.mxu0 0.0
    %2236 = vmatpush1.msra.mxu0 0.0
    %2237 = vmatprep.subr.mxu0 0.0
    %2238 = vmatpush1.msra.mxu0 0.0
    %2239 = vmatprep.subr.mxu0 0.0
    %2240 = vmatpush1.msra.mxu0 0.0
    %2241 = vmatprep.subr.mxu0 0.0
    %2242 = vmatpush1.msra.mxu0 0.0
    %2243 = vmatprep.subr.mxu0 0.0
    %2244 = vmatpush1.msra.mxu0 0.0
    %2245 = vmatprep.subr.mxu0 0.0
    %2246 = vmatpush1.msra.mxu0 0.0
    %2247 = vmatprep.subr.mxu0 0.0
    %2248 = vmatpush1.msra.mxu0 0.0
    %2249 = vmatprep.subr.mxu0 0.0
    %2250 = vmatpush1.msra.mxu0 0.0
    %2251 = vmatprep.subr.mxu0 0.0
    %2252 = vmatpush1.msra.mxu0 0.0
    %2253 = vmatprep.subr.mxu0 0.0
    %2254 = vmatpush1.msra.mxu0 0.0
    %2255 = vmatprep.mubr.f32.mxu0 0.0
    %2256 = vmatmul.mubr.f32.gmra.mrb[0].mxu0 %v2189
    %v2257 = vpop.f32.mrb[0].mxu0
    %v2258 = vadd.f32 %v297, %v2257
    %v2259 = vpop.f32.mrb[0].mxu0
    %v2260 = vadd.f32 %v301, %v2259
    %2261 = vdwg.mxu0
    %v2263 = vsel %vm138, %v2187, 0
    %2265 = vmatprep.subr.mxu0 %v519
    %2266 = vmatpush1.msra.mxu0 %v518
    %2267 = vmatprep.subr.mxu0 %v521
    %2268 = vmatpush1.msra.mxu0 %v520
    %2269 = vmatprep.subr.mxu0 %v523
    %2270 = vmatpush1.msra.mxu0 %v522
    %2271 = vmatprep.subr.mxu0 %v525
    %2272 = vmatpush1.msra.mxu0 %v524
    %2273 = vmatprep.subr.mxu0 %v527
    %2274 = vmatpush1.msra.mxu0 %v526
    %2275 = vmatprep.subr.mxu0 %v529
    %2276 = vmatpush1.msra.mxu0 %v528
    %2277 = vmatprep.subr.mxu0 %v531
    %2278 = vmatpush1.msra.mxu0 %v530
    %2279 = vmatprep.subr.mxu0 %v533
    %2280 = vmatpush1.msra.mxu0 %v532
    %2281 = vmatprep.subr.mxu0 0.0
    %2282 = vmatpush1.msra.mxu0 0.0
    %2283 = vmatprep.subr.mxu0 0.0
    %2284 = vmatpush1.msra.mxu0 0.0
    %2285 = vmatprep.subr.mxu0 0.0
    %2286 = vmatpush1.msra.mxu0 0.0
    %2287 = vmatprep.subr.mxu0 0.0
    %2288 = vmatpush1.msra.mxu0 0.0
    %2289 = vmatprep.subr.mxu0 0.0
    %2290 = vmatpush1.msra.mxu0 0.0
    %2291 = vmatprep.subr.mxu0 0.0
    %2292 = vmatpush1.msra.mxu0 0.0
    %2293 = vmatprep.subr.mxu0 0.0
    %2294 = vmatpush1.msra.mxu0 0.0
    %2295 = vmatprep.subr.mxu0 0.0
    %2296 = vmatpush1.msra.mxu0 0.0
    %2297 = vmatprep.subr.mxu0 0.0
    %2298 = vmatpush1.msra.mxu0 0.0
    %2299 = vmatprep.subr.mxu0 0.0
    %2300 = vmatpush1.msra.mxu0 0.0
    %2301 = vmatprep.subr.mxu0 0.0
    %2302 = vmatpush1.msra.mxu0 0.0
    %2303 = vmatprep.subr.mxu0 0.0
    %2304 = vmatpush1.msra.mxu0 0.0
    %2305 = vmatprep.subr.mxu0 0.0
    %2306 = vmatpush1.msra.mxu0 0.0
    %2307 = vmatprep.subr.mxu0 0.0
    %2308 = vmatpush1.msra.mxu0 0.0
    %2309 = vmatprep.subr.mxu0 0.0
    %2310 = vmatpush1.msra.mxu0 0.0
    %2311 = vmatprep.subr.mxu0 0.0
    %2312 = vmatpush1.msra.mxu0 0.0
    %2313 = vmatprep.subr.mxu0 0.0
    %2314 = vmatpush1.msra.mxu0 0.0
    %2315 = vmatprep.subr.mxu0 0.0
    %2316 = vmatpush1.msra.mxu0 0.0
    %2317 = vmatprep.subr.mxu0 0.0
    %2318 = vmatpush1.msra.mxu0 0.0
    %2319 = vmatprep.subr.mxu0 0.0
    %2320 = vmatpush1.msra.mxu0 0.0
    %2321 = vmatprep.subr.mxu0 0.0
    %2322 = vmatpush1.msra.mxu0 0.0
    %2323 = vmatprep.subr.mxu0 0.0
    %2324 = vmatpush1.msra.mxu0 0.0
    %2325 = vmatprep.subr.mxu0 0.0
    %2326 = vmatpush1.msra.mxu0 0.0
    %2327 = vmatprep.subr.mxu0 0.0
    %2328 = vmatpush1.msra.mxu0 0.0
    %2329 = vmatprep.mubr.f32.mxu0 0.0
    %2330 = vmatmul.mubr.f32.gmra.mrb[0].mxu0 %v2263
    %v2331 = vpop.f32.mrb[0].mxu0
    %v2332 = vadd.f32 0.0, %v2331
    %v2333 = vpop.f32.mrb[0].mxu0
    %v2334 = vadd.f32 0.0, %v2333
    %2335 = vdwg.mxu0
    %v2336 = vadd.f32 %v2258, %v2332
    %v2337 = vadd.f32 %v2260, %v2334
    %v2338 = vxor.u32 %v2336, 2147483648
    %v2339 = vxor.u32 %v2337, 2147483648
    %v2340 = vmul.f32 %v2338, 1.442695
    %v2341 = vpow.pop %v2340
    %v2342 = vmul.f32 %v2339, 1.442695
    %v2343 = vpow.pop %v2342
    %v2344 = vadd.f32 %v2341, 1.0
    %v2345 = vadd.f32 %v2343, 1.0
    %v2346 = vrcp.pop %v2344
    %v2347 = vmul.f32 1.0, %v2346
    %v2348 = vrcp.pop %v2345
    %v2349 = vmul.f32 1.0, %v2348
    %v2350 = vtanh.pop %v2337
    %v2351 = vmul.f32 %v2347, %v2073
    %2353 = vrot.lane.b32.xlu0 %v2350, 64
    %v2354 = vpop.permute.xlu0 %2353
    %v2356 = vmul.f32 %v2347, %v2354
    %2358 = vrot.lane.b32.xlu0 %v2356, 64
    %v2359 = vpop.permute.xlu0 %2358
    %v2361 = vadd.f32 %v2351, %v2359
    %v2362 = vtanh.pop %v2361
    %2364 = vrot.lane.b32.xlu0 %v2362, 64
    %v2365 = vpop.permute.xlu0 %2364
    %v2367 = vmul.f32 %v2349, %v2365
    %s2368 = smul.u32 7, 2
    %s2369 = smul.addr %s2368, 8
    %s2370 = scalar_lea.vmem [#allocation2], %s2369
    %v2371 = vld [vmem:[%s2370] sm:$0xff]
    %v2372 = vld [vmem:[%s2370 + $0x8] sm:$0xff]
    %2373 = vmatprep.subr.mxu0 %v326
    %2374 = vmatpush1.msra.mxu0 %v325
    %2375 = vmatprep.subr.mxu0 %v328
    %2376 = vmatpush1.msra.mxu0 %v327
    %2377 = vmatprep.subr.mxu0 %v330
    %2378 = vmatpush1.msra.mxu0 %v329
    %2379 = vmatprep.subr.mxu0 %v332
    %2380 = vmatpush1.msra.mxu0 %v331
    %2381 = vmatprep.subr.mxu0 %v334
    %2382 = vmatpush1.msra.mxu0 %v333
    %2383 = vmatprep.subr.mxu0 %v336
    %2384 = vmatpush1.msra.mxu0 %v335
    %2385 = vmatprep.subr.mxu0 %v338
    %2386 = vmatpush1.msra.mxu0 %v337
    %2387 = vmatprep.subr.mxu0 %v340
    %2388 = vmatpush1.msra.mxu0 %v339
    %2389 = vmatprep.subr.mxu0 0.0
    %2390 = vmatpush1.msra.mxu0 0.0
    %2391 = vmatprep.subr.mxu0 0.0
    %2392 = vmatpush1.msra.mxu0 0.0
    %2393 = vmatprep.subr.mxu0 0.0
    %2394 = vmatpush1.msra.mxu0 0.0
    %2395 = vmatprep.subr.mxu0 0.0
    %2396 = vmatpush1.msra.mxu0 0.0
    %2397 = vmatprep.subr.mxu0 0.0
    %2398 = vmatpush1.msra.mxu0 0.0
    %2399 = vmatprep.subr.mxu0 0.0
    %2400 = vmatpush1.msra.mxu0 0.0
    %2401 = vmatprep.subr.mxu0 0.0
    %2402 = vmatpush1.msra.mxu0 0.0
    %2403 = vmatprep.subr.mxu0 0.0
    %2404 = vmatpush1.msra.mxu0 0.0
    %2405 = vmatprep.subr.mxu0 0.0
    %2406 = vmatpush1.msra.mxu0 0.0
    %2407 = vmatprep.subr.mxu0 0.0
    %2408 = vmatpush1.msra.mxu0 0.0
    %2409 = vmatprep.subr.mxu0 0.0
    %2410 = vmatpush1.msra.mxu0 0.0
    %2411 = vmatprep.subr.mxu0 0.0
    %2412 = vmatpush1.msra.mxu0 0.0
    %2413 = vmatprep.subr.mxu0 0.0
    %2414 = vmatpush1.msra.mxu0 0.0
    %2415 = vmatprep.subr.mxu0 0.0
    %2416 = vmatpush1.msra.mxu0 0.0
    %2417 = vmatprep.subr.mxu0 0.0
    %2418 = vmatpush1.msra.mxu0 0.0
    %2419 = vmatprep.subr.mxu0 0.0
    %2420 = vmatpush1.msra.mxu0 0.0
    %2421 = vmatprep.subr.mxu0 0.0
    %2422 = vmatpush1.msra.mxu0 0.0
    %2423 = vmatprep.subr.mxu0 0.0
    %2424 = vmatpush1.msra.mxu0 0.0
    %2425 = vmatprep.subr.mxu0 0.0
    %2426 = vmatpush1.msra.mxu0 0.0
    %2427 = vmatprep.subr.mxu0 0.0
    %2428 = vmatpush1.msra.mxu0 0.0
    %2429 = vmatprep.subr.mxu0 0.0
    %2430 = vmatpush1.msra.mxu0 0.0
    %2431 = vmatprep.subr.mxu0 0.0
    %2432 = vmatpush1.msra.mxu0 0.0
    %2433 = vmatprep.subr.mxu0 0.0
    %2434 = vmatpush1.msra.mxu0 0.0
    %2435 = vmatprep.subr.mxu0 0.0
    %2436 = vmatpush1.msra.mxu0 0.0
    %2437 = vmatprep.mubr.f32.mxu0 0.0
    %2438 = vmatmul.mubr.f32.gmra.mrb[0].mxu0 %v2263
    %v2439 = vpop.f32.mrb[0].mxu0
    %v2440 = vadd.f32 0.0, %v2439
    %v2441 = vpop.f32.mrb[0].mxu0
    %v2442 = vadd.f32 0.0, %v2441
    %2443 = vdwg.mxu0
    %v2444 = vadd.f32 %v2371, %v2440
    %v2445 = vadd.f32 %v2372, %v2442
    %v2446 = vxor.u32 %v2444, 2147483648
    %v2447 = vxor.u32 %v2445, 2147483648
    %v2448 = vmul.f32 %v2446, 1.442695
    %v2449 = vpow.pop %v2448
    %v2450 = vmul.f32 %v2447, 1.442695
    %v2451 = vpow.pop %v2450
    %v2452 = vadd.f32 %v2449, 1.0
    %v2453 = vadd.f32 %v2451, 1.0
    %v2454 = vrcp.pop %v2452
    %v2455 = vmul.f32 1.0, %v2454
    %v2456 = vrcp.pop %v2453
    %v2457 = vmul.f32 1.0, %v2456
    %v2458 = vtanh.pop %v2445
    %v2459 = vmul.f32 %v2455, %v2181
    %2461 = vrot.lane.b32.xlu0 %v2458, 64
    %v2462 = vpop.permute.xlu0 %2461
    %v2464 = vmul.f32 %v2455, %v2462
    %2466 = vrot.lane.b32.xlu0 %v2464, 64
    %v2467 = vpop.permute.xlu0 %2466
    %v2469 = vadd.f32 %v2459, %v2467
    %v2470 = vtanh.pop %v2469
    %2472 = vrot.lane.b32.xlu0 %v2470, 64
    %v2473 = vpop.permute.xlu0 %2472
    %v2475 = vmul.f32 %v2457, %v2473
    %v2477 = vsel %vm138, %v2367, 0
    %2479 = vmatprep.subr.mxu0 %v305
    %2480 = vmatpush1.msra.mxu0 %v304
    %2481 = vmatprep.subr.mxu0 %v307
    %2482 = vmatpush1.msra.mxu0 %v306
    %2483 = vmatprep.subr.mxu0 %v309
    %2484 = vmatpush1.msra.mxu0 %v308
    %2485 = vmatprep.subr.mxu0 %v311
    %2486 = vmatpush1.msra.mxu0 %v310
    %2487 = vmatprep.subr.mxu0 %v313
    %2488 = vmatpush1.msra.mxu0 %v312
    %2489 = vmatprep.subr.mxu0 %v315
    %2490 = vmatpush1.msra.mxu0 %v314
    %2491 = vmatprep.subr.mxu0 %v317
    %2492 = vmatpush1.msra.mxu0 %v316
    %2493 = vmatprep.subr.mxu0 %v319
    %2494 = vmatpush1.msra.mxu0 %v318
    %2495 = vmatprep.subr.mxu0 0.0
    %2496 = vmatpush1.msra.mxu0 0.0
    %2497 = vmatprep.subr.mxu0 0.0
    %2498 = vmatpush1.msra.mxu0 0.0
    %2499 = vmatprep.subr.mxu0 0.0
    %2500 = vmatpush1.msra.mxu0 0.0
    %2501 = vmatprep.subr.mxu0 0.0
    %2502 = vmatpush1.msra.mxu0 0.0
    %2503 = vmatprep.subr.mxu0 0.0
    %2504 = vmatpush1.msra.mxu0 0.0
    %2505 = vmatprep.subr.mxu0 0.0
    %2506 = vmatpush1.msra.mxu0 0.0
    %2507 = vmatprep.subr.mxu0 0.0
    %2508 = vmatpush1.msra.mxu0 0.0
    %2509 = vmatprep.subr.mxu0 0.0
    %2510 = vmatpush1.msra.mxu0 0.0
    %2511 = vmatprep.subr.mxu0 0.0
    %2512 = vmatpush1.msra.mxu0 0.0
    %2513 = vmatprep.subr.mxu0 0.0
    %2514 = vmatpush1.msra.mxu0 0.0
    %2515 = vmatprep.subr.mxu0 0.0
    %2516 = vmatpush1.msra.mxu0 0.0
    %2517 = vmatprep.subr.mxu0 0.0
    %2518 = vmatpush1.msra.mxu0 0.0
    %2519 = vmatprep.subr.mxu0 0.0
    %2520 = vmatpush1.msra.mxu0 0.0
    %2521 = vmatprep.subr.mxu0 0.0
    %2522 = vmatpush1.msra.mxu0 0.0
    %2523 = vmatprep.subr.mxu0 0.0
    %2524 = vmatpush1.msra.mxu0 0.0
    %2525 = vmatprep.subr.mxu0 0.0
    %2526 = vmatpush1.msra.mxu0 0.0
    %2527 = vmatprep.subr.mxu0 0.0
    %2528 = vmatpush1.msra.mxu0 0.0
    %2529 = vmatprep.subr.mxu0 0.0
    %2530 = vmatpush1.msra.mxu0 0.0
    %2531 = vmatprep.subr.mxu0 0.0
    %2532 = vmatpush1.msra.mxu0 0.0
    %2533 = vmatprep.subr.mxu0 0.0
    %2534 = vmatpush1.msra.mxu0 0.0
    %2535 = vmatprep.subr.mxu0 0.0
    %2536 = vmatpush1.msra.mxu0 0.0
    %2537 = vmatprep.subr.mxu0 0.0
    %2538 = vmatpush1.msra.mxu0 0.0
    %2539 = vmatprep.subr.mxu0 0.0
    %2540 = vmatpush1.msra.mxu0 0.0
    %2541 = vmatprep.subr.mxu0 0.0
    %2542 = vmatpush1.msra.mxu0 0.0
    %2543 = vmatprep.mubr.f32.mxu0 0.0
    %2544 = vmatmul.mubr.f32.gmra.mrb[0].mxu0 %v2477
    %v2545 = vpop.f32.mrb[0].mxu0
    %v2546 = vadd.f32 %v297, %v2545
    %v2547 = vpop.f32.mrb[0].mxu0
    %v2548 = vadd.f32 %v301, %v2547
    %2549 = vdwg.mxu0
    %v2551 = vsel %vm138, %v2475, 0
    %2553 = vmatprep.subr.mxu0 %v519
    %2554 = vmatpush1.msra.mxu0 %v518
    %2555 = vmatprep.subr.mxu0 %v521
    %2556 = vmatpush1.msra.mxu0 %v520
    %2557 = vmatprep.subr.mxu0 %v523
    %2558 = vmatpush1.msra.mxu0 %v522
    %2559 = vmatprep.subr.mxu0 %v525
    %2560 = vmatpush1.msra.mxu0 %v524
    %2561 = vmatprep.subr.mxu0 %v527
    %2562 = vmatpush1.msra.mxu0 %v526
    %2563 = vmatprep.subr.mxu0 %v529
    %2564 = vmatpush1.msra.mxu0 %v528
    %2565 = vmatprep.subr.mxu0 %v531
    %2566 = vmatpush1.msra.mxu0 %v530
    %2567 = vmatprep.subr.mxu0 %v533
    %2568 = vmatpush1.msra.mxu0 %v532
    %2569 = vmatprep.subr.mxu0 0.0
    %2570 = vmatpush1.msra.mxu0 0.0
    %2571 = vmatprep.subr.mxu0 0.0
    %2572 = vmatpush1.msra.mxu0 0.0
    %2573 = vmatprep.subr.mxu0 0.0
    %2574 = vmatpush1.msra.mxu0 0.0
    %2575 = vmatprep.subr.mxu0 0.0
    %2576 = vmatpush1.msra.mxu0 0.0
    %2577 = vmatprep.subr.mxu0 0.0
    %2578 = vmatpush1.msra.mxu0 0.0
    %2579 = vmatprep.subr.mxu0 0.0
    %2580 = vmatpush1.msra.mxu0 0.0
    %2581 = vmatprep.subr.mxu0 0.0
    %2582 = vmatpush1.msra.mxu0 0.0
    %2583 = vmatprep.subr.mxu0 0.0
    %2584 = vmatpush1.msra.mxu0 0.0
    %2585 = vmatprep.subr.mxu0 0.0
    %2586 = vmatpush1.msra.mxu0 0.0
    %2587 = vmatprep.subr.mxu0 0.0
    %2588 = vmatpush1.msra.mxu0 0.0
    %2589 = vmatprep.subr.mxu0 0.0
    %2590 = vmatpush1.msra.mxu0 0.0
    %2591 = vmatprep.subr.mxu0 0.0
    %2592 = vmatpush1.msra.mxu0 0.0
    %2593 = vmatprep.subr.mxu0 0.0
    %2594 = vmatpush1.msra.mxu0 0.0
    %2595 = vmatprep.subr.mxu0 0.0
    %2596 = vmatpush1.msra.mxu0 0.0
    %2597 = vmatprep.subr.mxu0 0.0
    %2598 = vmatpush1.msra.mxu0 0.0
    %2599 = vmatprep.subr.mxu0 0.0
    %2600 = vmatpush1.msra.mxu0 0.0
    %2601 = vmatprep.subr.mxu0 0.0
    %2602 = vmatpush1.msra.mxu0 0.0
    %2603 = vmatprep.subr.mxu0 0.0
    %2604 = vmatpush1.msra.mxu0 0.0
    %2605 = vmatprep.subr.mxu0 0.0
    %2606 = vmatpush1.msra.mxu0 0.0
    %2607 = vmatprep.subr.mxu0 0.0
    %2608 = vmatpush1.msra.mxu0 0.0
    %2609 = vmatprep.subr.mxu0 0.0
    %2610 = vmatpush1.msra.mxu0 0.0
    %2611 = vmatprep.subr.mxu0 0.0
    %2612 = vmatpush1.msra.mxu0 0.0
    %2613 = vmatprep.subr.mxu0 0.0
    %2614 = vmatpush1.msra.mxu0 0.0
    %2615 = vmatprep.subr.mxu0 0.0
    %2616 = vmatpush1.msra.mxu0 0.0
    %2617 = vmatprep.mubr.f32.mxu0 0.0
    %2618 = vmatmul.mubr.f32.gmra.mrb[0].mxu0 %v2551
    %v2619 = vpop.f32.mrb[0].mxu0
    %v2620 = vadd.f32 0.0, %v2619
    %v2621 = vpop.f32.mrb[0].mxu0
    %v2622 = vadd.f32 0.0, %v2621
    %2623 = vdwg.mxu0
    %v2624 = vadd.f32 %v2546, %v2620
    %v2625 = vadd.f32 %v2548, %v2622
    %v2626 = vxor.u32 %v2624, 2147483648
    %v2627 = vxor.u32 %v2625, 2147483648
    %v2628 = vmul.f32 %v2626, 1.442695
    %v2629 = vpow.pop %v2628
    %v2630 = vmul.f32 %v2627, 1.442695
    %v2631 = vpow.pop %v2630
    %v2632 = vadd.f32 %v2629, 1.0
    %v2633 = vadd.f32 %v2631, 1.0
    %v2634 = vrcp.pop %v2632
    %v2635 = vmul.f32 1.0, %v2634
    %v2636 = vrcp.pop %v2633
    %v2637 = vmul.f32 1.0, %v2636
    %v2638 = vtanh.pop %v2625
    %v2639 = vmul.f32 %v2635, %v2361
    %2641 = vrot.lane.b32.xlu0 %v2638, 64
    %v2642 = vpop.permute.xlu0 %2641
    %v2644 = vmul.f32 %v2635, %v2642
    %2646 = vrot.lane.b32.xlu0 %v2644, 64
    %v2647 = vpop.permute.xlu0 %2646
    %v2649 = vadd.f32 %v2639, %v2647
    %v2650 = vtanh.pop %v2649
    %2652 = vrot.lane.b32.xlu0 %v2650, 64
    %v2653 = vpop.permute.xlu0 %2652
    %v2655 = vmul.f32 %v2637, %v2653
    %v2656 = vld [vmem:[%s7] sm:$0x1]
    %v2658 = vlaneseq
    %v2659 = vshrl.u32 %v2658, 7
    %v2660 = vsub.s32 0, %v2659
    %v2661 = vrot.slane %v2656, %v2660
    %v2663 = vmul.f32 %v2655, %v2661
    %v2664 = vsel %vm138, %v2663, 0.0
    %2665 = vadd.xlane.f32.xlu0 %v2664
    %v2666 = vpop.xlane.xlu0 %2665
    %v2667 = vld [vmem:[#allocation3] sm:$0x1]
    %v2669 = vlaneseq
    %v2670 = vshrl.u32 %v2669, 7
    %v2671 = vsub.s32 0, %v2670
    %v2672 = vrot.slane %v2667, %v2671
    %v2674 = vadd.f32 %v2666, %v2672
    %vm2675 = vcmask 7168
    %2676 = vst.msk [vmem:[%s9] sm:$0xff] %vm2675, %v2674
    // Predicated region
    $region58: #{tpu_custom_call.1} parent=1 // pred_check
      _
    $region59: #{tpu_custom_call.1} parent=1 // pred_check_branch
      %2678 = sbr.rel (0) target = $region61
    $region60: #{tpu_custom_call.1} parent=1 // pred_region
      _
    $region61: #{tpu_custom_call.1} parent=1 // pred_fallthru
      _
    // Predicated region
    $region62: #{tpu_custom_call.1} parent=1 // pred_check
      _
    $region63: #{tpu_custom_call.1} parent=1 // pred_check_branch
      %2680 = sbr.rel (0) target = $region65
    $region64: #{tpu_custom_call.1} parent=1 // pred_region
      _
    $region65: #{tpu_custom_call.1} parent=1 // pred_fallthru
      _
    %2681 = vsyncpa [#allocation5], 1
    %2682 = vsyncpa [#allocation7], 1
    %2683 = vsyncpa [#allocation10], 1

</llo_original>
